<compile_context>
chip_gen: v6e
topology: v6e:2x2x1
jax: 0.10.0
libtpu: 0.0.40
codegen_flags: <defaults>
</compile_context>

<pallas_src>
import functools

import jax
import jax.numpy as jnp
from jax.experimental import pallas as pl
from jax.experimental.pallas import tpu as pltpu


def _spec2d(shape):
    """Full-array 2D block, resident across the sequential grid axis."""
    return pl.BlockSpec(shape, lambda i: (0, 0))


# ----------------------------- Kernel 1: lin0 + edge MLP + 3x(NNConv + GRU) -----------------------------

def _mp_kernel(x_ref, ea_ref, asrc_ref, atgtT_ref,
               l0w_ref, l0b_ref, nnw_ref, nnb_ref,
               root_ref, cb_ref,
               wih_ref, whh_ref, bih_ref, bhh_ref,
               o_ref,
               out_sc, h_sc, we_sc, *, hidden):
    step = pl.program_id(0)

    @pl.when(step == 0)
    def _init():
        # out = relu(lin0(x)); h0 = out
        out0 = jnp.dot(x_ref[...], l0w_ref[...], preferred_element_type=jnp.float32) + l0b_ref[...]
        out0 = jnp.maximum(out0, 0.0)
        out_sc[...] = out0
        h_sc[...] = out0
        # edge network depends only on edge_attr -> compute once, keep resident in VMEM
        we_sc[...] = (jnp.dot(ea_ref[...], nnw_ref[...], preferred_element_type=jnp.float32)
                      + nnb_ref[...])                                          # [E, H*H]

    out = out_sc[...]
    h = h_sc[...]
    we = we_sc[...]

    # --- NNConv (ECC), aggr='add' ---------------------------------------------------
    # gather source node features per edge on the MXU: x_src = A_src @ out
    x_src = jnp.dot(asrc_ref[...], out, preferred_element_type=jnp.float32)    # [E, H]
    # per-edge weight contraction msgs[e,k] = sum_h x_src[e,h] * We[e, h*H + k]
    # (H-step lane-wise FMA; never materializes an [E, H, H] temporary)
    msgs = x_src[:, 0:1] * we[:, 0:hidden]
    for hcol in range(1, hidden):
        msgs = msgs + x_src[:, hcol:hcol + 1] * we[:, hcol * hidden:(hcol + 1) * hidden]
    # scatter-add messages to target nodes on the MXU: agg = A_tgt^T @ msgs
    agg = jnp.dot(atgtT_ref[...], msgs, preferred_element_type=jnp.float32)    # [N, H]
    m = agg + jnp.dot(out, root_ref[...], preferred_element_type=jnp.float32) + cb_ref[...]
    m = jnp.maximum(m, 0.0)                                                    # relu(conv1(...))

    # --- GRU(H, H) (PyTorch gate order r, z, n) ---------------------------------------
    gi = jnp.dot(m, wih_ref[...], preferred_element_type=jnp.float32) + bih_ref[...]
    gh = jnp.dot(h, whh_ref[...], preferred_element_type=jnp.float32) + bhh_ref[...]
    r = jax.nn.sigmoid(gi[:, 0:hidden] + gh[:, 0:hidden])
    z = jax.nn.sigmoid(gi[:, hidden:2 * hidden] + gh[:, hidden:2 * hidden])
    n = jnp.tanh(gi[:, 2 * hidden:3 * hidden] + r * gh[:, 2 * hidden:3 * hidden])
    h_new = (1.0 - z) * n + z * h

    out_sc[...] = h_new
    h_sc[...] = h_new

    @pl.when(step == pl.num_programs(0) - 1)
    def _finalize():
        o_ref[...] = h_new


def _mp_stack(x, edge_attr, a_src, a_tgt_t, p, *, num_steps=3):
    n_nodes = x.shape[0]
    n_edges = edge_attr.shape[0]
    hidden = p['root'].shape[0]
    args = (x, edge_attr, a_src, a_tgt_t,
            p['lin0_w'], p['lin0_b'], p['nn_w'], p['nn_b'],
            p['root'], p['conv_b'],
            p['gru_wih'], p['gru_whh'], p['gru_bih'], p['gru_bhh'])
    grid_spec = pltpu.PrefetchScalarGridSpec(
        num_scalar_prefetch=0,
        grid=(num_steps,),
        in_specs=[_spec2d(a.shape) for a in args],
        out_specs=_spec2d((n_nodes, hidden)),
        scratch_shapes=[pltpu.VMEM((n_nodes, hidden), jnp.float32),              # out
                        pltpu.VMEM((n_nodes, hidden), jnp.float32),              # h
                        pltpu.VMEM((n_edges, hidden * hidden), jnp.float32)])    # edge weights
    return pl.pallas_call(
        functools.partial(_mp_kernel, hidden=hidden),
        out_shape=jax.ShapeDtypeStruct((n_nodes, hidden), jnp.float32),
        grid_spec=grid_spec,
        compiler_params=pltpu.CompilerParams(dimension_semantics=("arbitrary",)),
    )(*args)


# ----------------------------- Kernel 2: Set2Set (3 steps) + head -----------------------------

def _s2s_head_kernel(x_ref, b_ref, bt_ref,
                     wih_ref, whh_ref, bih_ref, bhh_ref,
                     l1w_ref, l1b_ref, l2w_ref, l2b_ref,
                     y_ref,
                     q_sc, hh_sc, cc_sc, *, hidden):
    step = pl.program_id(0)

    @pl.when(step == 0)
    def _init():
        q_sc[...] = jnp.zeros_like(q_sc)
        hh_sc[...] = jnp.zeros_like(hh_sc)
        cc_sc[...] = jnp.zeros_like(cc_sc)

    q_star = q_sc[...]
    h = hh_sc[...]
    c = cc_sc[...]

    # LSTM(2H -> H), PyTorch gate order i, f, g, o
    g = (jnp.dot(q_star, wih_ref[...], preferred_element_type=jnp.float32) + bih_ref[...]
         + jnp.dot(h, whh_ref[...], preferred_element_type=jnp.float32) + bhh_ref[...])
    i = jax.nn.sigmoid(g[:, 0:hidden])
    f = jax.nn.sigmoid(g[:, hidden:2 * hidden])
    gg = jnp.tanh(g[:, 2 * hidden:3 * hidden])
    o = jax.nn.sigmoid(g[:, 3 * hidden:4 * hidden])
    c_new = f * c + i * gg
    h_new = o * jnp.tanh(c_new)

    # Segment softmax attention over the nodes of each graph (mask math kept in f32).
    x = x_ref[...]                                                    # [N, H]
    bmat = b_ref[...]                                                 # [N, G] one-hot
    qn = jnp.dot(bmat, h_new, preferred_element_type=jnp.float32)     # [N, H] = q[batch]
    e = jnp.sum(x * qn, axis=1, keepdims=True)                        # [N, 1]
    masked = jnp.where(bmat > 0.5, e, jnp.float32(-1e30))             # [N, G]
    gmax = jnp.max(masked, axis=0, keepdims=True)                     # [1, G]
    emax = jnp.sum(bmat * gmax, axis=1, keepdims=True)                # [N, 1]
    ex = jnp.exp(e - emax)                                            # [N, 1] (EUP)
    denom_g = jnp.sum(bmat * ex, axis=0, keepdims=True)               # [1, G]
    denom_n = jnp.sum(bmat * denom_g, axis=1, keepdims=True) + 1e-16  # [N, 1]
    a = ex * pl.reciprocal(denom_n, approx=True)                      # softmax weights (EUP recip)
    r = jnp.dot(bt_ref[...], a * x, preferred_element_type=jnp.float32)  # [G, H] segment weighted sum

    q_new = jnp.concatenate([h_new, r], axis=1)                       # [G, 2H]
    q_sc[...] = q_new
    hh_sc[...] = h_new
    cc_sc[...] = c_new

    # Head fused into the last processing step: y = lin2(relu(lin1(q_star)))
    @pl.when(step == pl.num_programs(0) - 1)
    def _head():
        y1 = jnp.dot(q_new, l1w_ref[...], preferred_element_type=jnp.float32) + l1b_ref[...]
        y1 = jnp.maximum(y1, 0.0)
        y_ref[...] = jnp.dot(y1, l2w_ref[...], preferred_element_type=jnp.float32) + l2b_ref[...]


def _set2set_head(node_feats, bmat, bmat_t, p, *, num_steps=3):
    num_graphs = bmat.shape[1]
    hidden = p['root'].shape[0]
    args = (node_feats, bmat, bmat_t,
            p['lstm_wih'], p['lstm_whh'], p['lstm_bih'], p['lstm_bhh'],
            p['lin1_w'], p['lin1_b'], p['lin2_w'], p['lin2_b'])
    grid_spec = pltpu.PrefetchScalarGridSpec(
        num_scalar_prefetch=0,
        grid=(num_steps,),
        in_specs=[_spec2d(a.shape) for a in args],
        out_specs=_spec2d((num_graphs, 1)),
        scratch_shapes=[pltpu.VMEM((num_graphs, 2 * hidden), jnp.float32),   # q_star
                        pltpu.VMEM((num_graphs, hidden), jnp.float32),       # hh
                        pltpu.VMEM((num_graphs, hidden), jnp.float32)])      # cc
    return pl.pallas_call(
        functools.partial(_s2s_head_kernel, hidden=hidden),
        out_shape=jax.ShapeDtypeStruct((num_graphs, 1), jnp.float32),
        grid_spec=grid_spec,
        compiler_params=pltpu.CompilerParams(dimension_semantics=("arbitrary",)),
    )(*args)


# ----------------------------- Parameters -----------------------------

def init_params(key, f_node, f_edge, hidden):
    ks = jax.random.split(key, 18)

    def u(k, shape, fan_in):
        lim = 1.0 / (fan_in ** 0.5)
        return jax.random.uniform(k, shape, jnp.float32, -lim, lim)

    p = {}
    # lin0: Linear(f_node, H)
    p['lin0_w'] = u(ks[0], (f_node, hidden), f_node)
    p['lin0_b'] = u(ks[1], (1, hidden), f_node)
    # edge MLP (make_mlp(f_edge, [H*H], output_activation=None) == single Linear)
    p['nn_w'] = u(ks[2], (f_edge, hidden * hidden), f_edge)
    p['nn_b'] = u(ks[3], (1, hidden * hidden), f_edge)
    # NNConv root weight + bias
    p['root'] = u(ks[4], (hidden, hidden), hidden)
    p['conv_b'] = u(ks[5], (1, hidden), hidden)
    # GRU(H, H): weights stored transposed [in, 3H], gate order r,z,n
    p['gru_wih'] = u(ks[6], (hidden, 3 * hidden), hidden)
    p['gru_whh'] = u(ks[7], (hidden, 3 * hidden), hidden)
    p['gru_bih'] = u(ks[8], (1, 3 * hidden), hidden)
    p['gru_bhh'] = u(ks[9], (1, 3 * hidden), hidden)
    # Set2Set LSTM(2H -> H): gate order i,f,g,o
    p['lstm_wih'] = u(ks[10], (2 * hidden, 4 * hidden), hidden)
    p['lstm_whh'] = u(ks[11], (hidden, 4 * hidden), hidden)
    p['lstm_bih'] = u(ks[12], (1, 4 * hidden), hidden)
    p['lstm_bhh'] = u(ks[13], (1, 4 * hidden), hidden)
    # lin1: Linear(2H, H), lin2: Linear(H, 1)
    p['lin1_w'] = u(ks[14], (2 * hidden, hidden), 2 * hidden)
    p['lin1_b'] = u(ks[15], (1, hidden), 2 * hidden)
    p['lin2_w'] = u(ks[16], (hidden, 1), hidden)
    p['lin2_b'] = u(ks[17], (1, 1), hidden)
    return p


# ----------------------------- Forward -----------------------------

def mpnn3_forward(params, x, edge_index, edge_attr, batch, num_graphs):
    n_nodes = x.shape[0]

    # One-hot incidence / assignment matrices: gather/scatter as MXU matmuls.
    a_src = jax.nn.one_hot(edge_index[0], n_nodes, dtype=jnp.float32)        # [E, N]
    a_tgt_t = jax.nn.one_hot(edge_index[1], n_nodes, dtype=jnp.float32).T    # [N, E]
    bmat = jax.nn.one_hot(batch, num_graphs, dtype=jnp.float32)              # [N, G]
    bmat_t = bmat.T                                                          # [G, N]

    # lin0 + edge MLP + 3x(NNConv + GRU), fused, state carried in VMEM scratch.
    out = _mp_stack(x, edge_attr, a_src, a_tgt_t, params)                    # [N, H]

    # Set2Set(H, processing_steps=3) + relu(lin1) + lin2, fused.
    y = _set2set_head(out, bmat, bmat_t, params)                             # [G, 1]
    return y.reshape(-1)


# ----------------------------- Example run -----------------------------

if __name__ == "__main__":
    F_NODE, F_EDGE, HIDDEN = 6, 4, 32
    N_NODES, N_GRAPHS = 8, 2

    key = jax.random.PRNGKey(0)
    k_par, k_x, k_e = jax.random.split(key, 3)

    params = init_params(k_par, F_NODE, F_EDGE, HIDDEN)

    x = jax.random.normal(k_x, (N_NODES, F_NODE), jnp.float32)
    # Two chain graphs of 4 nodes each, bidirectional edges -> E = 12
    src = jnp.array([0, 1, 1, 2, 2, 3, 4, 5, 5, 6, 6, 7], jnp.int32)
    tgt = jnp.array([1, 0, 2, 1, 3, 2, 5, 4, 6, 5, 7, 6], jnp.int32)
    edge_index = jnp.stack([src, tgt], axis=0)                               # [2, E]
    edge_attr = jax.random.normal(k_e, (edge_index.shape[1], F_EDGE), jnp.float32)
    batch = jnp.array([0, 0, 0, 0, 1, 1, 1, 1], jnp.int32)

    fwd = jax.jit(mpnn3_forward, static_argnames=('num_graphs',))
    out = fwd(params, x, edge_index, edge_attr, batch, num_graphs=N_GRAPHS)
    jax.block_until_ready(out)

    assert out.shape == (N_GRAPHS,)
    print("KERNEL_OK")
</pallas_src>

<mosaic_0001>
module attributes {stable_mosaic.version = 11 : i64} {
  func.func @_s2s_head_kernel(%arg0: i32, %arg1: memref<8x32xf32, #tpu.memory_space<vmem>>, %arg2: memref<8x2xf32, #tpu.memory_space<vmem>>, %arg3: memref<2x8xf32, #tpu.memory_space<vmem>>, %arg4: memref<64x128xf32, #tpu.memory_space<vmem>>, %arg5: memref<32x128xf32, #tpu.memory_space<vmem>>, %arg6: memref<1x128xf32, #tpu.memory_space<vmem>>, %arg7: memref<1x128xf32, #tpu.memory_space<vmem>>, %arg8: memref<64x32xf32, #tpu.memory_space<vmem>>, %arg9: memref<1x32xf32, #tpu.memory_space<vmem>>, %arg10: memref<32x1xf32, #tpu.memory_space<vmem>>, %arg11: memref<1x1xf32, #tpu.memory_space<vmem>>, %arg12: memref<2x1xf32, #tpu.memory_space<vmem>>, %arg13: memref<2x64xf32, #tpu.memory_space<vmem>>, %arg14: memref<2x32xf32, #tpu.memory_space<vmem>>, %arg15: memref<2x32xf32, #tpu.memory_space<vmem>>) attributes {dimension_semantics = [#tpu.dimension_semantics<arbitrary>], iteration_bounds = array<i64: 3>, scalar_prefetch = 0 : i64, scratch_operands = 3 : i64, tpu.core_type = #tpu.core_type<tc>, window_params = [{pipeline_mode = #tpu.pipeline_mode<synchronous>, transform_indices = @transform_0, window_bounds = array<i64: 8, 32>}, {pipeline_mode = #tpu.pipeline_mode<synchronous>, transform_indices = @transform_1, window_bounds = array<i64: 8, 2>}, {pipeline_mode = #tpu.pipeline_mode<synchronous>, transform_indices = @transform_2, window_bounds = array<i64: 2, 8>}, {pipeline_mode = #tpu.pipeline_mode<synchronous>, transform_indices = @transform_3, window_bounds = array<i64: 64, 128>}, {pipeline_mode = #tpu.pipeline_mode<synchronous>, transform_indices = @transform_4, window_bounds = array<i64: 32, 128>}, {pipeline_mode = #tpu.pipeline_mode<synchronous>, transform_indices = @transform_5, window_bounds = array<i64: 1, 128>}, {pipeline_mode = #tpu.pipeline_mode<synchronous>, transform_indices = @transform_6, window_bounds = array<i64: 1, 128>}, {pipeline_mode = #tpu.pipeline_mode<synchronous>, transform_indices = @transform_7, window_bounds = array<i64: 64, 32>}, {pipeline_mode = #tpu.pipeline_mode<synchronous>, transform_indices = @transform_8, window_bounds = array<i64: 1, 32>}, {pipeline_mode = #tpu.pipeline_mode<synchronous>, transform_indices = @transform_9, window_bounds = array<i64: 32, 1>}, {pipeline_mode = #tpu.pipeline_mode<synchronous>, transform_indices = @transform_10, window_bounds = array<i64: 1, 1>}, {pipeline_mode = #tpu.pipeline_mode<synchronous>, transform_indices = @transform_11, window_bounds = array<i64: 2, 1>}]} {
    %c0_i32 = arith.constant 0 : i32
    %0 = arith.cmpi eq, %arg0, %c0_i32 : i32
    %1 = arith.extui %0 : i1 to i32
    %c0_i32_0 = arith.constant 0 : i32
    %2 = arith.cmpi ne, %1, %c0_i32_0 : i32
    scf.if %2 {
      %cst_41 = arith.constant 0.000000e+00 : f32
      %85 = vector.broadcast %cst_41 : f32 to vector<2x64xf32>
      %c0_42 = arith.constant 0 : index
      %c0_43 = arith.constant 0 : index
      %86 = vector.load %arg13[%c0_42, %c0_43] : memref<2x64xf32, #tpu.memory_space<vmem>>, vector<2x64xf32>
      tpu.vector_store %arg13[%c0_42, %c0_43], %85 {strides = array<i32>} : memref<2x64xf32, #tpu.memory_space<vmem>>, vector<2x64xf32>,
      %cst_44 = arith.constant 0.000000e+00 : f32
      %87 = vector.broadcast %cst_44 : f32 to vector<2x32xf32>
      %c0_45 = arith.constant 0 : index
      %c0_46 = arith.constant 0 : index
      %88 = vector.load %arg14[%c0_45, %c0_46] : memref<2x32xf32, #tpu.memory_space<vmem>>, vector<2x32xf32>
      tpu.vector_store %arg14[%c0_45, %c0_46], %87 {strides = array<i32>} : memref<2x32xf32, #tpu.memory_space<vmem>>, vector<2x32xf32>,
      %cst_47 = arith.constant 0.000000e+00 : f32
      %89 = vector.broadcast %cst_47 : f32 to vector<2x32xf32>
      %c0_48 = arith.constant 0 : index
      %c0_49 = arith.constant 0 : index
      %90 = vector.load %arg15[%c0_48, %c0_49] : memref<2x32xf32, #tpu.memory_space<vmem>>, vector<2x32xf32>
      tpu.vector_store %arg15[%c0_48, %c0_49], %89 {strides = array<i32>} : memref<2x32xf32, #tpu.memory_space<vmem>>, vector<2x32xf32>,
    } else {
    }
    %c0 = arith.constant 0 : index
    %c0_1 = arith.constant 0 : index
    %3 = vector.load %arg13[%c0, %c0_1] : memref<2x64xf32, #tpu.memory_space<vmem>>, vector<2x64xf32>
    %c0_2 = arith.constant 0 : index
    %c0_3 = arith.constant 0 : index
    %4 = vector.load %arg14[%c0_2, %c0_3] : memref<2x32xf32, #tpu.memory_space<vmem>>, vector<2x32xf32>
    %c0_4 = arith.constant 0 : index
    %c0_5 = arith.constant 0 : index
    %5 = vector.load %arg15[%c0_4, %c0_5] : memref<2x32xf32, #tpu.memory_space<vmem>>, vector<2x32xf32>
    %c0_6 = arith.constant 0 : index
    %c0_7 = arith.constant 0 : index
    %6 = vector.load %arg4[%c0_6, %c0_7] : memref<64x128xf32, #tpu.memory_space<vmem>>, vector<64x128xf32>
    %cst = arith.constant dense<0.000000e+00> : vector<2x128xf32>
    %7 = tpu.matmul %3, %6, %cst {dimension_numbers = #tpu.dot_dimension_numbers<[1], [0], [0], [1], [0, 0, 1, 1], [], []>} : vector<2x64xf32>, vector<64x128xf32>, vector<2x128xf32> -> vector<2x128xf32>
    %c0_8 = arith.constant 0 : index
    %c0_9 = arith.constant 0 : index
    %8 = vector.load %arg6[%c0_8, %c0_9] : memref<1x128xf32, #tpu.memory_space<vmem>>, vector<1x128xf32>
    %9 = vector.broadcast %8 : vector<1x128xf32> to vector<2x128xf32>
    %10 = arith.addf %7, %9 : vector<2x128xf32>
    %c0_10 = arith.constant 0 : index
    %c0_11 = arith.constant 0 : index
    %11 = vector.load %arg5[%c0_10, %c0_11] : memref<32x128xf32, #tpu.memory_space<vmem>>, vector<32x128xf32>
    %cst_12 = arith.constant dense<0.000000e+00> : vector<2x128xf32>
    %12 = tpu.matmul %4, %11, %cst_12 {dimension_numbers = #tpu.dot_dimension_numbers<[1], [0], [0], [1], [0, 0, 1, 1], [], []>} : vector<2x32xf32>, vector<32x128xf32>, vector<2x128xf32> -> vector<2x128xf32>
    %13 = arith.addf %10, %12 : vector<2x128xf32>
    %c0_13 = arith.constant 0 : index
    %c0_14 = arith.constant 0 : index
    %14 = vector.load %arg7[%c0_13, %c0_14] : memref<1x128xf32, #tpu.memory_space<vmem>>, vector<1x128xf32>
    %15 = vector.broadcast %14 : vector<1x128xf32> to vector<2x128xf32>
    %16 = arith.addf %13, %15 : vector<2x128xf32>
    %17 = vector.extract_strided_slice %16 {offsets = [0, 0], sizes = [2, 32], strides = [1, 1]} : vector<2x128xf32> to vector<2x32xf32>
    %18 = arith.negf %17 : vector<2x32xf32>
    %19 = math.exp %18 : vector<2x32xf32>
    %cst_15 = arith.constant 1.000000e+00 : f32
    %20 = vector.broadcast %cst_15 : f32 to vector<2x32xf32>
    %21 = arith.addf %20, %19 : vector<2x32xf32>
    %22 = arith.divf %20, %21 : vector<2x32xf32>
    %23 = vector.extract_strided_slice %16 {offsets = [0, 32], sizes = [2, 32], strides = [1, 1]} : vector<2x128xf32> to vector<2x32xf32>
    %24 = arith.negf %23 : vector<2x32xf32>
    %25 = math.exp %24 : vector<2x32xf32>
    %cst_16 = arith.constant 1.000000e+00 : f32
    %26 = vector.broadcast %cst_16 : f32 to vector<2x32xf32>
    %27 = arith.addf %26, %25 : vector<2x32xf32>
    %28 = arith.divf %26, %27 : vector<2x32xf32>
    %29 = vector.extract_strided_slice %16 {offsets = [0, 64], sizes = [2, 32], strides = [1, 1]} : vector<2x128xf32> to vector<2x32xf32>
    %30 = math.tanh %29 : vector<2x32xf32>
    %31 = vector.extract_strided_slice %16 {offsets = [0, 96], sizes = [2, 32], strides = [1, 1]} : vector<2x128xf32> to vector<2x32xf32>
    %32 = arith.negf %31 : vector<2x32xf32>
    %33 = math.exp %32 : vector<2x32xf32>
    %cst_17 = arith.constant 1.000000e+00 : f32
    %34 = vector.broadcast %cst_17 : f32 to vector<2x32xf32>
    %35 = arith.addf %34, %33 : vector<2x32xf32>
    %36 = arith.divf %34, %35 : vector<2x32xf32>
    %37 = arith.mulf %28, %5 : vector<2x32xf32>
    %38 = arith.mulf %22, %30 : vector<2x32xf32>
    %39 = arith.addf %37, %38 : vector<2x32xf32>
    %40 = math.tanh %39 : vector<2x32xf32>
    %41 = arith.mulf %36, %40 : vector<2x32xf32>
    %c0_18 = arith.constant 0 : index
    %c0_19 = arith.constant 0 : index
    %42 = vector.load %arg1[%c0_18, %c0_19] : memref<8x32xf32, #tpu.memory_space<vmem>>, vector<8x32xf32>
    %c0_20 = arith.constant 0 : index
    %c0_21 = arith.constant 0 : index
    %43 = vector.load %arg2[%c0_20, %c0_21] : memref<8x2xf32, #tpu.memory_space<vmem>>, vector<8x2xf32>
    %cst_22 = arith.constant dense<0.000000e+00> : vector<8x32xf32>
    %44 = tpu.matmul %43, %41, %cst_22 {dimension_numbers = #tpu.dot_dimension_numbers<[1], [0], [0], [1], [0, 0, 1, 1], [], []>} : vector<8x2xf32>, vector<2x32xf32>, vector<8x32xf32> -> vector<8x32xf32>
    %45 = arith.mulf %42, %44 : vector<8x32xf32>
    %cst_23 = arith.constant dense<0.000000e+00> : vector<8xf32>
    %46 = vector.multi_reduction <add>, %45, %cst_23 [1] : vector<8x32xf32> to vector<8xf32>
    %47 = vector.shape_cast %46 : vector<8xf32> to vector<8x1xf32>
    %cst_24 = arith.constant 5.000000e-01 : f32
    %48 = vector.broadcast %cst_24 : f32 to vector<8x2xf32>
    %49 = arith.cmpf ogt, %43, %48 : vector<8x2xf32>
    %cst_25 = arith.constant -1.000000e+30 : f32
    %50 = vector.shape_cast %47 : vector<8x1xf32> to vector<8x1xf32>
    %51 = vector.broadcast %50 : vector<8x1xf32> to vector<8x2xf32>
    %52 = vector.broadcast %cst_25 : f32 to vector<8x2xf32>
    %53 = arith.select %49, %51, %52 : vector<8x2xi1>, vector<8x2xf32>
    %cst_26 = arith.constant dense<0xFF800000> : vector<2xf32>
    %54 = vector.multi_reduction <maximumf>, %53, %cst_26 [0] : vector<8x2xf32> to vector<2xf32>
    %55 = vector.shape_cast %54 : vector<2xf32> to vector<1x2xf32>
    %56 = vector.broadcast %55 : vector<1x2xf32> to vector<8x2xf32>
    %57 = arith.mulf %43, %56 : vector<8x2xf32>
    %cst_27 = arith.constant dense<0.000000e+00> : vector<8xf32>
    %58 = vector.multi_reduction <add>, %57, %cst_27 [1] : vector<8x2xf32> to vector<8xf32>
    %59 = vector.shape_cast %58 : vector<8xf32> to vector<8x1xf32>
    %60 = arith.subf %47, %59 : vector<8x1xf32>
    %61 = math.exp %60 : vector<8x1xf32>
    %62 = vector.broadcast %61 : vector<8x1xf32> to vector<8x2xf32>
    %63 = arith.mulf %43, %62 : vector<8x2xf32>
    %cst_28 = arith.constant dense<0.000000e+00> : vector<2xf32>
    %64 = vector.multi_reduction <add>, %63, %cst_28 [0] : vector<8x2xf32> to vector<2xf32>
    %65 = vector.shape_cast %64 : vector<2xf32> to vector<1x2xf32>
    %66 = vector.broadcast %65 : vector<1x2xf32> to vector<8x2xf32>
    %67 = arith.mulf %43, %66 : vector<8x2xf32>
    %cst_29 = arith.constant dense<0.000000e+00> : vector<8xf32>
    %68 = vector.multi_reduction <add>, %67, %cst_29 [1] : vector<8x2xf32> to vector<8xf32>
    %69 = vector.shape_cast %68 : vector<8xf32> to vector<8x1xf32>
    %cst_30 = arith.constant 1.000000e-16 : f32
    %70 = vector.broadcast %cst_30 : f32 to vector<8x1xf32>
    %71 = arith.addf %69, %70 : vector<8x1xf32>
    %72 = tpu.reciprocal %71 {approx = true} : vector<8x1xf32> -> vector<8x1xf32>
    %73 = arith.mulf %61, %72 : vector<8x1xf32>
    %c0_31 = arith.constant 0 : index
    %c0_32 = arith.constant 0 : index
    %74 = vector.load %arg3[%c0_31, %c0_32] : memref<2x8xf32, #tpu.memory_space<vmem>>, vector<2x8xf32>
    %75 = vector.broadcast %73 : vector<8x1xf32> to vector<8x32xf32>
    %76 = arith.mulf %75, %42 : vector<8x32xf32>
    %cst_33 = arith.constant dense<0.000000e+00> : vector<2x32xf32>
    %77 = tpu.matmul %74, %76, %cst_33 {dimension_numbers = #tpu.dot_dimension_numbers<[1], [0], [0], [1], [0, 0, 1, 1], [], []>} : vector<2x8xf32>, vector<8x32xf32>, vector<2x32xf32> -> vector<2x32xf32>
    %78 = tpu.concatenate %41, %77 in 1 : vector<2x32xf32>, vector<2x32xf32> -> vector<2x64xf32>
    %c0_34 = arith.constant 0 : index
    %c0_35 = arith.constant 0 : index
    %79 = vector.load %arg13[%c0_34, %c0_35] : memref<2x64xf32, #tpu.memory_space<vmem>>, vector<2x64xf32>
    tpu.vector_store %arg13[%c0_34, %c0_35], %78 {strides = array<i32>} : memref<2x64xf32, #tpu.memory_space<vmem>>, vector<2x64xf32>,
    %c0_36 = arith.constant 0 : index
    %c0_37 = arith.constant 0 : index
    %80 = vector.load %arg14[%c0_36, %c0_37] : memref<2x32xf32, #tpu.memory_space<vmem>>, vector<2x32xf32>
    tpu.vector_store %arg14[%c0_36, %c0_37], %41 {strides = array<i32>} : memref<2x32xf32, #tpu.memory_space<vmem>>, vector<2x32xf32>,
    %c0_38 = arith.constant 0 : index
    %c0_39 = arith.constant 0 : index
    %81 = vector.load %arg15[%c0_38, %c0_39] : memref<2x32xf32, #tpu.memory_space<vmem>>, vector<2x32xf32>
    tpu.vector_store %arg15[%c0_38, %c0_39], %39 {strides = array<i32>} : memref<2x32xf32, #tpu.memory_space<vmem>>, vector<2x32xf32>,
    %c2_i32 = arith.constant 2 : i32
    %82 = arith.cmpi eq, %arg0, %c2_i32 : i32
    %83 = arith.extui %82 : i1 to i32
    %c0_i32_40 = arith.constant 0 : i32
    %84 = arith.cmpi ne, %83, %c0_i32_40 : i32
    scf.if %84 {
      %c0_41 = arith.constant 0 : index
      %c0_42 = arith.constant 0 : index
      %85 = vector.load %arg8[%c0_41, %c0_42] : memref<64x32xf32, #tpu.memory_space<vmem>>, vector<64x32xf32>
      %cst_43 = arith.constant dense<0.000000e+00> : vector<2x32xf32>
      %86 = tpu.matmul %78, %85, %cst_43 {dimension_numbers = #tpu.dot_dimension_numbers<[1], [0], [0], [1], [0, 0, 1, 1], [], []>} : vector<2x64xf32>, vector<64x32xf32>, vector<2x32xf32> -> vector<2x32xf32>
      %c0_44 = arith.constant 0 : index
      %c0_45 = arith.constant 0 : index
      %87 = vector.load %arg9[%c0_44, %c0_45] : memref<1x32xf32, #tpu.memory_space<vmem>>, vector<1x32xf32>
      %88 = vector.broadcast %87 : vector<1x32xf32> to vector<2x32xf32>
      %89 = arith.addf %86, %88 : vector<2x32xf32>
      %cst_46 = arith.constant 0.000000e+00 : f32
      %90 = vector.broadcast %cst_46 : f32 to vector<2x32xf32>
      %91 = arith.maximumf %89, %90 : vector<2x32xf32>
      %c0_47 = arith.constant 0 : index
      %c0_48 = arith.constant 0 : index
      %92 = vector.load %arg10[%c0_47, %c0_48] : memref<32x1xf32, #tpu.memory_space<vmem>>, vector<32x1xf32>
      %cst_49 = arith.constant dense<0.000000e+00> : vector<2x1xf32>
      %93 = tpu.matmul %91, %92, %cst_49 {dimension_numbers = #tpu.dot_dimension_numbers<[1], [0], [0], [1], [0, 0, 1, 1], [], []>} : vector<2x32xf32>, vector<32x1xf32>, vector<2x1xf32> -> vector<2x1xf32>
      %c0_50 = arith.constant 0 : index
      %c0_51 = arith.constant 0 : index
      %94 = vector.load %arg11[%c0_50, %c0_51] : memref<1x1xf32, #tpu.memory_space<vmem>>, vector<1x1xf32>
      %95 = vector.broadcast %94 : vector<1x1xf32> to vector<2x1xf32>
      %96 = arith.addf %93, %95 : vector<2x1xf32>
      %c0_52 = arith.constant 0 : index
      %c0_53 = arith.constant 0 : index
      %97 = vector.load %arg12[%c0_52, %c0_53] : memref<2x1xf32, #tpu.memory_space<vmem>>, vector<2x1xf32>
      tpu.vector_store %arg12[%c0_52, %c0_53], %96 {strides = array<i32>} : memref<2x1xf32, #tpu.memory_space<vmem>>, vector<2x1xf32>,
    } else {
    }
    return
  }
  func.func @transform_0(%arg0: i32) -> (i32, i32) {
    %c0_i32 = arith.constant 0 : i32
    %c0_i32_0 = arith.constant 0 : i32
    %c0_i32_1 = arith.constant 0 : i32
    return %c0_i32, %c0_i32_0 : i32, i32
  }
  func.func @transform_1(%arg0: i32) -> (i32, i32) {
    %c0_i32 = arith.constant 0 : i32
    %c0_i32_0 = arith.constant 0 : i32
    %c0_i32_1 = arith.constant 0 : i32
    return %c0_i32, %c0_i32_0 : i32, i32
  }
  func.func @transform_2(%arg0: i32) -> (i32, i32) {
    %c0_i32 = arith.constant 0 : i32
    %c0_i32_0 = arith.constant 0 : i32
    %c0_i32_1 = arith.constant 0 : i32
    return %c0_i32, %c0_i32_0 : i32, i32
  }
  func.func @transform_3(%arg0: i32) -> (i32, i32) {
    %c0_i32 = arith.constant 0 : i32
    %c0_i32_0 = arith.constant 0 : i32
    %c0_i32_1 = arith.constant 0 : i32
    return %c0_i32, %c0_i32_0 : i32, i32
  }
  func.func @transform_4(%arg0: i32) -> (i32, i32) {
    %c0_i32 = arith.constant 0 : i32
    %c0_i32_0 = arith.constant 0 : i32
    %c0_i32_1 = arith.constant 0 : i32
    return %c0_i32, %c0_i32_0 : i32, i32
  }
  func.func @transform_5(%arg0: i32) -> (i32, i32) {
    %c0_i32 = arith.constant 0 : i32
    %c0_i32_0 = arith.constant 0 : i32
    %c0_i32_1 = arith.constant 0 : i32
    return %c0_i32, %c0_i32_0 : i32, i32
  }
  func.func @transform_6(%arg0: i32) -> (i32, i32) {
    %c0_i32 = arith.constant 0 : i32
    %c0_i32_0 = arith.constant 0 : i32
    %c0_i32_1 = arith.constant 0 : i32
    return %c0_i32, %c0_i32_0 : i32, i32
  }
  func.func @transform_7(%arg0: i32) -> (i32, i32) {
    %c0_i32 = arith.constant 0 : i32
    %c0_i32_0 = arith.constant 0 : i32
    %c0_i32_1 = arith.constant 0 : i32
    return %c0_i32, %c0_i32_0 : i32, i32
  }
  func.func @transform_8(%arg0: i32) -> (i32, i32) {
    %c0_i32 = arith.constant 0 : i32
    %c0_i32_0 = arith.constant 0 : i32
    %c0_i32_1 = arith.constant 0 : i32
    return %c0_i32, %c0_i32_0 : i32, i32
  }
  func.func @transform_9(%arg0: i32) -> (i32, i32) {
    %c0_i32 = arith.constant 0 : i32
    %c0_i32_0 = arith.constant 0 : i32
    %c0_i32_1 = arith.constant 0 : i32
    return %c0_i32, %c0_i32_0 : i32, i32
  }
  func.func @transform_10(%arg0: i32) -> (i32, i32) {
    %c0_i32 = arith.constant 0 : i32
    %c0_i32_0 = arith.constant 0 : i32
    %c0_i32_1 = arith.constant 0 : i32
    return %c0_i32, %c0_i32_0 : i32, i32
  }
  func.func @transform_11(%arg0: i32) -> (i32, i32) {
    %c0_i32 = arith.constant 0 : i32
    %c0_i32_0 = arith.constant 0 : i32
    %c0_i32_1 = arith.constant 0 : i32
    return %c0_i32, %c0_i32_0 : i32, i32
  }
}

module attributes {stable_mosaic.version = 11 : i64} {
  func.func @_mp_kernel(%arg0: i32, %arg1: memref<8x6xf32, #tpu.memory_space<vmem>>, %arg2: memref<12x4xf32, #tpu.memory_space<vmem>>, %arg3: memref<12x8xf32, #tpu.memory_space<vmem>>, %arg4: memref<8x12xf32, #tpu.memory_space<vmem>>, %arg5: memref<6x32xf32, #tpu.memory_space<vmem>>, %arg6: memref<1x32xf32, #tpu.memory_space<vmem>>, %arg7: memref<4x1024xf32, #tpu.memory_space<vmem>>, %arg8: memref<1x1024xf32, #tpu.memory_space<vmem>>, %arg9: memref<32x32xf32, #tpu.memory_space<vmem>>, %arg10: memref<1x32xf32, #tpu.memory_space<vmem>>, %arg11: memref<32x96xf32, #tpu.memory_space<vmem>>, %arg12: memref<32x96xf32, #tpu.memory_space<vmem>>, %arg13: memref<1x96xf32, #tpu.memory_space<vmem>>, %arg14: memref<1x96xf32, #tpu.memory_space<vmem>>, %arg15: memref<8x32xf32, #tpu.memory_space<vmem>>, %arg16: memref<8x32xf32, #tpu.memory_space<vmem>>, %arg17: memref<8x32xf32, #tpu.memory_space<vmem>>, %arg18: memref<12x1024xf32, #tpu.memory_space<vmem>>) attributes {dimension_semantics = [#tpu.dimension_semantics<arbitrary>], iteration_bounds = array<i64: 3>, scalar_prefetch = 0 : i64, scratch_operands = 3 : i64, tpu.core_type = #tpu.core_type<tc>, window_params = [{pipeline_mode = #tpu.pipeline_mode<synchronous>, transform_indices = @transform_0, window_bounds = array<i64: 8, 6>}, {pipeline_mode = #tpu.pipeline_mode<synchronous>, transform_indices = @transform_1, window_bounds = array<i64: 12, 4>}, {pipeline_mode = #tpu.pipeline_mode<synchronous>, transform_indices = @transform_2, window_bounds = array<i64: 12, 8>}, {pipeline_mode = #tpu.pipeline_mode<synchronous>, transform_indices = @transform_3, window_bounds = array<i64: 8, 12>}, {pipeline_mode = #tpu.pipeline_mode<synchronous>, transform_indices = @transform_4, window_bounds = array<i64: 6, 32>}, {pipeline_mode = #tpu.pipeline_mode<synchronous>, transform_indices = @transform_5, window_bounds = array<i64: 1, 32>}, {pipeline_mode = #tpu.pipeline_mode<synchronous>, transform_indices = @transform_6, window_bounds = array<i64: 4, 1024>}, {pipeline_mode = #tpu.pipeline_mode<synchronous>, transform_indices = @transform_7, window_bounds = array<i64: 1, 1024>}, {pipeline_mode = #tpu.pipeline_mode<synchronous>, transform_indices = @transform_8, window_bounds = array<i64: 32, 32>}, {pipeline_mode = #tpu.pipeline_mode<synchronous>, transform_indices = @transform_9, window_bounds = array<i64: 1, 32>}, {pipeline_mode = #tpu.pipeline_mode<synchronous>, transform_indices = @transform_10, window_bounds = array<i64: 32, 96>}, {pipeline_mode = #tpu.pipeline_mode<synchronous>, transform_indices = @transform_11, window_bounds = array<i64: 32, 96>}, {pipeline_mode = #tpu.pipeline_mode<synchronous>, transform_indices = @transform_12, window_bounds = array<i64: 1, 96>}, {pipeline_mode = #tpu.pipeline_mode<synchronous>, transform_indices = @transform_13, window_bounds = array<i64: 1, 96>}, {pipeline_mode = #tpu.pipeline_mode<synchronous>, transform_indices = @transform_14, window_bounds = array<i64: 8, 32>}]} {
    %c0_i32 = arith.constant 0 : i32
    %0 = arith.cmpi eq, %arg0, %c0_i32 : i32
    %1 = arith.extui %0 : i1 to i32
    %c0_i32_0 = arith.constant 0 : i32
    %2 = arith.cmpi ne, %1, %c0_i32_0 : i32
    scf.if %2 {
      %c0_35 = arith.constant 0 : index
      %c0_36 = arith.constant 0 : index
      %218 = vector.load %arg1[%c0_35, %c0_36] : memref<8x6xf32, #tpu.memory_space<vmem>>, vector<8x6xf32>
      %c0_37 = arith.constant 0 : index
      %c0_38 = arith.constant 0 : index
      %219 = vector.load %arg5[%c0_37, %c0_38] : memref<6x32xf32, #tpu.memory_space<vmem>>, vector<6x32xf32>
      %cst_39 = arith.constant dense<0.000000e+00> : vector<8x32xf32>
      %220 = tpu.matmul %218, %219, %cst_39 {dimension_numbers = #tpu.dot_dimension_numbers<[1], [0], [0], [1], [0, 0, 1, 1], [], []>} : vector<8x6xf32>, vector<6x32xf32>, vector<8x32xf32> -> vector<8x32xf32>
      %c0_40 = arith.constant 0 : index
      %c0_41 = arith.constant 0 : index
      %221 = vector.load %arg6[%c0_40, %c0_41] : memref<1x32xf32, #tpu.memory_space<vmem>>, vector<1x32xf32>
      %222 = vector.broadcast %221 : vector<1x32xf32> to vector<8x32xf32>
      %223 = arith.addf %220, %222 : vector<8x32xf32>
      %cst_42 = arith.constant 0.000000e+00 : f32
      %224 = vector.broadcast %cst_42 : f32 to vector<8x32xf32>
      %225 = arith.maximumf %223, %224 : vector<8x32xf32>
      %c0_43 = arith.constant 0 : index
      %c0_44 = arith.constant 0 : index
      %226 = vector.load %arg16[%c0_43, %c0_44] : memref<8x32xf32, #tpu.memory_space<vmem>>, vector<8x32xf32>
      tpu.vector_store %arg16[%c0_43, %c0_44], %225 {strides = array<i32>} : memref<8x32xf32, #tpu.memory_space<vmem>>, vector<8x32xf32>,
      %c0_45 = arith.constant 0 : index
      %c0_46 = arith.constant 0 : index
      %227 = vector.load %arg17[%c0_45, %c0_46] : memref<8x32xf32, #tpu.memory_space<vmem>>, vector<8x32xf32>
      tpu.vector_store %arg17[%c0_45, %c0_46], %225 {strides = array<i32>} : memref<8x32xf32, #tpu.memory_space<vmem>>, vector<8x32xf32>,
      %c0_47 = arith.constant 0 : index
      %c0_48 = arith.constant 0 : index
      %228 = vector.load %arg2[%c0_47, %c0_48] : memref<12x4xf32, #tpu.memory_space<vmem>>, vector<12x4xf32>
      %c0_49 = arith.constant 0 : index
      %c0_50 = arith.constant 0 : index
      %229 = vector.load %arg7[%c0_49, %c0_50] : memref<4x1024xf32, #tpu.memory_space<vmem>>, vector<4x1024xf32>
      %cst_51 = arith.constant dense<0.000000e+00> : vector<12x1024xf32>
      %230 = tpu.matmul %228, %229, %cst_51 {dimension_numbers = #tpu.dot_dimension_numbers<[1], [0], [0], [1], [0, 0, 1, 1], [], []>} : vector<12x4xf32>, vector<4x1024xf32>, vector<12x1024xf32> -> vector<12x1024xf32>
      %c0_52 = arith.constant 0 : index
      %c0_53 = arith.constant 0 : index
      %231 = vector.load %arg8[%c0_52, %c0_53] : memref<1x1024xf32, #tpu.memory_space<vmem>>, vector<1x1024xf32>
      %232 = vector.broadcast %231 : vector<1x1024xf32> to vector<12x1024xf32>
      %233 = arith.addf %230, %232 : vector<12x1024xf32>
      %c0_54 = arith.constant 0 : index
      %c0_55 = arith.constant 0 : index
      %234 = vector.load %arg18[%c0_54, %c0_55] : memref<12x1024xf32, #tpu.memory_space<vmem>>, vector<12x1024xf32>
      tpu.vector_store %arg18[%c0_54, %c0_55], %233 {strides = array<i32>} : memref<12x1024xf32, #tpu.memory_space<vmem>>, vector<12x1024xf32>,
    } else {
    }
    %c0 = arith.constant 0 : index
    %c0_1 = arith.constant 0 : index
    %3 = vector.load %arg16[%c0, %c0_1] : memref<8x32xf32, #tpu.memory_space<vmem>>, vector<8x32xf32>
    %c0_2 = arith.constant 0 : index
    %c0_3 = arith.constant 0 : index
    %4 = vector.load %arg17[%c0_2, %c0_3] : memref<8x32xf32, #tpu.memory_space<vmem>>, vector<8x32xf32>
    %c0_4 = arith.constant 0 : index
    %c0_5 = arith.constant 0 : index
    %5 = vector.load %arg18[%c0_4, %c0_5] : memref<12x1024xf32, #tpu.memory_space<vmem>>, vector<12x1024xf32>
    %c0_6 = arith.constant 0 : index
    %c0_7 = arith.constant 0 : index
    %6 = vector.load %arg3[%c0_6, %c0_7] : memref<12x8xf32, #tpu.memory_space<vmem>>, vector<12x8xf32>
    %cst = arith.constant dense<0.000000e+00> : vector<12x32xf32>
    %7 = tpu.matmul %6, %3, %cst {dimension_numbers = #tpu.dot_dimension_numbers<[1], [0], [0], [1], [0, 0, 1, 1], [], []>} : vector<12x8xf32>, vector<8x32xf32>, vector<12x32xf32> -> vector<12x32xf32>
    %8 = vector.extract_strided_slice %7 {offsets = [0, 0], sizes = [12, 1], strides = [1, 1]} : vector<12x32xf32> to vector<12x1xf32>
    %9 = vector.extract_strided_slice %5 {offsets = [0, 0], sizes = [12, 32], strides = [1, 1]} : vector<12x1024xf32> to vector<12x32xf32>
    %10 = vector.broadcast %8 : vector<12x1xf32> to vector<12x32xf32>
    %11 = arith.mulf %10, %9 : vector<12x32xf32>
    %12 = vector.extract_strided_slice %7 {offsets = [0, 1], sizes = [12, 1], strides = [1, 1]} : vector<12x32xf32> to vector<12x1xf32>
    %13 = vector.extract_strided_slice %5 {offsets = [0, 32], sizes = [12, 32], strides = [1, 1]} : vector<12x1024xf32> to vector<12x32xf32>
    %14 = vector.broadcast %12 : vector<12x1xf32> to vector<12x32xf32>
    %15 = arith.mulf %14, %13 : vector<12x32xf32>
    %16 = arith.addf %11, %15 : vector<12x32xf32>
    %17 = vector.extract_strided_slice %7 {offsets = [0, 2], sizes = [12, 1], strides = [1, 1]} : vector<12x32xf32> to vector<12x1xf32>
    %18 = vector.extract_strided_slice %5 {offsets = [0, 64], sizes = [12, 32], strides = [1, 1]} : vector<12x1024xf32> to vector<12x32xf32>
    %19 = vector.broadcast %17 : vector<12x1xf32> to vector<12x32xf32>
    %20 = arith.mulf %19, %18 : vector<12x32xf32>
    %21 = arith.addf %16, %20 : vector<12x32xf32>
    %22 = vector.extract_strided_slice %7 {offsets = [0, 3], sizes = [12, 1], strides = [1, 1]} : vector<12x32xf32> to vector<12x1xf32>
    %23 = vector.extract_strided_slice %5 {offsets = [0, 96], sizes = [12, 32], strides = [1, 1]} : vector<12x1024xf32> to vector<12x32xf32>
    %24 = vector.broadcast %22 : vector<12x1xf32> to vector<12x32xf32>
    %25 = arith.mulf %24, %23 : vector<12x32xf32>
    %26 = arith.addf %21, %25 : vector<12x32xf32>
    %27 = vector.extract_strided_slice %7 {offsets = [0, 4], sizes = [12, 1], strides = [1, 1]} : vector<12x32xf32> to vector<12x1xf32>
    %28 = vector.extract_strided_slice %5 {offsets = [0, 128], sizes = [12, 32], strides = [1, 1]} : vector<12x1024xf32> to vector<12x32xf32>
    %29 = vector.broadcast %27 : vector<12x1xf32> to vector<12x32xf32>
    %30 = arith.mulf %29, %28 : vector<12x32xf32>
    %31 = arith.addf %26, %30 : vector<12x32xf32>
    %32 = vector.extract_strided_slice %7 {offsets = [0, 5], sizes = [12, 1], strides = [1, 1]} : vector<12x32xf32> to vector<12x1xf32>
    %33 = vector.extract_strided_slice %5 {offsets = [0, 160], sizes = [12, 32], strides = [1, 1]} : vector<12x1024xf32> to vector<12x32xf32>
    %34 = vector.broadcast %32 : vector<12x1xf32> to vector<12x32xf32>
    %35 = arith.mulf %34, %33 : vector<12x32xf32>
    %36 = arith.addf %31, %35 : vector<12x32xf32>
    %37 = vector.extract_strided_slice %7 {offsets = [0, 6], sizes = [12, 1], strides = [1, 1]} : vector<12x32xf32> to vector<12x1xf32>
    %38 = vector.extract_strided_slice %5 {offsets = [0, 192], sizes = [12, 32], strides = [1, 1]} : vector<12x1024xf32> to vector<12x32xf32>
    %39 = vector.broadcast %37 : vector<12x1xf32> to vector<12x32xf32>
    %40 = arith.mulf %39, %38 : vector<12x32xf32>
    %41 = arith.addf %36, %40 : vector<12x32xf32>
    %42 = vector.extract_strided_slice %7 {offsets = [0, 7], sizes = [12, 1], strides = [1, 1]} : vector<12x32xf32> to vector<12x1xf32>
    %43 = vector.extract_strided_slice %5 {offsets = [0, 224], sizes = [12, 32], strides = [1, 1]} : vector<12x1024xf32> to vector<12x32xf32>
    %44 = vector.broadcast %42 : vector<12x1xf32> to vector<12x32xf32>
    %45 = arith.mulf %44, %43 : vector<12x32xf32>
    %46 = arith.addf %41, %45 : vector<12x32xf32>
    %47 = vector.extract_strided_slice %7 {offsets = [0, 8], sizes = [12, 1], strides = [1, 1]} : vector<12x32xf32> to vector<12x1xf32>
    %48 = vector.extract_strided_slice %5 {offsets = [0, 256], sizes = [12, 32], strides = [1, 1]} : vector<12x1024xf32> to vector<12x32xf32>
    %49 = vector.broadcast %47 : vector<12x1xf32> to vector<12x32xf32>
    %50 = arith.mulf %49, %48 : vector<12x32xf32>
    %51 = arith.addf %46, %50 : vector<12x32xf32>
    %52 = vector.extract_strided_slice %7 {offsets = [0, 9], sizes = [12, 1], strides = [1, 1]} : vector<12x32xf32> to vector<12x1xf32>
    %53 = vector.extract_strided_slice %5 {offsets = [0, 288], sizes = [12, 32], strides = [1, 1]} : vector<12x1024xf32> to vector<12x32xf32>
    %54 = vector.broadcast %52 : vector<12x1xf32> to vector<12x32xf32>
    %55 = arith.mulf %54, %53 : vector<12x32xf32>
    %56 = arith.addf %51, %55 : vector<12x32xf32>
    %57 = vector.extract_strided_slice %7 {offsets = [0, 10], sizes = [12, 1], strides = [1, 1]} : vector<12x32xf32> to vector<12x1xf32>
    %58 = vector.extract_strided_slice %5 {offsets = [0, 320], sizes = [12, 32], strides = [1, 1]} : vector<12x1024xf32> to vector<12x32xf32>
    %59 = vector.broadcast %57 : vector<12x1xf32> to vector<12x32xf32>
    %60 = arith.mulf %59, %58 : vector<12x32xf32>
    %61 = arith.addf %56, %60 : vector<12x32xf32>
    %62 = vector.extract_strided_slice %7 {offsets = [0, 11], sizes = [12, 1], strides = [1, 1]} : vector<12x32xf32> to vector<12x1xf32>
    %63 = vector.extract_strided_slice %5 {offsets = [0, 352], sizes = [12, 32], strides = [1, 1]} : vector<12x1024xf32> to vector<12x32xf32>
    %64 = vector.broadcast %62 : vector<12x1xf32> to vector<12x32xf32>
    %65 = arith.mulf %64, %63 : vector<12x32xf32>
    %66 = arith.addf %61, %65 : vector<12x32xf32>
    %67 = vector.extract_strided_slice %7 {offsets = [0, 12], sizes = [12, 1], strides = [1, 1]} : vector<12x32xf32> to vector<12x1xf32>
    %68 = vector.extract_strided_slice %5 {offsets = [0, 384], sizes = [12, 32], strides = [1, 1]} : vector<12x1024xf32> to vector<12x32xf32>
    %69 = vector.broadcast %67 : vector<12x1xf32> to vector<12x32xf32>
    %70 = arith.mulf %69, %68 : vector<12x32xf32>
    %71 = arith.addf %66, %70 : vector<12x32xf32>
    %72 = vector.extract_strided_slice %7 {offsets = [0, 13], sizes = [12, 1], strides = [1, 1]} : vector<12x32xf32> to vector<12x1xf32>
    %73 = vector.extract_strided_slice %5 {offsets = [0, 416], sizes = [12, 32], strides = [1, 1]} : vector<12x1024xf32> to vector<12x32xf32>
    %74 = vector.broadcast %72 : vector<12x1xf32> to vector<12x32xf32>
    %75 = arith.mulf %74, %73 : vector<12x32xf32>
    %76 = arith.addf %71, %75 : vector<12x32xf32>
    %77 = vector.extract_strided_slice %7 {offsets = [0, 14], sizes = [12, 1], strides = [1, 1]} : vector<12x32xf32> to vector<12x1xf32>
    %78 = vector.extract_strided_slice %5 {offsets = [0, 448], sizes = [12, 32], strides = [1, 1]} : vector<12x1024xf32> to vector<12x32xf32>
    %79 = vector.broadcast %77 : vector<12x1xf32> to vector<12x32xf32>
    %80 = arith.mulf %79, %78 : vector<12x32xf32>
    %81 = arith.addf %76, %80 : vector<12x32xf32>
    %82 = vector.extract_strided_slice %7 {offsets = [0, 15], sizes = [12, 1], strides = [1, 1]} : vector<12x32xf32> to vector<12x1xf32>
    %83 = vector.extract_strided_slice %5 {offsets = [0, 480], sizes = [12, 32], strides = [1, 1]} : vector<12x1024xf32> to vector<12x32xf32>
    %84 = vector.broadcast %82 : vector<12x1xf32> to vector<12x32xf32>
    %85 = arith.mulf %84, %83 : vector<12x32xf32>
    %86 = arith.addf %81, %85 : vector<12x32xf32>
    %87 = vector.extract_strided_slice %7 {offsets = [0, 16], sizes = [12, 1], strides = [1, 1]} : vector<12x32xf32> to vector<12x1xf32>
    %88 = vector.extract_strided_slice %5 {offsets = [0, 512], sizes = [12, 32], strides = [1, 1]} : vector<12x1024xf32> to vector<12x32xf32>
    %89 = vector.broadcast %87 : vector<12x1xf32> to vector<12x32xf32>
    %90 = arith.mulf %89, %88 : vector<12x32xf32>
    %91 = arith.addf %86, %90 : vector<12x32xf32>
    %92 = vector.extract_strided_slice %7 {offsets = [0, 17], sizes = [12, 1], strides = [1, 1]} : vector<12x32xf32> to vector<12x1xf32>
    %93 = vector.extract_strided_slice %5 {offsets = [0, 544], sizes = [12, 32], strides = [1, 1]} : vector<12x1024xf32> to vector<12x32xf32>
    %94 = vector.broadcast %92 : vector<12x1xf32> to vector<12x32xf32>
    %95 = arith.mulf %94, %93 : vector<12x32xf32>
    %96 = arith.addf %91, %95 : vector<12x32xf32>
    %97 = vector.extract_strided_slice %7 {offsets = [0, 18], sizes = [12, 1], strides = [1, 1]} : vector<12x32xf32> to vector<12x1xf32>
    %98 = vector.extract_strided_slice %5 {offsets = [0, 576], sizes = [12, 32], strides = [1, 1]} : vector<12x1024xf32> to vector<12x32xf32>
    %99 = vector.broadcast %97 : vector<12x1xf32> to vector<12x32xf32>
    %100 = arith.mulf %99, %98 : vector<12x32xf32>
    %101 = arith.addf %96, %100 : vector<12x32xf32>
    %102 = vector.extract_strided_slice %7 {offsets = [0, 19], sizes = [12, 1], strides = [1, 1]} : vector<12x32xf32> to vector<12x1xf32>
    %103 = vector.extract_strided_slice %5 {offsets = [0, 608], sizes = [12, 32], strides = [1, 1]} : vector<12x1024xf32> to vector<12x32xf32>
    %104 = vector.broadcast %102 : vector<12x1xf32> to vector<12x32xf32>
    %105 = arith.mulf %104, %103 : vector<12x32xf32>
    %106 = arith.addf %101, %105 : vector<12x32xf32>
    %107 = vector.extract_strided_slice %7 {offsets = [0, 20], sizes = [12, 1], strides = [1, 1]} : vector<12x32xf32> to vector<12x1xf32>
    %108 = vector.extract_strided_slice %5 {offsets = [0, 640], sizes = [12, 32], strides = [1, 1]} : vector<12x1024xf32> to vector<12x32xf32>
    %109 = vector.broadcast %107 : vector<12x1xf32> to vector<12x32xf32>
    %110 = arith.mulf %109, %108 : vector<12x32xf32>
    %111 = arith.addf %106, %110 : vector<12x32xf32>
    %112 = vector.extract_strided_slice %7 {offsets = [0, 21], sizes = [12, 1], strides = [1, 1]} : vector<12x32xf32> to vector<12x1xf32>
    %113 = vector.extract_strided_slice %5 {offsets = [0, 672], sizes = [12, 32], strides = [1, 1]} : vector<12x1024xf32> to vector<12x32xf32>
    %114 = vector.broadcast %112 : vector<12x1xf32> to vector<12x32xf32>
    %115 = arith.mulf %114, %113 : vector<12x32xf32>
    %116 = arith.addf %111, %115 : vector<12x32xf32>
    %117 = vector.extract_strided_slice %7 {offsets = [0, 22], sizes = [12, 1], strides = [1, 1]} : vector<12x32xf32> to vector<12x1xf32>
    %118 = vector.extract_strided_slice %5 {offsets = [0, 704], sizes = [12, 32], strides = [1, 1]} : vector<12x1024xf32> to vector<12x32xf32>
    %119 = vector.broadcast %117 : vector<12x1xf32> to vector<12x32xf32>
    %120 = arith.mulf %119, %118 : vector<12x32xf32>
    %121 = arith.addf %116, %120 : vector<12x32xf32>
    %122 = vector.extract_strided_slice %7 {offsets = [0, 23], sizes = [12, 1], strides = [1, 1]} : vector<12x32xf32> to vector<12x1xf32>
    %123 = vector.extract_strided_slice %5 {offsets = [0, 736], sizes = [12, 32], strides = [1, 1]} : vector<12x1024xf32> to vector<12x32xf32>
    %124 = vector.broadcast %122 : vector<12x1xf32> to vector<12x32xf32>
    %125 = arith.mulf %124, %123 : vector<12x32xf32>
    %126 = arith.addf %121, %125 : vector<12x32xf32>
    %127 = vector.extract_strided_slice %7 {offsets = [0, 24], sizes = [12, 1], strides = [1, 1]} : vector<12x32xf32> to vector<12x1xf32>
    %128 = vector.extract_strided_slice %5 {offsets = [0, 768], sizes = [12, 32], strides = [1, 1]} : vector<12x1024xf32> to vector<12x32xf32>
    %129 = vector.broadcast %127 : vector<12x1xf32> to vector<12x32xf32>
    %130 = arith.mulf %129, %128 : vector<12x32xf32>
    %131 = arith.addf %126, %130 : vector<12x32xf32>
    %132 = vector.extract_strided_slice %7 {offsets = [0, 25], sizes = [12, 1], strides = [1, 1]} : vector<12x32xf32> to vector<12x1xf32>
    %133 = vector.extract_strided_slice %5 {offsets = [0, 800], sizes = [12, 32], strides = [1, 1]} : vector<12x1024xf32> to vector<12x32xf32>
    %134 = vector.broadcast %132 : vector<12x1xf32> to vector<12x32xf32>
    %135 = arith.mulf %134, %133 : vector<12x32xf32>
    %136 = arith.addf %131, %135 : vector<12x32xf32>
    %137 = vector.extract_strided_slice %7 {offsets = [0, 26], sizes = [12, 1], strides = [1, 1]} : vector<12x32xf32> to vector<12x1xf32>
    %138 = vector.extract_strided_slice %5 {offsets = [0, 832], sizes = [12, 32], strides = [1, 1]} : vector<12x1024xf32> to vector<12x32xf32>
    %139 = vector.broadcast %137 : vector<12x1xf32> to vector<12x32xf32>
    %140 = arith.mulf %139, %138 : vector<12x32xf32>
    %141 = arith.addf %136, %140 : vector<12x32xf32>
    %142 = vector.extract_strided_slice %7 {offsets = [0, 27], sizes = [12, 1], strides = [1, 1]} : vector<12x32xf32> to vector<12x1xf32>
    %143 = vector.extract_strided_slice %5 {offsets = [0, 864], sizes = [12, 32], strides = [1, 1]} : vector<12x1024xf32> to vector<12x32xf32>
    %144 = vector.broadcast %142 : vector<12x1xf32> to vector<12x32xf32>
    %145 = arith.mulf %144, %143 : vector<12x32xf32>
    %146 = arith.addf %141, %145 : vector<12x32xf32>
    %147 = vector.extract_strided_slice %7 {offsets = [0, 28], sizes = [12, 1], strides = [1, 1]} : vector<12x32xf32> to vector<12x1xf32>
    %148 = vector.extract_strided_slice %5 {offsets = [0, 896], sizes = [12, 32], strides = [1, 1]} : vector<12x1024xf32> to vector<12x32xf32>
    %149 = vector.broadcast %147 : vector<12x1xf32> to vector<12x32xf32>
    %150 = arith.mulf %149, %148 : vector<12x32xf32>
    %151 = arith.addf %146, %150 : vector<12x32xf32>
    %152 = vector.extract_strided_slice %7 {offsets = [0, 29], sizes = [12, 1], strides = [1, 1]} : vector<12x32xf32> to vector<12x1xf32>
    %153 = vector.extract_strided_slice %5 {offsets = [0, 928], sizes = [12, 32], strides = [1, 1]} : vector<12x1024xf32> to vector<12x32xf32>
    %154 = vector.broadcast %152 : vector<12x1xf32> to vector<12x32xf32>
    %155 = arith.mulf %154, %153 : vector<12x32xf32>
    %156 = arith.addf %151, %155 : vector<12x32xf32>
    %157 = vector.extract_strided_slice %7 {offsets = [0, 30], sizes = [12, 1], strides = [1, 1]} : vector<12x32xf32> to vector<12x1xf32>
    %158 = vector.extract_strided_slice %5 {offsets = [0, 960], sizes = [12, 32], strides = [1, 1]} : vector<12x1024xf32> to vector<12x32xf32>
    %159 = vector.broadcast %157 : vector<12x1xf32> to vector<12x32xf32>
    %160 = arith.mulf %159, %158 : vector<12x32xf32>
    %161 = arith.addf %156, %160 : vector<12x32xf32>
    %162 = vector.extract_strided_slice %7 {offsets = [0, 31], sizes = [12, 1], strides = [1, 1]} : vector<12x32xf32> to vector<12x1xf32>
    %163 = vector.extract_strided_slice %5 {offsets = [0, 992], sizes = [12, 32], strides = [1, 1]} : vector<12x1024xf32> to vector<12x32xf32>
    %164 = vector.broadcast %162 : vector<12x1xf32> to vector<12x32xf32>
    %165 = arith.mulf %164, %163 : vector<12x32xf32>
    %166 = arith.addf %161, %165 : vector<12x32xf32>
    %c0_8 = arith.constant 0 : index
    %c0_9 = arith.constant 0 : index
    %167 = vector.load %arg4[%c0_8, %c0_9] : memref<8x12xf32, #tpu.memory_space<vmem>>, vector<8x12xf32>
    %cst_10 = arith.constant dense<0.000000e+00> : vector<8x32xf32>
    %168 = tpu.matmul %167, %166, %cst_10 {dimension_numbers = #tpu.dot_dimension_numbers<[1], [0], [0], [1], [0, 0, 1, 1], [], []>} : vector<8x12xf32>, vector<12x32xf32>, vector<8x32xf32> -> vector<8x32xf32>
    %c0_11 = arith.constant 0 : index
    %c0_12 = arith.constant 0 : index
    %169 = vector.load %arg9[%c0_11, %c0_12] : memref<32x32xf32, #tpu.memory_space<vmem>>, vector<32x32xf32>
    %cst_13 = arith.constant dense<0.000000e+00> : vector<8x32xf32>
    %170 = tpu.matmul %3, %169, %cst_13 {dimension_numbers = #tpu.dot_dimension_numbers<[1], [0], [0], [1], [0, 0, 1, 1], [], []>} : vector<8x32xf32>, vector<32x32xf32>, vector<8x32xf32> -> vector<8x32xf32>
    %171 = arith.addf %168, %170 : vector<8x32xf32>
    %c0_14 = arith.constant 0 : index
    %c0_15 = arith.constant 0 : index
    %172 = vector.load %arg10[%c0_14, %c0_15] : memref<1x32xf32, #tpu.memory_space<vmem>>, vector<1x32xf32>
    %173 = vector.broadcast %172 : vector<1x32xf32> to vector<8x32xf32>
    %174 = arith.addf %171, %173 : vector<8x32xf32>
    %cst_16 = arith.constant 0.000000e+00 : f32
    %175 = vector.broadcast %cst_16 : f32 to vector<8x32xf32>
    %176 = arith.maximumf %174, %175 : vector<8x32xf32>
    %c0_17 = arith.constant 0 : index
    %c0_18 = arith.constant 0 : index
    %177 = vector.load %arg11[%c0_17, %c0_18] : memref<32x96xf32, #tpu.memory_space<vmem>>, vector<32x96xf32>
    %cst_19 = arith.constant dense<0.000000e+00> : vector<8x96xf32>
    %178 = tpu.matmul %176, %177, %cst_19 {dimension_numbers = #tpu.dot_dimension_numbers<[1], [0], [0], [1], [0, 0, 1, 1], [], []>} : vector<8x32xf32>, vector<32x96xf32>, vector<8x96xf32> -> vector<8x96xf32>
    %c0_20 = arith.constant 0 : index
    %c0_21 = arith.constant 0 : index
    %179 = vector.load %arg13[%c0_20, %c0_21] : memref<1x96xf32, #tpu.memory_space<vmem>>, vector<1x96xf32>
    %180 = vector.broadcast %179 : vector<1x96xf32> to vector<8x96xf32>
    %181 = arith.addf %178, %180 : vector<8x96xf32>
    %c0_22 = arith.constant 0 : index
    %c0_23 = arith.constant 0 : index
    %182 = vector.load %arg12[%c0_22, %c0_23] : memref<32x96xf32, #tpu.memory_space<vmem>>, vector<32x96xf32>
    %cst_24 = arith.constant dense<0.000000e+00> : vector<8x96xf32>
    %183 = tpu.matmul %4, %182, %cst_24 {dimension_numbers = #tpu.dot_dimension_numbers<[1], [0], [0], [1], [0, 0, 1, 1], [], []>} : vector<8x32xf32>, vector<32x96xf32>, vector<8x96xf32> -> vector<8x96xf32>
    %c0_25 = arith.constant 0 : index
    %c0_26 = arith.constant 0 : index
    %184 = vector.load %arg14[%c0_25, %c0_26] : memref<1x96xf32, #tpu.memory_space<vmem>>, vector<1x96xf32>
    %185 = vector.broadcast %184 : vector<1x96xf32> to vector<8x96xf32>
    %186 = arith.addf %183, %185 : vector<8x96xf32>
    %187 = vector.extract_strided_slice %181 {offsets = [0, 0], sizes = [8, 32], strides = [1, 1]} : vector<8x96xf32> to vector<8x32xf32>
    %188 = vector.extract_strided_slice %186 {offsets = [0, 0], sizes = [8, 32], strides = [1, 1]} : vector<8x96xf32> to vector<8x32xf32>
    %189 = arith.addf %187, %188 : vector<8x32xf32>
    %190 = arith.negf %189 : vector<8x32xf32>
    %191 = math.exp %190 : vector<8x32xf32>
    %cst_27 = arith.constant 1.000000e+00 : f32
    %192 = vector.broadcast %cst_27 : f32 to vector<8x32xf32>
    %193 = arith.addf %192, %191 : vector<8x32xf32>
    %194 = arith.divf %192, %193 : vector<8x32xf32>
    %195 = vector.extract_strided_slice %181 {offsets = [0, 32], sizes = [8, 32], strides = [1, 1]} : vector<8x96xf32> to vector<8x32xf32>
    %196 = vector.extract_strided_slice %186 {offsets = [0, 32], sizes = [8, 32], strides = [1, 1]} : vector<8x96xf32> to vector<8x32xf32>
    %197 = arith.addf %195, %196 : vector<8x32xf32>
    %198 = arith.negf %197 : vector<8x32xf32>
    %199 = math.exp %198 : vector<8x32xf32>
    %cst_28 = arith.constant 1.000000e+00 : f32
    %200 = vector.broadcast %cst_28 : f32 to vector<8x32xf32>
    %201 = arith.addf %200, %199 : vector<8x32xf32>
    %202 = arith.divf %200, %201 : vector<8x32xf32>
    %203 = vector.extract_strided_slice %181 {offsets = [0, 64], sizes = [8, 32], strides = [1, 1]} : vector<8x96xf32> to vector<8x32xf32>
    %204 = vector.extract_strided_slice %186 {offsets = [0, 64], sizes = [8, 32], strides = [1, 1]} : vector<8x96xf32> to vector<8x32xf32>
    %205 = arith.mulf %194, %204 : vector<8x32xf32>
    %206 = arith.addf %203, %205 : vector<8x32xf32>
    %207 = math.tanh %206 : vector<8x32xf32>
    %cst_29 = arith.constant 1.000000e+00 : f32
    %208 = vector.broadcast %cst_29 : f32 to vector<8x32xf32>
    %209 = arith.subf %208, %202 : vector<8x32xf32>
    %210 = arith.mulf %209, %207 : vector<8x32xf32>
    %211 = arith.mulf %202, %4 : vector<8x32xf32>
    %212 = arith.addf %210, %211 : vector<8x32xf32>
    %c0_30 = arith.constant 0 : index
    %c0_31 = arith.constant 0 : index
    %213 = vector.load %arg16[%c0_30, %c0_31] : memref<8x32xf32, #tpu.memory_space<vmem>>, vector<8x32xf32>
    tpu.vector_store %arg16[%c0_30, %c0_31], %212 {strides = array<i32>} : memref<8x32xf32, #tpu.memory_space<vmem>>, vector<8x32xf32>,
    %c0_32 = arith.constant 0 : index
    %c0_33 = arith.constant 0 : index
    %214 = vector.load %arg17[%c0_32, %c0_33] : memref<8x32xf32, #tpu.memory_space<vmem>>, vector<8x32xf32>
    tpu.vector_store %arg17[%c0_32, %c0_33], %212 {strides = array<i32>} : memref<8x32xf32, #tpu.memory_space<vmem>>, vector<8x32xf32>,
    %c2_i32 = arith.constant 2 : i32
    %215 = arith.cmpi eq, %arg0, %c2_i32 : i32
    %216 = arith.extui %215 : i1 to i32
    %c0_i32_34 = arith.constant 0 : i32
    %217 = arith.cmpi ne, %216, %c0_i32_34 : i32
    scf.if %217 {
      %c0_35 = arith.constant 0 : index
      %c0_36 = arith.constant 0 : index
      %218 = vector.load %arg15[%c0_35, %c0_36] : memref<8x32xf32, #tpu.memory_space<vmem>>, vector<8x32xf32>
      tpu.vector_store %arg15[%c0_35, %c0_36], %212 {strides = array<i32>} : memref<8x32xf32, #tpu.memory_space<vmem>>, vector<8x32xf32>,
    } else {
    }
    return
  }
  func.func @transform_0(%arg0: i32) -> (i32, i32) {
    %c0_i32 = arith.constant 0 : i32
    %c0_i32_0 = arith.constant 0 : i32
    %c0_i32_1 = arith.constant 0 : i32
    return %c0_i32, %c0_i32_0 : i32, i32
  }
  func.func @transform_1(%arg0: i32) -> (i32, i32) {
    %c0_i32 = arith.constant 0 : i32
    %c0_i32_0 = arith.constant 0 : i32
    %c0_i32_1 = arith.constant 0 : i32
    return %c0_i32, %c0_i32_0 : i32, i32
  }
  func.func @transform_2(%arg0: i32) -> (i32, i32) {
    %c0_i32 = arith.constant 0 : i32
    %c0_i32_0 = arith.constant 0 : i32
    %c0_i32_1 = arith.constant 0 : i32
    return %c0_i32, %c0_i32_0 : i32, i32
  }
  func.func @transform_3(%arg0: i32) -> (i32, i32) {
    %c0_i32 = arith.constant 0 : i32
    %c0_i32_0 = arith.constant 0 : i32
    %c0_i32_1 = arith.constant 0 : i32
    return %c0_i32, %c0_i32_0 : i32, i32
  }
  func.func @transform_4(%arg0: i32) -> (i32, i32) {
    %c0_i32 = arith.constant 0 : i32
    %c0_i32_0 = arith.constant 0 : i32
    %c0_i32_1 = arith.constant 0 : i32
    return %c0_i32, %c0_i32_0 : i32, i32
  }
  func.func @transform_5(%arg0: i32) -> (i32, i32) {
    %c0_i32 = arith.constant 0 : i32
    %c0_i32_0 = arith.constant 0 : i32
    %c0_i32_1 = arith.constant 0 : i32
    return %c0_i32, %c0_i32_0 : i32, i32
  }
  func.func @transform_6(%arg0: i32) -> (i32, i32) {
    %c0_i32 = arith.constant 0 : i32
    %c0_i32_0 = arith.constant 0 : i32
    %c0_i32_1 = arith.constant 0 : i32
    return %c0_i32, %c0_i32_0 : i32, i32
  }
  func.func @transform_7(%arg0: i32) -> (i32, i32) {
    %c0_i32 = arith.constant 0 : i32
    %c0_i32_0 = arith.constant 0 : i32
    %c0_i32_1 = arith.constant 0 : i32
    return %c0_i32, %c0_i32_0 : i32, i32
  }
  func.func @transform_8(%arg0: i32) -> (i32, i32) {
    %c0_i32 = arith.constant 0 : i32
    %c0_i32_0 = arith.constant 0 : i32
    %c0_i32_1 = arith.constant 0 : i32
    return %c0_i32, %c0_i32_0 : i32, i32
  }
  func.func @transform_9(%arg0: i32) -> (i32, i32) {
    %c0_i32 = arith.constant 0 : i32
    %c0_i32_0 = arith.constant 0 : i32
    %c0_i32_1 = arith.constant 0 : i32
    return %c0_i32, %c0_i32_0 : i32, i32
  }
  func.func @transform_10(%arg0: i32) -> (i32, i32) {
    %c0_i32 = arith.constant 0 : i32
    %c0_i32_0 = arith.constant 0 : i32
    %c0_i32_1 = arith.constant 0 : i32
    return %c0_i32, %c0_i32_0 : i32, i32
  }
  func.func @transform_11(%arg0: i32) -> (i32, i32) {
    %c0_i32 = arith.constant 0 : i32
    %c0_i32_0 = arith.constant 0 : i32
    %c0_i32_1 = arith.constant 0 : i32
    return %c0_i32, %c0_i32_0 : i32, i32
  }
  func.func @transform_12(%arg0: i32) -> (i32, i32) {
    %c0_i32 = arith.constant 0 : i32
    %c0_i32_0 = arith.constant 0 : i32
    %c0_i32_1 = arith.constant 0 : i32
    return %c0_i32, %c0_i32_0 : i32, i32
  }
  func.func @transform_13(%arg0: i32) -> (i32, i32) {
    %c0_i32 = arith.constant 0 : i32
    %c0_i32_0 = arith.constant 0 : i32
    %c0_i32_1 = arith.constant 0 : i32
    return %c0_i32, %c0_i32_0 : i32, i32
  }
  func.func @transform_14(%arg0: i32) -> (i32, i32) {
    %c0_i32 = arith.constant 0 : i32
    %c0_i32_0 = arith.constant 0 : i32
    %c0_i32_1 = arith.constant 0 : i32
    return %c0_i32, %c0_i32_0 : i32, i32
  }
}

</mosaic_0001>

<llo_original>
// kernel: mpnn3_forward.3
$region0: #{mpnn3_forward.3}
  #allocation0 [shape = 'u32[]', space=smem, size = 0x4, offset = 0x4, fixed_abs, tag = 'smem constant byte address 0x4 - core index']
  #allocation1 [shape = 'u32[144,128]{1,0:T(1,128)}', space=vmem, size = 0x12000, scoped, tag = 'internal scratch']
  #allocation2 [shape = 'f32[2,64]{1,0:T(2,128)}', space=vmem, size = 0x400, scoped, tag = 'scratch operand']
  #allocation3 [shape = 'f32[2,32]{1,0:T(2,128)}', space=vmem, size = 0x400, scoped, tag = 'scratch operand']
  #allocation4 [shape = 'f32[2,32]{1,0:T(2,128)}', space=vmem, size = 0x400, scoped, tag = 'scratch operand']
  #allocation5 [shape = 'f32[1,1]{1,0:T(1,128)S(1)}', space=vmem, size = 0x200, scoped, tag = 'scoped memory for mpnn3_forward.3']
  %s0 = inlined_call_operand.vmem [shape: f32[8,32], index: 0, kind: input, shape index: {}]
  %s1 = inlined_call_operand.vmem [shape: f32[8,2], index: 1, kind: input, shape index: {}]
  %s2 = inlined_call_operand.vmem [shape: f32[2,8], index: 2, kind: input, shape index: {}]
  %s3 = inlined_call_operand.vmem [shape: f32[64,128], index: 3, kind: input, shape index: {}]
  %s4 = inlined_call_operand.vmem [shape: f32[32,128], index: 4, kind: input, shape index: {}]
  %s5 = inlined_call_operand.vmem [shape: f32[1,128], index: 5, kind: input, shape index: {}]
  %s6 = inlined_call_operand.vmem [shape: f32[1,128], index: 6, kind: input, shape index: {}]
  %s7 = inlined_call_operand.vmem [shape: f32[64,32], index: 7, kind: input, shape index: {}]
  %s8 = inlined_call_operand.vmem [shape: f32[1,32], index: 8, kind: input, shape index: {}]
  %s9 = inlined_call_operand.vmem [shape: f32[32,1], index: 9, kind: input, shape index: {}]
  %s10 = inlined_call_operand.<no memory space> [shape: f32[1,1], index: 10, kind: input, shape index: {}]
  %s11 = inlined_call_operand.vmem [shape: f32[2,1], index: 11, kind: output, shape index: {}]
  %s12 = sld [smem:[#allocation0]]
  $region85: #{mpnn3_forward.3} parent=0
    _
  %s14 = ssub.s32 1, %s12
  %s15 = scalar_select 0, %s14, %s12
  %v16 = vstv %s10
  %17 = vst [vmem:[#allocation5] sm:$0x1] %v16
  loop: start=0, step=1, limit=5
  $region2: #{mpnn3_forward.3} parent=0 // loop_pre_header
    _
  $region3: #{mpnn3_forward.3} parent=0 // loop_header
    %s19 = sphi 0, %s23
    %p20 = scmp.ge.s32.totalorder %s19, 5
    %s27 = sphi 0, %s27
    %s29 = sphi 0, %s27
    %s30 = sphi 0, %s29
    %s44 = sphi 0, %s30
    %s48 = sphi 0, %s48
    %s50 = sphi 0, %s48
    %s51 = sphi 0, %s50
    %s65 = sphi 0, %s51
    %s69 = sphi 0, %s69
    %s71 = sphi 0, %s69
    %s72 = sphi 0, %s71
    %s86 = sphi 0, %s72
    %s90 = sphi 0, %s90
    %s92 = sphi 0, %s90
    %s93 = sphi 0, %s92
    %s107 = sphi 0, %s93
    %s111 = sphi 0, %s111
    %s113 = sphi 0, %s111
    %s114 = sphi 0, %s113
    %s128 = sphi 0, %s114
    %s132 = sphi 0, %s132
    %s134 = sphi 0, %s132
    %s135 = sphi 0, %s134
    %s149 = sphi 0, %s135
    %s153 = sphi 0, %s153
    %s155 = sphi 0, %s153
    %s156 = sphi 0, %s155
    %s170 = sphi 0, %s156
    %s174 = sphi 0, %s174
    %s176 = sphi 0, %s174
    %s177 = sphi 0, %s176
    %s191 = sphi 0, %s177
    %s195 = sphi 0, %s195
    %s197 = sphi 0, %s195
    %s198 = sphi 0, %s197
    %s212 = sphi 0, %s198
    %s216 = sphi 0, %s216
    %s218 = sphi 0, %s216
    %s219 = sphi 0, %s218
    %s233 = sphi 0, %s219
    %s237 = sphi 0, %s237
    %s239 = sphi 0, %s237
    %s240 = sphi 0, %s239
    %s254 = sphi 0, %s240
    %s258 = sphi 0, %s258
    %s260 = sphi 0, %s258
    %s261 = sphi 0, %s260
    %s275 = sphi 0, %s261
  $region4: #{mpnn3_forward.3} parent=0 // loop_header_branch
    %22 = sbr.rel (%p20) target = $region8
  $region5: #{mpnn3_forward.3} parent=0 // loop_body
    %s24 = ssub.s32 %s19, 1
    %s25 = ssub.s32 %s19, 2
    %s26 = sadd.s32 %s19, 1
    %s28 = sadd.s32 %s27, 1
    %p31 = scmp.eq.s32.totalorder %s19, 2
    %p32 = scmp.ne.s32.totalorder %s27, %s29
    %p33 = scmp.eq.s32.totalorder %s19, 0
    %p34 = por %p32, %p33
    %p35 = scmp.ne.s32.totalorder %s27, %s29
    %p36 = scmp.eq.s32.totalorder %s24, 2
    %p37 = por %p35, %p36
    %p38 = scmp.ne.s32.totalorder %s29, %s30
    %p39 = scmp.eq.s32.totalorder %s24, 0
    %p40 = por %p38, %p39
    %p41 = scmp.ne.s32.totalorder %s29, %s30
    %p42 = scmp.eq.s32.totalorder %s25, 2
    %p43 = por %p41, %p42
    %p45 = scmp.ne.s32.totalorder %s30, %s44
    %p46 = scmp.eq.s32.totalorder %s25, 0
    %p47 = por %p45, %p46
    %s49 = sadd.s32 %s48, 1
    %p52 = scmp.eq.s32.totalorder %s19, 2
    %p53 = scmp.ne.s32.totalorder %s48, %s50
    %p54 = scmp.eq.s32.totalorder %s19, 0
    %p55 = por %p53, %p54
    %p56 = scmp.ne.s32.totalorder %s48, %s50
    %p57 = scmp.eq.s32.totalorder %s24, 2
    %p58 = por %p56, %p57
    %p59 = scmp.ne.s32.totalorder %s50, %s51
    %p60 = scmp.eq.s32.totalorder %s24, 0
    %p61 = por %p59, %p60
    %p62 = scmp.ne.s32.totalorder %s50, %s51
    %p63 = scmp.eq.s32.totalorder %s25, 2
    %p64 = por %p62, %p63
    %p66 = scmp.ne.s32.totalorder %s51, %s65
    %p67 = scmp.eq.s32.totalorder %s25, 0
    %p68 = por %p66, %p67
    %s70 = sadd.s32 %s69, 1
    %p73 = scmp.eq.s32.totalorder %s19, 2
    %p74 = scmp.ne.s32.totalorder %s69, %s71
    %p75 = scmp.eq.s32.totalorder %s19, 0
    %p76 = por %p74, %p75
    %p77 = scmp.ne.s32.totalorder %s69, %s71
    %p78 = scmp.eq.s32.totalorder %s24, 2
    %p79 = por %p77, %p78
    %p80 = scmp.ne.s32.totalorder %s71, %s72
    %p81 = scmp.eq.s32.totalorder %s24, 0
    %p82 = por %p80, %p81
    %p83 = scmp.ne.s32.totalorder %s71, %s72
    %p84 = scmp.eq.s32.totalorder %s25, 2
    %p85 = por %p83, %p84
    %p87 = scmp.ne.s32.totalorder %s72, %s86
    %p88 = scmp.eq.s32.totalorder %s25, 0
    %p89 = por %p87, %p88
    %s91 = sadd.s32 %s90, 1
    %p94 = scmp.eq.s32.totalorder %s19, 2
    %p95 = scmp.ne.s32.totalorder %s90, %s92
    %p96 = scmp.eq.s32.totalorder %s19, 0
    %p97 = por %p95, %p96
    %p98 = scmp.ne.s32.totalorder %s90, %s92
    %p99 = scmp.eq.s32.totalorder %s24, 2
    %p100 = por %p98, %p99
    %p101 = scmp.ne.s32.totalorder %s92, %s93
    %p102 = scmp.eq.s32.totalorder %s24, 0
    %p103 = por %p101, %p102
    %p104 = scmp.ne.s32.totalorder %s92, %s93
    %p105 = scmp.eq.s32.totalorder %s25, 2
    %p106 = por %p104, %p105
    %p108 = scmp.ne.s32.totalorder %s93, %s107
    %p109 = scmp.eq.s32.totalorder %s25, 0
    %p110 = por %p108, %p109
    %s112 = sadd.s32 %s111, 1
    %p115 = scmp.eq.s32.totalorder %s19, 2
    %p116 = scmp.ne.s32.totalorder %s111, %s113
    %p117 = scmp.eq.s32.totalorder %s19, 0
    %p118 = por %p116, %p117
    %p119 = scmp.ne.s32.totalorder %s111, %s113
    %p120 = scmp.eq.s32.totalorder %s24, 2
    %p121 = por %p119, %p120
    %p122 = scmp.ne.s32.totalorder %s113, %s114
    %p123 = scmp.eq.s32.totalorder %s24, 0
    %p124 = por %p122, %p123
    %p125 = scmp.ne.s32.totalorder %s113, %s114
    %p126 = scmp.eq.s32.totalorder %s25, 2
    %p127 = por %p125, %p126
    %p129 = scmp.ne.s32.totalorder %s114, %s128
    %p130 = scmp.eq.s32.totalorder %s25, 0
    %p131 = por %p129, %p130
    %s133 = sadd.s32 %s132, 1
    %p136 = scmp.eq.s32.totalorder %s19, 2
    %p137 = scmp.ne.s32.totalorder %s132, %s134
    %p138 = scmp.eq.s32.totalorder %s19, 0
    %p139 = por %p137, %p138
    %p140 = scmp.ne.s32.totalorder %s132, %s134
    %p141 = scmp.eq.s32.totalorder %s24, 2
    %p142 = por %p140, %p141
    %p143 = scmp.ne.s32.totalorder %s134, %s135
    %p144 = scmp.eq.s32.totalorder %s24, 0
    %p145 = por %p143, %p144
    %p146 = scmp.ne.s32.totalorder %s134, %s135
    %p147 = scmp.eq.s32.totalorder %s25, 2
    %p148 = por %p146, %p147
    %p150 = scmp.ne.s32.totalorder %s135, %s149
    %p151 = scmp.eq.s32.totalorder %s25, 0
    %p152 = por %p150, %p151
    %s154 = sadd.s32 %s153, 1
    %p157 = scmp.eq.s32.totalorder %s19, 2
    %p158 = scmp.ne.s32.totalorder %s153, %s155
    %p159 = scmp.eq.s32.totalorder %s19, 0
    %p160 = por %p158, %p159
    %p161 = scmp.ne.s32.totalorder %s153, %s155
    %p162 = scmp.eq.s32.totalorder %s24, 2
    %p163 = por %p161, %p162
    %p164 = scmp.ne.s32.totalorder %s155, %s156
    %p165 = scmp.eq.s32.totalorder %s24, 0
    %p166 = por %p164, %p165
    %p167 = scmp.ne.s32.totalorder %s155, %s156
    %p168 = scmp.eq.s32.totalorder %s25, 2
    %p169 = por %p167, %p168
    %p171 = scmp.ne.s32.totalorder %s156, %s170
    %p172 = scmp.eq.s32.totalorder %s25, 0
    %p173 = por %p171, %p172
    %s175 = sadd.s32 %s174, 1
    %p178 = scmp.eq.s32.totalorder %s19, 2
    %p179 = scmp.ne.s32.totalorder %s174, %s176
    %p180 = scmp.eq.s32.totalorder %s19, 0
    %p181 = por %p179, %p180
    %p182 = scmp.ne.s32.totalorder %s174, %s176
    %p183 = scmp.eq.s32.totalorder %s24, 2
    %p184 = por %p182, %p183
    %p185 = scmp.ne.s32.totalorder %s176, %s177
    %p186 = scmp.eq.s32.totalorder %s24, 0
    %p187 = por %p185, %p186
    %p188 = scmp.ne.s32.totalorder %s176, %s177
    %p189 = scmp.eq.s32.totalorder %s25, 2
    %p190 = por %p188, %p189
    %p192 = scmp.ne.s32.totalorder %s177, %s191
    %p193 = scmp.eq.s32.totalorder %s25, 0
    %p194 = por %p192, %p193
    %s196 = sadd.s32 %s195, 1
    %p199 = scmp.eq.s32.totalorder %s19, 2
    %p200 = scmp.ne.s32.totalorder %s195, %s197
    %p201 = scmp.eq.s32.totalorder %s19, 0
    %p202 = por %p200, %p201
    %p203 = scmp.ne.s32.totalorder %s195, %s197
    %p204 = scmp.eq.s32.totalorder %s24, 2
    %p205 = por %p203, %p204
    %p206 = scmp.ne.s32.totalorder %s197, %s198
    %p207 = scmp.eq.s32.totalorder %s24, 0
    %p208 = por %p206, %p207
    %p209 = scmp.ne.s32.totalorder %s197, %s198
    %p210 = scmp.eq.s32.totalorder %s25, 2
    %p211 = por %p209, %p210
    %p213 = scmp.ne.s32.totalorder %s198, %s212
    %p214 = scmp.eq.s32.totalorder %s25, 0
    %p215 = por %p213, %p214
    %s217 = sadd.s32 %s216, 1
    %p220 = scmp.eq.s32.totalorder %s19, 2
    %p221 = scmp.ne.s32.totalorder %s216, %s218
    %p222 = scmp.eq.s32.totalorder %s19, 0
    %p223 = por %p221, %p222
    %p224 = scmp.ne.s32.totalorder %s216, %s218
    %p225 = scmp.eq.s32.totalorder %s24, 2
    %p226 = por %p224, %p225
    %p227 = scmp.ne.s32.totalorder %s218, %s219
    %p228 = scmp.eq.s32.totalorder %s24, 0
    %p229 = por %p227, %p228
    %p230 = scmp.ne.s32.totalorder %s218, %s219
    %p231 = scmp.eq.s32.totalorder %s25, 2
    %p232 = por %p230, %p231
    %p234 = scmp.ne.s32.totalorder %s219, %s233
    %p235 = scmp.eq.s32.totalorder %s25, 0
    %p236 = por %p234, %p235
    %s238 = sadd.s32 %s237, 1
    %p241 = scmp.eq.s32.totalorder %s19, 2
    %p242 = scmp.ne.s32.totalorder %s237, %s239
    %p243 = scmp.eq.s32.totalorder %s19, 0
    %p244 = por %p242, %p243
    %p245 = scmp.ne.s32.totalorder %s237, %s239
    %p246 = scmp.eq.s32.totalorder %s24, 2
    %p247 = por %p245, %p246
    %p248 = scmp.ne.s32.totalorder %s239, %s240
    %p249 = scmp.eq.s32.totalorder %s24, 0
    %p250 = por %p248, %p249
    %p251 = scmp.ne.s32.totalorder %s239, %s240
    %p252 = scmp.eq.s32.totalorder %s25, 2
    %p253 = por %p251, %p252
    %p255 = scmp.ne.s32.totalorder %s240, %s254
    %p256 = scmp.eq.s32.totalorder %s25, 0
    %p257 = por %p255, %p256
    %s259 = sadd.s32 %s258, 1
    %p262 = scmp.eq.s32.totalorder %s19, 2
    %p263 = scmp.ne.s32.totalorder %s258, %s260
    %p264 = scmp.eq.s32.totalorder %s19, 0
    %p265 = por %p263, %p264
    %p266 = scmp.ne.s32.totalorder %s258, %s260
    %p267 = scmp.eq.s32.totalorder %s24, 2
    %p268 = por %p266, %p267
    %p269 = scmp.ne.s32.totalorder %s260, %s261
    %p270 = scmp.eq.s32.totalorder %s24, 0
    %p271 = por %p269, %p270
    %p272 = scmp.ne.s32.totalorder %s260, %s261
    %p273 = scmp.eq.s32.totalorder %s25, 2
    %p274 = por %p272, %p273
    %p276 = scmp.ne.s32.totalorder %s261, %s275
    %p277 = scmp.eq.s32.totalorder %s25, 0
    %p278 = por %p276, %p277
    %p279 = scmp.le.s32.totalorder 1, %s19
    %p280 = scmp.lt.s32.totalorder %s19, 4
    %p281 = pnand %p279, %p280
    %p282 = pneg %p281
    // Predicated region
    $region9: #{mpnn3_forward.3} parent=5 // pred_check
      _
    $region10: #{mpnn3_forward.3} parent=5 // pred_check_branch
      %284 = sbr.rel (%p281) target = $region12
    $region11: #{mpnn3_forward.3} parent=5 // pred_region
      %s285 = ssub.s32 %s19, 1
      // Predicated region
      $region13: #{mpnn3_forward.3} parent=11 // pred_check
        %p286 = pneg %p40
      $region14: #{mpnn3_forward.3} parent=11 // pred_check_branch
        %288 = sbr.rel (%p286) target = $region16
      $region15: #{mpnn3_forward.3} parent=11 // pred_region
        _
      $region16: #{mpnn3_forward.3} parent=11 // pred_fallthru
        _
      // Predicated region
      $region17: #{mpnn3_forward.3} parent=11 // pred_check
        %p289 = pneg %p61
      $region18: #{mpnn3_forward.3} parent=11 // pred_check_branch
        %291 = sbr.rel (%p289) target = $region20
      $region19: #{mpnn3_forward.3} parent=11 // pred_region
        _
      $region20: #{mpnn3_forward.3} parent=11 // pred_fallthru
        _
      // Predicated region
      $region21: #{mpnn3_forward.3} parent=11 // pred_check
        %p292 = pneg %p82
      $region22: #{mpnn3_forward.3} parent=11 // pred_check_branch
        %294 = sbr.rel (%p292) target = $region24
      $region23: #{mpnn3_forward.3} parent=11 // pred_region
        _
      $region24: #{mpnn3_forward.3} parent=11 // pred_fallthru
        _
      // Predicated region
      $region25: #{mpnn3_forward.3} parent=11 // pred_check
        %p295 = pneg %p103
      $region26: #{mpnn3_forward.3} parent=11 // pred_check_branch
        %297 = sbr.rel (%p295) target = $region28
      $region27: #{mpnn3_forward.3} parent=11 // pred_region
        _
      $region28: #{mpnn3_forward.3} parent=11 // pred_fallthru
        _
      // Predicated region
      $region29: #{mpnn3_forward.3} parent=11 // pred_check
        %p298 = pneg %p124
      $region30: #{mpnn3_forward.3} parent=11 // pred_check_branch
        %300 = sbr.rel (%p298) target = $region32
      $region31: #{mpnn3_forward.3} parent=11 // pred_region
        _
      $region32: #{mpnn3_forward.3} parent=11 // pred_fallthru
        _
      // Predicated region
      $region33: #{mpnn3_forward.3} parent=11 // pred_check
        %p301 = pneg %p145
      $region34: #{mpnn3_forward.3} parent=11 // pred_check_branch
        %303 = sbr.rel (%p301) target = $region36
      $region35: #{mpnn3_forward.3} parent=11 // pred_region
        _
      $region36: #{mpnn3_forward.3} parent=11 // pred_fallthru
        _
      // Predicated region
      $region37: #{mpnn3_forward.3} parent=11 // pred_check
        %p304 = pneg %p166
      $region38: #{mpnn3_forward.3} parent=11 // pred_check_branch
        %306 = sbr.rel (%p304) target = $region40
      $region39: #{mpnn3_forward.3} parent=11 // pred_region
        _
      $region40: #{mpnn3_forward.3} parent=11 // pred_fallthru
        _
      // Predicated region
      $region41: #{mpnn3_forward.3} parent=11 // pred_check
        %p307 = pneg %p187
      $region42: #{mpnn3_forward.3} parent=11 // pred_check_branch
        %309 = sbr.rel (%p307) target = $region44
      $region43: #{mpnn3_forward.3} parent=11 // pred_region
        _
      $region44: #{mpnn3_forward.3} parent=11 // pred_fallthru
        _
      // Predicated region
      $region45: #{mpnn3_forward.3} parent=11 // pred_check
        %p310 = pneg %p208
      $region46: #{mpnn3_forward.3} parent=11 // pred_check_branch
        %312 = sbr.rel (%p310) target = $region48
      $region47: #{mpnn3_forward.3} parent=11 // pred_region
        _
      $region48: #{mpnn3_forward.3} parent=11 // pred_fallthru
        _
      // Predicated region
      $region49: #{mpnn3_forward.3} parent=11 // pred_check
        %p313 = pneg %p229
      $region50: #{mpnn3_forward.3} parent=11 // pred_check_branch
        %315 = sbr.rel (%p313) target = $region52
      $region51: #{mpnn3_forward.3} parent=11 // pred_region
        _
      $region52: #{mpnn3_forward.3} parent=11 // pred_fallthru
        _
      // Predicated region
      $region53: #{mpnn3_forward.3} parent=11 // pred_check
        %p316 = pneg %p250
      $region54: #{mpnn3_forward.3} parent=11 // pred_check_branch
        %318 = sbr.rel (%p316) target = $region56
      $region55: #{mpnn3_forward.3} parent=11 // pred_region
        _
      $region56: #{mpnn3_forward.3} parent=11 // pred_fallthru
        _
    $region12: #{mpnn3_forward.3} parent=5 // pred_fallthru
      _
    %p319 = scmp.lt.s32.totalorder %s19, 3
    // Predicated region
    $region57: #{mpnn3_forward.3} parent=5 // pred_check
      %p320 = pneg %p319
    $region58: #{mpnn3_forward.3} parent=5 // pred_check_branch
      %322 = sbr.rel (%p320) target = $region60
    $region59: #{mpnn3_forward.3} parent=5 // pred_region
      _
    $region60: #{mpnn3_forward.3} parent=5 // pred_fallthru
      _
    %p323 = scmp.le.s32.totalorder 1, %s19
    %p324 = scmp.lt.s32.totalorder %s19, 4
    %p325 = pnand %p323, %p324
    %p326 = pneg %p325
    // Predicated region
    $region61: #{mpnn3_forward.3} parent=5 // pred_check
      _
    $region62: #{mpnn3_forward.3} parent=5 // pred_check_branch
      %328 = sbr.rel (%p325) target = $region64
    $region63: #{mpnn3_forward.3} parent=5 // pred_region
      %s329 = ssub.s32 %s19, 1
      %p330 = pneg %p40
      %p331 = pneg %p37
      %p332 = pneg %p61
      %p333 = pneg %p58
      %p334 = pneg %p82
      %p335 = pneg %p79
      %p336 = pneg %p103
      %p337 = pneg %p100
      %p338 = pneg %p124
      %p339 = pneg %p121
      %p340 = pneg %p145
      %p341 = pneg %p142
      %p342 = pneg %p166
      %p343 = pneg %p163
      %p344 = pneg %p187
      %p345 = pneg %p184
      %p346 = pneg %p208
      %p347 = pneg %p205
      %p348 = pneg %p229
      %p349 = pneg %p226
      %p350 = pneg %p250
      %p351 = pneg %p247
      %p352 = pneg %p271
      %p353 = pneg %p268
      %p354 = scmp.eq.s32.totalorder %s24, 0
      // Predicated region
      $region65: #{mpnn3_forward.3} parent=63 // pred_check
        %p355 = pneg %p354
      $region66: #{mpnn3_forward.3} parent=63 // pred_check_branch
        %357 = sbr.rel (%p355) target = $region68
      $region67: #{mpnn3_forward.3} parent=63 // pred_region
        %vm358 = vcmask 517120
        %359 = vst.msk [vmem:[#allocation2] sm:$0x3] %vm358, 0.0
        %vm360 = vcmask 254976
        %361 = vst.msk [vmem:[#allocation3] sm:$0x3] %vm360, 0.0
        %362 = vst.msk [vmem:[#allocation4] sm:$0x3] %vm360, 0.0
      $region68: #{mpnn3_forward.3} parent=63 // pred_fallthru
        _
      %v363 = vld [vmem:[#allocation2] sm:$0x3]
      %v364 = vld [vmem:[#allocation3] sm:$0x3]
      %v365 = vld [vmem:[#allocation4] sm:$0x3]
      %v366 = vld [vmem:[%s3] sm:$0xff]
      %v367 = vld [vmem:[%s3 + $0x8] sm:$0xff]
      %v368 = vld [vmem:[%s3 + $0x10] sm:$0xff]
      %v369 = vld [vmem:[%s3 + $0x18] sm:$0xff]
      %v370 = vld [vmem:[%s3 + $0x20] sm:$0xff]
      %v371 = vld [vmem:[%s3 + $0x28] sm:$0xff]
      %v372 = vld [vmem:[%s3 + $0x30] sm:$0xff]
      %v373 = vld [vmem:[%s3 + $0x38] sm:$0xff]
      %v374 = vld [vmem:[%s5] sm:$0x1]
      %v376 = vlaneseq
      %v377 = vshrl.u32 %v376, 7
      %v378 = vsub.s32 0, %v377
      %v379 = vrot.slane %v374, %v378
      %vm381 = vcmask 523264
      %v383 = vsel %vm381, %v363, 0
      %385 = vmatprep.subr.mxu0 0.0
      %386 = vmatpush1.msra.mxu0 0.0
      %387 = vmatprep.subr.mxu0 0.0
      %388 = vmatpush1.msra.mxu0 0.0
      %389 = vmatprep.subr.mxu0 0.0
      %390 = vmatpush1.msra.mxu0 0.0
      %391 = vmatprep.subr.mxu0 0.0
      %392 = vmatpush1.msra.mxu0 0.0
      %393 = vmatprep.subr.mxu0 0.0
      %394 = vmatpush1.msra.mxu0 0.0
      %395 = vmatprep.subr.mxu0 0.0
      %396 = vmatpush1.msra.mxu0 0.0
      %397 = vmatprep.subr.mxu0 0.0
      %398 = vmatpush1.msra.mxu0 0.0
      %399 = vmatprep.subr.mxu0 0.0
      %400 = vmatpush1.msra.mxu0 0.0
      %401 = vmatprep.subr.mxu0 0.0
      %402 = vmatpush1.msra.mxu0 %v373
      %403 = vmatprep.subr.mxu0 0.0
      %404 = vmatpush1.msra.mxu0 %v372
      %405 = vmatprep.subr.mxu0 0.0
      %406 = vmatpush1.msra.mxu0 %v371
      %407 = vmatprep.subr.mxu0 0.0
      %408 = vmatpush1.msra.mxu0 %v370
      %409 = vmatprep.subr.mxu0 0.0
      %410 = vmatpush1.msra.mxu0 %v369
      %411 = vmatprep.subr.mxu0 0.0
      %412 = vmatpush1.msra.mxu0 %v368
      %413 = vmatprep.subr.mxu0 0.0
      %414 = vmatpush1.msra.mxu0 %v367
      %415 = vmatprep.subr.mxu0 0.0
      %416 = vmatpush1.msra.mxu0 %v366
      %417 = vmatprep.subr.mxu0 0.0
      %418 = vmatpush2.msra.mxu0 0.0
      %419 = vmatprep.subr.mxu0 0.0
      %420 = vmatpush2.msra.mxu0 0.0
      %421 = vmatprep.subr.mxu0 0.0
      %422 = vmatpush2.msra.mxu0 0.0
      %423 = vmatprep.subr.mxu0 0.0
      %424 = vmatpush2.msra.mxu0 0.0
      %425 = vmatprep.subr.mxu0 0.0
      %426 = vmatpush2.msra.mxu0 0.0
      %427 = vmatprep.subr.mxu0 0.0
      %428 = vmatpush2.msra.mxu0 0.0
      %429 = vmatprep.subr.mxu0 0.0
      %430 = vmatpush2.msra.mxu0 0.0
      %431 = vmatprep.subr.mxu0 0.0
      %432 = vmatpush2.msra.mxu0 0.0
      %433 = vmatprep.subr.mxu0 0.0
      %434 = vmatpush2.msra.mxu0 0.0
      %435 = vmatprep.subr.mxu0 0.0
      %436 = vmatpush2.msra.mxu0 0.0
      %437 = vmatprep.subr.mxu0 0.0
      %438 = vmatpush2.msra.mxu0 0.0
      %439 = vmatprep.subr.mxu0 0.0
      %440 = vmatpush2.msra.mxu0 0.0
      %441 = vmatprep.subr.mxu0 0.0
      %442 = vmatpush2.msra.mxu0 0.0
      %443 = vmatprep.subr.mxu0 0.0
      %444 = vmatpush2.msra.mxu0 0.0
      %445 = vmatprep.subr.mxu0 0.0
      %446 = vmatpush2.msra.mxu0 0.0
      %447 = vmatprep.subr.mxu0 0.0
      %448 = vmatpush2.msra.mxu0 0.0
      %449 = vmatprep.mubr.f32.mxu0 0.0
      %450 = vmatmul.mubr.f32.gmra.mxu0 %v383
      %v451 = vpop.f32.mrf.mxu0
      %v452 = vadd.f32 %v379, %v451
      %v453 = vpop.f32.mrf.mxu0
      %454 = vdwg.mxu0
      %v455 = vld [vmem:[%s4] sm:$0xff]
      %v456 = vld [vmem:[%s4 + $0x8] sm:$0xff]
      %v457 = vld [vmem:[%s4 + $0x10] sm:$0xff]
      %v458 = vld [vmem:[%s4 + $0x18] sm:$0xff]
      %vm459 = vcmask 261120
      %v461 = vsel %vm459, %v364, 0
      %463 = vmatprep.subr.mxu0 0.0
      %464 = vmatpush1.msra.mxu0 0.0
      %465 = vmatprep.subr.mxu0 0.0
      %466 = vmatpush1.msra.mxu0 0.0
      %467 = vmatprep.subr.mxu0 0.0
      %468 = vmatpush1.msra.mxu0 0.0
      %469 = vmatprep.subr.mxu0 0.0
      %470 = vmatpush1.msra.mxu0 0.0
      %471 = vmatprep.subr.mxu0 0.0
      %472 = vmatpush1.msra.mxu0 0.0
      %473 = vmatprep.subr.mxu0 0.0
      %474 = vmatpush1.msra.mxu0 0.0
      %475 = vmatprep.subr.mxu0 0.0
      %476 = vmatpush1.msra.mxu0 0.0
      %477 = vmatprep.subr.mxu0 0.0
      %478 = vmatpush1.msra.mxu0 0.0
      %479 = vmatprep.subr.mxu0 0.0
      %480 = vmatpush1.msra.mxu0 0.0
      %481 = vmatprep.subr.mxu0 0.0
      %482 = vmatpush1.msra.mxu0 0.0
      %483 = vmatprep.subr.mxu0 0.0
      %484 = vmatpush1.msra.mxu0 0.0
      %485 = vmatprep.subr.mxu0 0.0
      %486 = vmatpush1.msra.mxu0 0.0
      %487 = vmatprep.subr.mxu0 0.0
      %488 = vmatpush1.msra.mxu0 %v458
      %489 = vmatprep.subr.mxu0 0.0
      %490 = vmatpush1.msra.mxu0 %v457
      %491 = vmatprep.subr.mxu0 0.0
      %492 = vmatpush1.msra.mxu0 %v456
      %493 = vmatprep.subr.mxu0 0.0
      %494 = vmatpush1.msra.mxu0 %v455
      %495 = vmatprep.subr.mxu0 0.0
      %496 = vmatpush2.msra.mxu0 0.0
      %497 = vmatprep.subr.mxu0 0.0
      %498 = vmatpush2.msra.mxu0 0.0
      %499 = vmatprep.subr.mxu0 0.0
      %500 = vmatpush2.msra.mxu0 0.0
      %501 = vmatprep.subr.mxu0 0.0
      %502 = vmatpush2.msra.mxu0 0.0
      %503 = vmatprep.subr.mxu0 0.0
      %504 = vmatpush2.msra.mxu0 0.0
      %505 = vmatprep.subr.mxu0 0.0
      %506 = vmatpush2.msra.mxu0 0.0
      %507 = vmatprep.subr.mxu0 0.0
      %508 = vmatpush2.msra.mxu0 0.0
      %509 = vmatprep.subr.mxu0 0.0
      %510 = vmatpush2.msra.mxu0 0.0
      %511 = vmatprep.subr.mxu0 0.0
      %512 = vmatpush2.msra.mxu0 0.0
      %513 = vmatprep.subr.mxu0 0.0
      %514 = vmatpush2.msra.mxu0 0.0
      %515 = vmatprep.subr.mxu0 0.0
      %516 = vmatpush2.msra.mxu0 0.0
      %517 = vmatprep.subr.mxu0 0.0
      %518 = vmatpush2.msra.mxu0 0.0
      %519 = vmatprep.subr.mxu0 0.0
      %520 = vmatpush2.msra.mxu0 0.0
      %521 = vmatprep.subr.mxu0 0.0
      %522 = vmatpush2.msra.mxu0 0.0
      %523 = vmatprep.subr.mxu0 0.0
      %524 = vmatpush2.msra.mxu0 0.0
      %525 = vmatprep.subr.mxu0 0.0
      %526 = vmatpush2.msra.mxu0 0.0
      %527 = vmatprep.mubr.f32.mxu0 0.0
      %528 = vmatmul.mubr.f32.gmra.mxu0 %v461
      %v529 = vpop.f32.mrf.mxu0
      %v530 = vadd.f32 0.0, %v529
      %v531 = vpop.f32.mrf.mxu0
      %532 = vdwg.mxu0
      %v533 = vadd.f32 %v452, %v530
      %v534 = vld [vmem:[%s6] sm:$0x1]
      %v536 = vlaneseq
      %v537 = vshrl.u32 %v536, 7
      %v538 = vsub.s32 0, %v537
      %v539 = vrot.slane %v534, %v538
      %v541 = vadd.f32 %v533, %v539
      %v542 = vxor.u32 %v541, 2147483648
      %v543 = vmul.f32 %v542, 1.442695
      %v544 = vpow.pop %v543
      %v545 = vadd.f32 %v544, 1.0
      %v546 = vrcp.pop %v545
      %v547 = vmul.f32 1.0, %v546
      %v548 = vtanh.pop %v541
      %550 = vrot.lane.b32.xlu0 %v365, 32
      %v551 = vpop.permute.xlu0 %550
      %v553 = vmul.f32 %v547, %v551
      %555 = vrot.lane.b32.xlu0 %v548, 64
      %v556 = vpop.permute.xlu0 %555
      %v558 = vmul.f32 %v547, %v556
      %560 = vrot.lane.b32.xlu0 %v558, 32
      %v561 = vpop.permute.xlu0 %560
      %v563 = vadd.f32 %v553, %v561
      %v564 = vtanh.pop %v563
      %566 = vrot.lane.b32.xlu0 %v564, 64
      %v567 = vpop.permute.xlu0 %566
      %v569 = vmul.f32 %v547, %v567
      %v570 = vld [vmem:[%s0] sm:$0xff]
      %v571 = vld [vmem:[%s1] sm:$0xff]
      %573 = vrot.lane.b32.xlu0 %v569, 32
      %v574 = vpop.permute.xlu0 %573
      %vm575 = vcmask 15360
      %v577 = vsel %vm575, %v571, 0
      %vm579 = vcmask 1041408
      %v580 = vsel %vm579, %v574, 0
      %582 = vmatprep.subr.mxu0 0.0
      %583 = vmatpush1.msra.mxu0 0.0
      %584 = vmatprep.subr.mxu0 0.0
      %585 = vmatpush1.msra.mxu0 0.0
      %586 = vmatprep.subr.mxu0 0.0
      %587 = vmatpush1.msra.mxu0 0.0
      %588 = vmatprep.subr.mxu0 0.0
      %589 = vmatpush1.msra.mxu0 0.0
      %590 = vmatprep.subr.mxu0 0.0
      %591 = vmatpush1.msra.mxu0 0.0
      %592 = vmatprep.subr.mxu0 0.0
      %593 = vmatpush1.msra.mxu0 0.0
      %594 = vmatprep.subr.mxu0 0.0
      %595 = vmatpush1.msra.mxu0 0.0
      %596 = vmatprep.subr.mxu0 0.0
      %597 = vmatpush1.msra.mxu0 0.0
      %598 = vmatprep.subr.mxu0 0.0
      %599 = vmatpush1.msra.mxu0 0.0
      %600 = vmatprep.subr.mxu0 0.0
      %601 = vmatpush1.msra.mxu0 0.0
      %602 = vmatprep.subr.mxu0 0.0
      %603 = vmatpush1.msra.mxu0 0.0
      %604 = vmatprep.subr.mxu0 0.0
      %605 = vmatpush1.msra.mxu0 0.0
      %606 = vmatprep.subr.mxu0 0.0
      %607 = vmatpush1.msra.mxu0 0.0
      %608 = vmatprep.subr.mxu0 0.0
      %609 = vmatpush1.msra.mxu0 0.0
      %610 = vmatprep.subr.mxu0 0.0
      %611 = vmatpush1.msra.mxu0 0.0
      %612 = vmatprep.subr.mxu0 0.0
      %613 = vmatpush1.msra.mxu0 %v580
      %614 = vmatprep.subr.mxu0 0.0
      %615 = vmatpush2.msra.mxu0 0.0
      %616 = vmatprep.subr.mxu0 0.0
      %617 = vmatpush2.msra.mxu0 0.0
      %618 = vmatprep.subr.mxu0 0.0
      %619 = vmatpush2.msra.mxu0 0.0
      %620 = vmatprep.subr.mxu0 0.0
      %621 = vmatpush2.msra.mxu0 0.0
      %622 = vmatprep.subr.mxu0 0.0
      %623 = vmatpush2.msra.mxu0 0.0
      %624 = vmatprep.subr.mxu0 0.0
      %625 = vmatpush2.msra.mxu0 0.0
      %626 = vmatprep.subr.mxu0 0.0
      %627 = vmatpush2.msra.mxu0 0.0
      %628 = vmatprep.subr.mxu0 0.0
      %629 = vmatpush2.msra.mxu0 0.0
      %630 = vmatprep.subr.mxu0 0.0
      %631 = vmatpush2.msra.mxu0 0.0
      %632 = vmatprep.subr.mxu0 0.0
      %633 = vmatpush2.msra.mxu0 0.0
      %634 = vmatprep.subr.mxu0 0.0
      %635 = vmatpush2.msra.mxu0 0.0
      %636 = vmatprep.subr.mxu0 0.0
      %637 = vmatpush2.msra.mxu0 0.0
      %638 = vmatprep.subr.mxu0 0.0
      %639 = vmatpush2.msra.mxu0 0.0
      %640 = vmatprep.subr.mxu0 0.0
      %641 = vmatpush2.msra.mxu0 0.0
      %642 = vmatprep.subr.mxu0 0.0
      %643 = vmatpush2.msra.mxu0 0.0
      %644 = vmatprep.subr.mxu0 0.0
      %645 = vmatpush2.msra.mxu0 0.0
      %646 = vmatprep.mubr.f32.mxu0 0.0
      %647 = vmatmul.mubr.f32.gmra.mxu0 %v577
      %v648 = vpop.f32.mrf.mxu0
      %v649 = vadd.f32 0.0, %v648
      %v650 = vpop.f32.mrf.mxu0
      %651 = vdwg.mxu0
      %v652 = vmul.f32 %v570, %v649
      %v653 = vsel %vm459, %v652, 0.0
      %654 = vadd.xlane.f32.xlu0 %v653
      %v655 = vpop.xlane.xlu0 %654
      %vm656 = vcmp.gt.f32.partialorder %v571, 0.5
      %v657 = vsel %vm656, %v655, -1e+30
      %v658 = vsel %vm575, %v657, -inf
      %v659 = vrot.slane %v658, 4
      %v660 = vmax.f32 %v658, %v659
      %v661 = vrot.slane %v660, 2
      %v662 = vmax.f32 %v660, %v661
      %v663 = vrot.slane %v662, 1
      %v664 = vmax.f32 %v662, %v663
      %v665 = vmul.f32 %v571, %v664
      %v666 = vsel %vm575, %v665, 0.0
      %667 = vadd.xlane.f32.xlu0 %v666
      %v668 = vpop.xlane.xlu0 %667
      %v669 = vsub.f32 %v655, %v668
      %v670 = vmul.f32 %v669, 1.442695
      %v671 = vpow.pop %v670
      %v672 = vmul.f32 %v571, %v671
      %v673 = vsel %vm575, %v672, 0.0
      %v674 = vrot.slane %v673, 4
      %v675 = vadd.f32 %v673, %v674
      %v676 = vrot.slane %v675, 2
      %v677 = vadd.f32 %v675, %v676
      %v678 = vrot.slane %v677, 1
      %v679 = vadd.f32 %v677, %v678
      %v680 = vmul.f32 %v571, %v679
      %v681 = vsel %vm575, %v680, 0.0
      %682 = vadd.xlane.f32.xlu0 %v681
      %v683 = vpop.xlane.xlu0 %682
      %v684 = vadd.f32 %v683, 1e-16
      %v685 = vrcp.pop %v684
      %v686 = vmul.f32 %v671, %v685
      %v687 = vld [vmem:[%s2] sm:$0x3]
      %v688 = vmul.f32 %v686, %v570
      %vm689 = vcmask 64512
      %v691 = vsel %vm689, %v687, 0
      %693 = vmatprep.subr.mxu0 0.0
      %694 = vmatpush1.msra.mxu0 0.0
      %695 = vmatprep.subr.mxu0 0.0
      %696 = vmatpush1.msra.mxu0 0.0
      %697 = vmatprep.subr.mxu0 0.0
      %698 = vmatpush1.msra.mxu0 0.0
      %699 = vmatprep.subr.mxu0 0.0
      %700 = vmatpush1.msra.mxu0 0.0
      %701 = vmatprep.subr.mxu0 0.0
      %702 = vmatpush1.msra.mxu0 0.0
      %703 = vmatprep.subr.mxu0 0.0
      %704 = vmatpush1.msra.mxu0 0.0
      %705 = vmatprep.subr.mxu0 0.0
      %706 = vmatpush1.msra.mxu0 0.0
      %707 = vmatprep.subr.mxu0 0.0
      %708 = vmatpush1.msra.mxu0 0.0
      %709 = vmatprep.subr.mxu0 0.0
      %710 = vmatpush1.msra.mxu0 0.0
      %711 = vmatprep.subr.mxu0 0.0
      %712 = vmatpush1.msra.mxu0 0.0
      %713 = vmatprep.subr.mxu0 0.0
      %714 = vmatpush1.msra.mxu0 0.0
      %715 = vmatprep.subr.mxu0 0.0
      %716 = vmatpush1.msra.mxu0 0.0
      %717 = vmatprep.subr.mxu0 0.0
      %718 = vmatpush1.msra.mxu0 0.0
      %719 = vmatprep.subr.mxu0 0.0
      %720 = vmatpush1.msra.mxu0 0.0
      %721 = vmatprep.subr.mxu0 0.0
      %722 = vmatpush1.msra.mxu0 0.0
      %723 = vmatprep.subr.mxu0 0.0
      %724 = vmatpush1.msra.mxu0 %v688
      %725 = vmatprep.subr.mxu0 0.0
      %726 = vmatpush2.msra.mxu0 0.0
      %727 = vmatprep.subr.mxu0 0.0
      %728 = vmatpush2.msra.mxu0 0.0
      %729 = vmatprep.subr.mxu0 0.0
      %730 = vmatpush2.msra.mxu0 0.0
      %731 = vmatprep.subr.mxu0 0.0
      %732 = vmatpush2.msra.mxu0 0.0
      %733 = vmatprep.subr.mxu0 0.0
      %734 = vmatpush2.msra.mxu0 0.0
      %735 = vmatprep.subr.mxu0 0.0
      %736 = vmatpush2.msra.mxu0 0.0
      %737 = vmatprep.subr.mxu0 0.0
      %738 = vmatpush2.msra.mxu0 0.0
      %739 = vmatprep.subr.mxu0 0.0
      %740 = vmatpush2.msra.mxu0 0.0
      %741 = vmatprep.subr.mxu0 0.0
      %742 = vmatpush2.msra.mxu0 0.0
      %743 = vmatprep.subr.mxu0 0.0
      %744 = vmatpush2.msra.mxu0 0.0
      %745 = vmatprep.subr.mxu0 0.0
      %746 = vmatpush2.msra.mxu0 0.0
      %747 = vmatprep.subr.mxu0 0.0
      %748 = vmatpush2.msra.mxu0 0.0
      %749 = vmatprep.subr.mxu0 0.0
      %750 = vmatpush2.msra.mxu0 0.0
      %751 = vmatprep.subr.mxu0 0.0
      %752 = vmatpush2.msra.mxu0 0.0
      %753 = vmatprep.subr.mxu0 0.0
      %754 = vmatpush2.msra.mxu0 0.0
      %755 = vmatprep.subr.mxu0 0.0
      %756 = vmatpush2.msra.mxu0 0.0
      %757 = vmatprep.mubr.f32.mxu0 0.0
      %758 = vmatmul.mubr.f32.gmra.mxu0 %v691
      %v759 = vpop.f32.mrf.mxu0
      %v760 = vadd.f32 0.0, %v759
      %v761 = vpop.f32.mrf.mxu0
      %762 = vdwg.mxu0
      %765 = vrot.lane.b32.xlu0 %v760, 32
      %v766 = vpop.permute.xlu0 %765
      %v768 = vsel %vm459, %v574, %v766
      %vm769 = vcmask 517120
      %770 = vst.msk [vmem:[#allocation2] sm:$0x3] %vm769, %v768
      %vm771 = vcmask 254976
      %772 = vst.msk [vmem:[#allocation3] sm:$0x3] %vm771, %v574
      %774 = vrot.lane.b32.xlu0 %v563, 96
      %v775 = vpop.permute.xlu0 %774
      %777 = vst.msk [vmem:[#allocation4] sm:$0x3] %vm771, %v775
      %p778 = scmp.eq.s32.totalorder %s24, 2
      // Predicated region
      $region69: #{mpnn3_forward.3} parent=63 // pred_check
        %p779 = pneg %p778
      $region70: #{mpnn3_forward.3} parent=63 // pred_check_branch
        %781 = sbr.rel (%p779) target = $region72
      $region71: #{mpnn3_forward.3} parent=63 // pred_region
        %v782 = vld [vmem:[%s7] sm:$0xff]
        %v783 = vld [vmem:[%s7 + $0x8] sm:$0xff]
        %v784 = vld [vmem:[%s7 + $0x10] sm:$0xff]
        %v785 = vld [vmem:[%s7 + $0x18] sm:$0xff]
        %v786 = vld [vmem:[%s7 + $0x20] sm:$0xff]
        %v787 = vld [vmem:[%s7 + $0x28] sm:$0xff]
        %v788 = vld [vmem:[%s7 + $0x30] sm:$0xff]
        %v789 = vld [vmem:[%s7 + $0x38] sm:$0xff]
        %v790 = vld [vmem:[%s8] sm:$0x1]
        %v792 = vlaneseq
        %v793 = vshrl.u32 %v792, 7
        %v794 = vsub.s32 0, %v793
        %v795 = vrot.slane %v790, %v794
        %v798 = vsel %vm381, %v768, 0
        %800 = vmatprep.subr.mxu0 0.0
        %801 = vmatpush1.msra.mxu0 0.0
        %802 = vmatprep.subr.mxu0 0.0
        %803 = vmatpush1.msra.mxu0 0.0
        %804 = vmatprep.subr.mxu0 0.0
        %805 = vmatpush1.msra.mxu0 0.0
        %806 = vmatprep.subr.mxu0 0.0
        %807 = vmatpush1.msra.mxu0 0.0
        %808 = vmatprep.subr.mxu0 0.0
        %809 = vmatpush1.msra.mxu0 0.0
        %810 = vmatprep.subr.mxu0 0.0
        %811 = vmatpush1.msra.mxu0 0.0
        %812 = vmatprep.subr.mxu0 0.0
        %813 = vmatpush1.msra.mxu0 0.0
        %814 = vmatprep.subr.mxu0 0.0
        %815 = vmatpush1.msra.mxu0 0.0
        %816 = vmatprep.subr.mxu0 0.0
        %817 = vmatpush1.msra.mxu0 %v789
        %818 = vmatprep.subr.mxu0 0.0
        %819 = vmatpush1.msra.mxu0 %v788
        %820 = vmatprep.subr.mxu0 0.0
        %821 = vmatpush1.msra.mxu0 %v787
        %822 = vmatprep.subr.mxu0 0.0
        %823 = vmatpush1.msra.mxu0 %v786
        %824 = vmatprep.subr.mxu0 0.0
        %825 = vmatpush1.msra.mxu0 %v785
        %826 = vmatprep.subr.mxu0 0.0
        %827 = vmatpush1.msra.mxu0 %v784
        %828 = vmatprep.subr.mxu0 0.0
        %829 = vmatpush1.msra.mxu0 %v783
        %830 = vmatprep.subr.mxu0 0.0
        %831 = vmatpush1.msra.mxu0 %v782
        %832 = vmatprep.subr.mxu0 0.0
        %833 = vmatpush2.msra.mxu0 0.0
        %834 = vmatprep.subr.mxu0 0.0
        %835 = vmatpush2.msra.mxu0 0.0
        %836 = vmatprep.subr.mxu0 0.0
        %837 = vmatpush2.msra.mxu0 0.0
        %838 = vmatprep.subr.mxu0 0.0
        %839 = vmatpush2.msra.mxu0 0.0
        %840 = vmatprep.subr.mxu0 0.0
        %841 = vmatpush2.msra.mxu0 0.0
        %842 = vmatprep.subr.mxu0 0.0
        %843 = vmatpush2.msra.mxu0 0.0
        %844 = vmatprep.subr.mxu0 0.0
        %845 = vmatpush2.msra.mxu0 0.0
        %846 = vmatprep.subr.mxu0 0.0
        %847 = vmatpush2.msra.mxu0 0.0
        %848 = vmatprep.subr.mxu0 0.0
        %849 = vmatpush2.msra.mxu0 0.0
        %850 = vmatprep.subr.mxu0 0.0
        %851 = vmatpush2.msra.mxu0 0.0
        %852 = vmatprep.subr.mxu0 0.0
        %853 = vmatpush2.msra.mxu0 0.0
        %854 = vmatprep.subr.mxu0 0.0
        %855 = vmatpush2.msra.mxu0 0.0
        %856 = vmatprep.subr.mxu0 0.0
        %857 = vmatpush2.msra.mxu0 0.0
        %858 = vmatprep.subr.mxu0 0.0
        %859 = vmatpush2.msra.mxu0 0.0
        %860 = vmatprep.subr.mxu0 0.0
        %861 = vmatpush2.msra.mxu0 0.0
        %862 = vmatprep.subr.mxu0 0.0
        %863 = vmatpush2.msra.mxu0 0.0
        %864 = vmatprep.mubr.f32.mxu0 0.0
        %865 = vmatmul.mubr.f32.gmra.mxu0 %v798
        %v866 = vpop.f32.mrf.mxu0
        %v867 = vadd.f32 %v795, %v866
        %v868 = vpop.f32.mrf.mxu0
        %869 = vdwg.mxu0
        %v870 = vmax.f32 %v867, 0.0
        %v871 = vld [vmem:[%s9] sm:$0xff]
        %v872 = vld [vmem:[%s9 + $0x8] sm:$0xff]
        %v873 = vld [vmem:[%s9 + $0x10] sm:$0xff]
        %v874 = vld [vmem:[%s9 + $0x18] sm:$0xff]
        %v875 = vld [vmem:[#allocation5] sm:$0x1]
        %v877 = vlaneseq
        %v878 = vshrl.u32 %v877, 7
        %v879 = vsub.s32 0, %v878
        %v880 = vrot.slane %v875, %v879
        %v883 = vsel %vm459, %v870, 0
        %885 = vmatprep.subr.mxu0 0.0
        %886 = vmatpush1.msra.mxu0 0.0
        %887 = vmatprep.subr.mxu0 0.0
        %888 = vmatpush1.msra.mxu0 0.0
        %889 = vmatprep.subr.mxu0 0.0
        %890 = vmatpush1.msra.mxu0 0.0
        %891 = vmatprep.subr.mxu0 0.0
        %892 = vmatpush1.msra.mxu0 0.0
        %893 = vmatprep.subr.mxu0 0.0
        %894 = vmatpush1.msra.mxu0 0.0
        %895 = vmatprep.subr.mxu0 0.0
        %896 = vmatpush1.msra.mxu0 0.0
        %897 = vmatprep.subr.mxu0 0.0
        %898 = vmatpush1.msra.mxu0 0.0
        %899 = vmatprep.subr.mxu0 0.0
        %900 = vmatpush1.msra.mxu0 0.0
        %901 = vmatprep.subr.mxu0 0.0
        %902 = vmatpush1.msra.mxu0 0.0
        %903 = vmatprep.subr.mxu0 0.0
        %904 = vmatpush1.msra.mxu0 0.0
        %905 = vmatprep.subr.mxu0 0.0
        %906 = vmatpush1.msra.mxu0 0.0
        %907 = vmatprep.subr.mxu0 0.0
        %908 = vmatpush1.msra.mxu0 0.0
        %909 = vmatprep.subr.mxu0 0.0
        %910 = vmatpush1.msra.mxu0 %v874
        %911 = vmatprep.subr.mxu0 0.0
        %912 = vmatpush1.msra.mxu0 %v873
        %913 = vmatprep.subr.mxu0 0.0
        %914 = vmatpush1.msra.mxu0 %v872
        %915 = vmatprep.subr.mxu0 0.0
        %916 = vmatpush1.msra.mxu0 %v871
        %917 = vmatprep.subr.mxu0 0.0
        %918 = vmatpush2.msra.mxu0 0.0
        %919 = vmatprep.subr.mxu0 0.0
        %920 = vmatpush2.msra.mxu0 0.0
        %921 = vmatprep.subr.mxu0 0.0
        %922 = vmatpush2.msra.mxu0 0.0
        %923 = vmatprep.subr.mxu0 0.0
        %924 = vmatpush2.msra.mxu0 0.0
        %925 = vmatprep.subr.mxu0 0.0
        %926 = vmatpush2.msra.mxu0 0.0
        %927 = vmatprep.subr.mxu0 0.0
        %928 = vmatpush2.msra.mxu0 0.0
        %929 = vmatprep.subr.mxu0 0.0
        %930 = vmatpush2.msra.mxu0 0.0
        %931 = vmatprep.subr.mxu0 0.0
        %932 = vmatpush2.msra.mxu0 0.0
        %933 = vmatprep.subr.mxu0 0.0
        %934 = vmatpush2.msra.mxu0 0.0
        %935 = vmatprep.subr.mxu0 0.0
        %936 = vmatpush2.msra.mxu0 0.0
        %937 = vmatprep.subr.mxu0 0.0
        %938 = vmatpush2.msra.mxu0 0.0
        %939 = vmatprep.subr.mxu0 0.0
        %940 = vmatpush2.msra.mxu0 0.0
        %941 = vmatprep.subr.mxu0 0.0
        %942 = vmatpush2.msra.mxu0 0.0
        %943 = vmatprep.subr.mxu0 0.0
        %944 = vmatpush2.msra.mxu0 0.0
        %945 = vmatprep.subr.mxu0 0.0
        %946 = vmatpush2.msra.mxu0 0.0
        %947 = vmatprep.subr.mxu0 0.0
        %948 = vmatpush2.msra.mxu0 0.0
        %949 = vmatprep.mubr.f32.mxu0 0.0
        %950 = vmatmul.mubr.f32.gmra.mxu0 %v883
        %v951 = vpop.f32.mrf.mxu0
        %v952 = vadd.f32 %v880, %v951
        %v953 = vpop.f32.mrf.mxu0
        %954 = vdwg.mxu0
        %vm955 = vcmask 1024
        %956 = vst.msk [vmem:[%s11] sm:$0x3] %vm955, %v952
      $region72: #{mpnn3_forward.3} parent=63 // pred_fallthru
        _
      // Predicated region
      $region73: #{mpnn3_forward.3} parent=63 // pred_check
        %p957 = pneg %p268
      $region74: #{mpnn3_forward.3} parent=63 // pred_check_branch
        %959 = sbr.rel (%p957) target = $region76
      $region75: #{mpnn3_forward.3} parent=63 // pred_region
        _
      $region76: #{mpnn3_forward.3} parent=63 // pred_fallthru
        _
      // Predicated region
      $region77: #{mpnn3_forward.3} parent=63 // pred_check
        %p960 = pneg %p268
      $region78: #{mpnn3_forward.3} parent=63 // pred_check_branch
        %962 = sbr.rel (%p960) target = $region80
      $region79: #{mpnn3_forward.3} parent=63 // pred_region
        _
      $region80: #{mpnn3_forward.3} parent=63 // pred_fallthru
        _
    $region64: #{mpnn3_forward.3} parent=5 // pred_fallthru
      _
    %p963 = scmp.le.s32.totalorder 2, %s19
    // Predicated region
    $region81: #{mpnn3_forward.3} parent=5 // pred_check
      %p964 = pneg %p963
    $region82: #{mpnn3_forward.3} parent=5 // pred_check_branch
      %966 = sbr.rel (%p964) target = $region84
    $region83: #{mpnn3_forward.3} parent=5 // pred_region
      %s967 = ssub.s32 %s19, 2
    $region84: #{mpnn3_forward.3} parent=5 // pred_fallthru
      _
  $region6: #{mpnn3_forward.3} parent=0 // loop_footer
    %s23 = sadd.s32 1, %s19
  $region7: #{mpnn3_forward.3} parent=0 // loop_footer_branch
    %18 = sbr.rel target = $region3
  $region8: #{mpnn3_forward.3} parent=0 // loop_exit
    _

// kernel: mpnn3_forward.2
$region0: #{mpnn3_forward.2}
  #allocation0 [shape = 'u32[]', space=smem, size = 0x4, offset = 0x4, fixed_abs, tag = 'smem constant byte address 0x4 - core index']
  #allocation1 [shape = 'u32[144,128]{1,0:T(1,128)}', space=vmem, size = 0x12000, scoped, tag = 'internal scratch']
  #allocation2 [shape = 'f32[8,32]{1,0:T(8,128)}', space=vmem, size = 0x1000, scoped, tag = 'scratch operand']
  #allocation3 [shape = 'f32[8,32]{1,0:T(8,128)}', space=vmem, size = 0x1000, scoped, tag = 'scratch operand']
  #allocation4 [shape = 'f32[12,1024]{1,0:T(8,128)}', space=vmem, size = 0x10000, scoped, tag = 'scratch operand']
  %s0 = inlined_call_operand.vmem [shape: f32[8,6], index: 0, kind: input, shape index: {}]
  %s1 = inlined_call_operand.vmem [shape: f32[12,4], index: 1, kind: input, shape index: {}]
  %s2 = inlined_call_operand.vmem [shape: f32[12,8], index: 2, kind: input, shape index: {}]
  %s3 = inlined_call_operand.vmem [shape: f32[8,12], index: 3, kind: input, shape index: {}]
  %s4 = inlined_call_operand.hbm [shape: f32[6,32], index: 4, kind: input, shape index: {}]
  %s5 = inlined_call_operand.hbm [shape: f32[1,32], index: 5, kind: input, shape index: {}]
  %s6 = inlined_call_operand.vmem [shape: f32[4,1024], index: 6, kind: input, shape index: {}]
  %s7 = inlined_call_operand.vmem [shape: f32[1,1024], index: 7, kind: input, shape index: {}]
  %s8 = inlined_call_operand.vmem [shape: f32[32,32], index: 8, kind: input, shape index: {}]
  %s9 = inlined_call_operand.hbm [shape: f32[1,32], index: 9, kind: input, shape index: {}]
  %s10 = inlined_call_operand.hbm [shape: f32[32,96], index: 10, kind: input, shape index: {}]
  %s11 = inlined_call_operand.hbm [shape: f32[32,96], index: 11, kind: input, shape index: {}]
  %s12 = inlined_call_operand.hbm [shape: f32[1,96], index: 12, kind: input, shape index: {}]
  %s13 = inlined_call_operand.hbm [shape: f32[1,96], index: 13, kind: input, shape index: {}]
  %s14 = inlined_call_operand.vmem [shape: f32[8,32], index: 14, kind: output, shape index: {}]
  %s15 = sld [smem:[#allocation0]]
  $region125: #{mpnn3_forward.2} parent=0
    _
  %s17 = ssub.s32 1, %s15
  %s18 = scalar_select 0, %s17, %s15
  $region1: #{mpnn3_forward.2} parent=0
    #allocation5 [shape = 'u8[4096]{0}', space=vmem, size = 0x1000, scoped, tag = 'input window, operand 4, single buffered']
    #allocation6 [shape = 's32[2]{0}', space=sflag, size = 0x8, scoped, tag = 'scoped memory for mpnn3_forward.2']
    #allocation7 [shape = 'u8[512]{0}', space=vmem, size = 0x400, scoped, tag = 'input window, operand 5, single buffered']
    #allocation8 [shape = 's32[1]{0}', space=sflag, size = 0x4, scoped, tag = 'scoped memory for mpnn3_forward.2']
    #allocation9 [shape = 'u8[512]{0}', space=vmem, size = 0x400, scoped, tag = 'input window, operand 9, single buffered']
    #allocation10 [shape = 'u8[16384]{0}', space=vmem, size = 0x4000, scoped, tag = 'input window, operand 10, single buffered']
    #allocation11 [shape = 's32[1]{0}', space=sflag, size = 0x4, scoped, tag = 'scoped memory for mpnn3_forward.2']
    #allocation12 [shape = 'u8[16384]{0}', space=vmem, size = 0x4000, scoped, tag = 'input window, operand 11, single buffered']
    #allocation13 [shape = 'u8[512]{0}', space=vmem, size = 0x400, scoped, tag = 'input window, operand 12, single buffered']
    #allocation14 [shape = 's32[1]{0}', space=sflag, size = 0x4, scoped, tag = 'scoped memory for mpnn3_forward.2']
    #allocation15 [shape = 'u8[512]{0}', space=vmem, size = 0x400, scoped, tag = 'input window, operand 13, single buffered']
    %19 = vsyncpa [#allocation6], 0
    %20 = vsyncpa [#allocation8], 0
    %21 = vsyncpa [#allocation11], 0
    %22 = vsyncpa [#allocation14], 0
    loop: start=0, step=1, limit=5
    $region2: #{mpnn3_forward.2} parent=1 // loop_pre_header
      _
    $region3: #{mpnn3_forward.2} parent=1 // loop_header
      %s24 = sphi 0, %s28
      %p25 = scmp.ge.s32.totalorder %s24, 5
      %s32 = sphi 0, %s32
      %s34 = sphi 0, %s32
      %s35 = sphi 0, %s34
      %s49 = sphi 0, %s35
      %s53 = sphi 0, %s53
      %s55 = sphi 0, %s53
      %s56 = sphi 0, %s55
      %s70 = sphi 0, %s56
      %s74 = sphi 0, %s74
      %s76 = sphi 0, %s74
      %s77 = sphi 0, %s76
      %s91 = sphi 0, %s77
      %s95 = sphi 0, %s95
      %s97 = sphi 0, %s95
      %s98 = sphi 0, %s97
      %s112 = sphi 0, %s98
      %s116 = sphi 0, %s116
      %s118 = sphi 0, %s116
      %s119 = sphi 0, %s118
      %s133 = sphi 0, %s119
      %s137 = sphi 0, %s137
      %s139 = sphi 0, %s137
      %s140 = sphi 0, %s139
      %s154 = sphi 0, %s140
      %s158 = sphi 0, %s158
      %s160 = sphi 0, %s158
      %s161 = sphi 0, %s160
      %s175 = sphi 0, %s161
      %s179 = sphi 0, %s179
      %s181 = sphi 0, %s179
      %s182 = sphi 0, %s181
      %s196 = sphi 0, %s182
      %s200 = sphi 0, %s200
      %s202 = sphi 0, %s200
      %s203 = sphi 0, %s202
      %s217 = sphi 0, %s203
      %s221 = sphi 0, %s221
      %s223 = sphi 0, %s221
      %s224 = sphi 0, %s223
      %s238 = sphi 0, %s224
      %s242 = sphi 0, %s242
      %s244 = sphi 0, %s242
      %s245 = sphi 0, %s244
      %s259 = sphi 0, %s245
      %s263 = sphi 0, %s263
      %s265 = sphi 0, %s263
      %s266 = sphi 0, %s265
      %s280 = sphi 0, %s266
      %s284 = sphi 0, %s284
      %s286 = sphi 0, %s284
      %s287 = sphi 0, %s286
      %s301 = sphi 0, %s287
      %s305 = sphi 0, %s305
      %s307 = sphi 0, %s305
      %s308 = sphi 0, %s307
      %s322 = sphi 0, %s308
      %s326 = sphi 0, %s326
      %s328 = sphi 0, %s326
      %s329 = sphi 0, %s328
      %s343 = sphi 0, %s329
    $region4: #{mpnn3_forward.2} parent=1 // loop_header_branch
      %27 = sbr.rel (%p25) target = $region8
    $region5: #{mpnn3_forward.2} parent=1 // loop_body
      %s29 = ssub.s32 %s24, 1
      %s30 = ssub.s32 %s24, 2
      %s31 = sadd.s32 %s24, 1
      %s33 = sadd.s32 %s32, 1
      %p36 = scmp.eq.s32.totalorder %s24, 2
      %p37 = scmp.ne.s32.totalorder %s32, %s34
      %p38 = scmp.eq.s32.totalorder %s24, 0
      %p39 = por %p37, %p38
      %p40 = scmp.ne.s32.totalorder %s32, %s34
      %p41 = scmp.eq.s32.totalorder %s29, 2
      %p42 = por %p40, %p41
      %p43 = scmp.ne.s32.totalorder %s34, %s35
      %p44 = scmp.eq.s32.totalorder %s29, 0
      %p45 = por %p43, %p44
      %p46 = scmp.ne.s32.totalorder %s34, %s35
      %p47 = scmp.eq.s32.totalorder %s30, 2
      %p48 = por %p46, %p47
      %p50 = scmp.ne.s32.totalorder %s35, %s49
      %p51 = scmp.eq.s32.totalorder %s30, 0
      %p52 = por %p50, %p51
      %s54 = sadd.s32 %s53, 1
      %p57 = scmp.eq.s32.totalorder %s24, 2
      %p58 = scmp.ne.s32.totalorder %s53, %s55
      %p59 = scmp.eq.s32.totalorder %s24, 0
      %p60 = por %p58, %p59
      %p61 = scmp.ne.s32.totalorder %s53, %s55
      %p62 = scmp.eq.s32.totalorder %s29, 2
      %p63 = por %p61, %p62
      %p64 = scmp.ne.s32.totalorder %s55, %s56
      %p65 = scmp.eq.s32.totalorder %s29, 0
      %p66 = por %p64, %p65
      %p67 = scmp.ne.s32.totalorder %s55, %s56
      %p68 = scmp.eq.s32.totalorder %s30, 2
      %p69 = por %p67, %p68
      %p71 = scmp.ne.s32.totalorder %s56, %s70
      %p72 = scmp.eq.s32.totalorder %s30, 0
      %p73 = por %p71, %p72
      %s75 = sadd.s32 %s74, 1
      %p78 = scmp.eq.s32.totalorder %s24, 2
      %p79 = scmp.ne.s32.totalorder %s74, %s76
      %p80 = scmp.eq.s32.totalorder %s24, 0
      %p81 = por %p79, %p80
      %p82 = scmp.ne.s32.totalorder %s74, %s76
      %p83 = scmp.eq.s32.totalorder %s29, 2
      %p84 = por %p82, %p83
      %p85 = scmp.ne.s32.totalorder %s76, %s77
      %p86 = scmp.eq.s32.totalorder %s29, 0
      %p87 = por %p85, %p86
      %p88 = scmp.ne.s32.totalorder %s76, %s77
      %p89 = scmp.eq.s32.totalorder %s30, 2
      %p90 = por %p88, %p89
      %p92 = scmp.ne.s32.totalorder %s77, %s91
      %p93 = scmp.eq.s32.totalorder %s30, 0
      %p94 = por %p92, %p93
      %s96 = sadd.s32 %s95, 1
      %p99 = scmp.eq.s32.totalorder %s24, 2
      %p100 = scmp.ne.s32.totalorder %s95, %s97
      %p101 = scmp.eq.s32.totalorder %s24, 0
      %p102 = por %p100, %p101
      %p103 = scmp.ne.s32.totalorder %s95, %s97
      %p104 = scmp.eq.s32.totalorder %s29, 2
      %p105 = por %p103, %p104
      %p106 = scmp.ne.s32.totalorder %s97, %s98
      %p107 = scmp.eq.s32.totalorder %s29, 0
      %p108 = por %p106, %p107
      %p109 = scmp.ne.s32.totalorder %s97, %s98
      %p110 = scmp.eq.s32.totalorder %s30, 2
      %p111 = por %p109, %p110
      %p113 = scmp.ne.s32.totalorder %s98, %s112
      %p114 = scmp.eq.s32.totalorder %s30, 0
      %p115 = por %p113, %p114
      %s117 = sadd.s32 %s116, 1
      %p120 = scmp.eq.s32.totalorder %s24, 2
      %p121 = scmp.ne.s32.totalorder %s116, %s118
      %p122 = scmp.eq.s32.totalorder %s24, 0
      %p123 = por %p121, %p122
      %p124 = scmp.ne.s32.totalorder %s116, %s118
      %p125 = scmp.eq.s32.totalorder %s29, 2
      %p126 = por %p124, %p125
      %p127 = scmp.ne.s32.totalorder %s118, %s119
      %p128 = scmp.eq.s32.totalorder %s29, 0
      %p129 = por %p127, %p128
      %p130 = scmp.ne.s32.totalorder %s118, %s119
      %p131 = scmp.eq.s32.totalorder %s30, 2
      %p132 = por %p130, %p131
      %p134 = scmp.ne.s32.totalorder %s119, %s133
      %p135 = scmp.eq.s32.totalorder %s30, 0
      %p136 = por %p134, %p135
      %s138 = sadd.s32 %s137, 1
      %p141 = scmp.eq.s32.totalorder %s24, 2
      %p142 = scmp.ne.s32.totalorder %s137, %s139
      %p143 = scmp.eq.s32.totalorder %s24, 0
      %p144 = por %p142, %p143
      %p145 = scmp.ne.s32.totalorder %s137, %s139
      %p146 = scmp.eq.s32.totalorder %s29, 2
      %p147 = por %p145, %p146
      %p148 = scmp.ne.s32.totalorder %s139, %s140
      %p149 = scmp.eq.s32.totalorder %s29, 0
      %p150 = por %p148, %p149
      %p151 = scmp.ne.s32.totalorder %s139, %s140
      %p152 = scmp.eq.s32.totalorder %s30, 2
      %p153 = por %p151, %p152
      %p155 = scmp.ne.s32.totalorder %s140, %s154
      %p156 = scmp.eq.s32.totalorder %s30, 0
      %p157 = por %p155, %p156
      %s159 = sadd.s32 %s158, 1
      %p162 = scmp.eq.s32.totalorder %s24, 2
      %p163 = scmp.ne.s32.totalorder %s158, %s160
      %p164 = scmp.eq.s32.totalorder %s24, 0
      %p165 = por %p163, %p164
      %p166 = scmp.ne.s32.totalorder %s158, %s160
      %p167 = scmp.eq.s32.totalorder %s29, 2
      %p168 = por %p166, %p167
      %p169 = scmp.ne.s32.totalorder %s160, %s161
      %p170 = scmp.eq.s32.totalorder %s29, 0
      %p171 = por %p169, %p170
      %p172 = scmp.ne.s32.totalorder %s160, %s161
      %p173 = scmp.eq.s32.totalorder %s30, 2
      %p174 = por %p172, %p173
      %p176 = scmp.ne.s32.totalorder %s161, %s175
      %p177 = scmp.eq.s32.totalorder %s30, 0
      %p178 = por %p176, %p177
      %s180 = sadd.s32 %s179, 1
      %p183 = scmp.eq.s32.totalorder %s24, 2
      %p184 = scmp.ne.s32.totalorder %s179, %s181
      %p185 = scmp.eq.s32.totalorder %s24, 0
      %p186 = por %p184, %p185
      %p187 = scmp.ne.s32.totalorder %s179, %s181
      %p188 = scmp.eq.s32.totalorder %s29, 2
      %p189 = por %p187, %p188
      %p190 = scmp.ne.s32.totalorder %s181, %s182
      %p191 = scmp.eq.s32.totalorder %s29, 0
      %p192 = por %p190, %p191
      %p193 = scmp.ne.s32.totalorder %s181, %s182
      %p194 = scmp.eq.s32.totalorder %s30, 2
      %p195 = por %p193, %p194
      %p197 = scmp.ne.s32.totalorder %s182, %s196
      %p198 = scmp.eq.s32.totalorder %s30, 0
      %p199 = por %p197, %p198
      %s201 = sadd.s32 %s200, 1
      %p204 = scmp.eq.s32.totalorder %s24, 2
      %p205 = scmp.ne.s32.totalorder %s200, %s202
      %p206 = scmp.eq.s32.totalorder %s24, 0
      %p207 = por %p205, %p206
      %p208 = scmp.ne.s32.totalorder %s200, %s202
      %p209 = scmp.eq.s32.totalorder %s29, 2
      %p210 = por %p208, %p209
      %p211 = scmp.ne.s32.totalorder %s202, %s203
      %p212 = scmp.eq.s32.totalorder %s29, 0
      %p213 = por %p211, %p212
      %p214 = scmp.ne.s32.totalorder %s202, %s203
      %p215 = scmp.eq.s32.totalorder %s30, 2
      %p216 = por %p214, %p215
      %p218 = scmp.ne.s32.totalorder %s203, %s217
      %p219 = scmp.eq.s32.totalorder %s30, 0
      %p220 = por %p218, %p219
      %s222 = sadd.s32 %s221, 1
      %p225 = scmp.eq.s32.totalorder %s24, 2
      %p226 = scmp.ne.s32.totalorder %s221, %s223
      %p227 = scmp.eq.s32.totalorder %s24, 0
      %p228 = por %p226, %p227
      %p229 = scmp.ne.s32.totalorder %s221, %s223
      %p230 = scmp.eq.s32.totalorder %s29, 2
      %p231 = por %p229, %p230
      %p232 = scmp.ne.s32.totalorder %s223, %s224
      %p233 = scmp.eq.s32.totalorder %s29, 0
      %p234 = por %p232, %p233
      %p235 = scmp.ne.s32.totalorder %s223, %s224
      %p236 = scmp.eq.s32.totalorder %s30, 2
      %p237 = por %p235, %p236
      %p239 = scmp.ne.s32.totalorder %s224, %s238
      %p240 = scmp.eq.s32.totalorder %s30, 0
      %p241 = por %p239, %p240
      %s243 = sadd.s32 %s242, 1
      %p246 = scmp.eq.s32.totalorder %s24, 2
      %p247 = scmp.ne.s32.totalorder %s242, %s244
      %p248 = scmp.eq.s32.totalorder %s24, 0
      %p249 = por %p247, %p248
      %p250 = scmp.ne.s32.totalorder %s242, %s244
      %p251 = scmp.eq.s32.totalorder %s29, 2
      %p252 = por %p250, %p251
      %p253 = scmp.ne.s32.totalorder %s244, %s245
      %p254 = scmp.eq.s32.totalorder %s29, 0
      %p255 = por %p253, %p254
      %p256 = scmp.ne.s32.totalorder %s244, %s245
      %p257 = scmp.eq.s32.totalorder %s30, 2
      %p258 = por %p256, %p257
      %p260 = scmp.ne.s32.totalorder %s245, %s259
      %p261 = scmp.eq.s32.totalorder %s30, 0
      %p262 = por %p260, %p261
      %s264 = sadd.s32 %s263, 1
      %p267 = scmp.eq.s32.totalorder %s24, 2
      %p268 = scmp.ne.s32.totalorder %s263, %s265
      %p269 = scmp.eq.s32.totalorder %s24, 0
      %p270 = por %p268, %p269
      %p271 = scmp.ne.s32.totalorder %s263, %s265
      %p272 = scmp.eq.s32.totalorder %s29, 2
      %p273 = por %p271, %p272
      %p274 = scmp.ne.s32.totalorder %s265, %s266
      %p275 = scmp.eq.s32.totalorder %s29, 0
      %p276 = por %p274, %p275
      %p277 = scmp.ne.s32.totalorder %s265, %s266
      %p278 = scmp.eq.s32.totalorder %s30, 2
      %p279 = por %p277, %p278
      %p281 = scmp.ne.s32.totalorder %s266, %s280
      %p282 = scmp.eq.s32.totalorder %s30, 0
      %p283 = por %p281, %p282
      %s285 = sadd.s32 %s284, 1
      %p288 = scmp.eq.s32.totalorder %s24, 2
      %p289 = scmp.ne.s32.totalorder %s284, %s286
      %p290 = scmp.eq.s32.totalorder %s24, 0
      %p291 = por %p289, %p290
      %p292 = scmp.ne.s32.totalorder %s284, %s286
      %p293 = scmp.eq.s32.totalorder %s29, 2
      %p294 = por %p292, %p293
      %p295 = scmp.ne.s32.totalorder %s286, %s287
      %p296 = scmp.eq.s32.totalorder %s29, 0
      %p297 = por %p295, %p296
      %p298 = scmp.ne.s32.totalorder %s286, %s287
      %p299 = scmp.eq.s32.totalorder %s30, 2
      %p300 = por %p298, %p299
      %p302 = scmp.ne.s32.totalorder %s287, %s301
      %p303 = scmp.eq.s32.totalorder %s30, 0
      %p304 = por %p302, %p303
      %s306 = sadd.s32 %s305, 1
      %p309 = scmp.eq.s32.totalorder %s24, 2
      %p310 = scmp.ne.s32.totalorder %s305, %s307
      %p311 = scmp.eq.s32.totalorder %s24, 0
      %p312 = por %p310, %p311
      %p313 = scmp.ne.s32.totalorder %s305, %s307
      %p314 = scmp.eq.s32.totalorder %s29, 2
      %p315 = por %p313, %p314
      %p316 = scmp.ne.s32.totalorder %s307, %s308
      %p317 = scmp.eq.s32.totalorder %s29, 0
      %p318 = por %p316, %p317
      %p319 = scmp.ne.s32.totalorder %s307, %s308
      %p320 = scmp.eq.s32.totalorder %s30, 2
      %p321 = por %p319, %p320
      %p323 = scmp.ne.s32.totalorder %s308, %s322
      %p324 = scmp.eq.s32.totalorder %s30, 0
      %p325 = por %p323, %p324
      %s327 = sadd.s32 %s326, 1
      %p330 = scmp.eq.s32.totalorder %s24, 2
      %p331 = scmp.ne.s32.totalorder %s326, %s328
      %p332 = scmp.eq.s32.totalorder %s24, 0
      %p333 = por %p331, %p332
      %p334 = scmp.ne.s32.totalorder %s326, %s328
      %p335 = scmp.eq.s32.totalorder %s29, 2
      %p336 = por %p334, %p335
      %p337 = scmp.ne.s32.totalorder %s328, %s329
      %p338 = scmp.eq.s32.totalorder %s29, 0
      %p339 = por %p337, %p338
      %p340 = scmp.ne.s32.totalorder %s328, %s329
      %p341 = scmp.eq.s32.totalorder %s30, 2
      %p342 = por %p340, %p341
      %p344 = scmp.ne.s32.totalorder %s329, %s343
      %p345 = scmp.eq.s32.totalorder %s30, 0
      %p346 = por %p344, %p345
      %p347 = scmp.le.s32.totalorder 1, %s24
      %p348 = scmp.lt.s32.totalorder %s24, 4
      %p349 = pnand %p347, %p348
      %p350 = pneg %p349
      // Predicated region
      $region9: #{mpnn3_forward.2} parent=5 // pred_check
        _
      $region10: #{mpnn3_forward.2} parent=5 // pred_check_branch
        %352 = sbr.rel (%p349) target = $region12
      $region11: #{mpnn3_forward.2} parent=5 // pred_region
        %s353 = ssub.s32 %s24, 1
        // Predicated region
        $region13: #{mpnn3_forward.2} parent=11 // pred_check
          %p354 = pneg %p45
        $region14: #{mpnn3_forward.2} parent=11 // pred_check_branch
          %356 = sbr.rel (%p354) target = $region16
        $region15: #{mpnn3_forward.2} parent=11 // pred_region
          _
        $region16: #{mpnn3_forward.2} parent=11 // pred_fallthru
          _
        // Predicated region
        $region17: #{mpnn3_forward.2} parent=11 // pred_check
          %p357 = pneg %p66
        $region18: #{mpnn3_forward.2} parent=11 // pred_check_branch
          %359 = sbr.rel (%p357) target = $region20
        $region19: #{mpnn3_forward.2} parent=11 // pred_region
          _
        $region20: #{mpnn3_forward.2} parent=11 // pred_fallthru
          _
        // Predicated region
        $region21: #{mpnn3_forward.2} parent=11 // pred_check
          %p360 = pneg %p87
        $region22: #{mpnn3_forward.2} parent=11 // pred_check_branch
          %362 = sbr.rel (%p360) target = $region24
        $region23: #{mpnn3_forward.2} parent=11 // pred_region
          _
        $region24: #{mpnn3_forward.2} parent=11 // pred_fallthru
          _
        // Predicated region
        $region25: #{mpnn3_forward.2} parent=11 // pred_check
          %p363 = pneg %p108
        $region26: #{mpnn3_forward.2} parent=11 // pred_check_branch
          %365 = sbr.rel (%p363) target = $region28
        $region27: #{mpnn3_forward.2} parent=11 // pred_region
          _
        $region28: #{mpnn3_forward.2} parent=11 // pred_fallthru
          _
        // Predicated region
        $region29: #{mpnn3_forward.2} parent=11 // pred_check
          %p366 = pneg %p129
        $region30: #{mpnn3_forward.2} parent=11 // pred_check_branch
          %368 = sbr.rel (%p366) target = $region32
        $region31: #{mpnn3_forward.2} parent=11 // pred_region
          %s370 = ssub.s32 128, 128
          %371 = vsyncadd [#allocation6], %s370
          %s373 = sshll.u32 [#allocation5], 4
          %s374 = int_to_ptr.vmem [resolvable:$true] %s373
          %376 = dma.hbm_to_vmem [thread:$0]  %s4, 128, %s374, [#allocation6]
        $region32: #{mpnn3_forward.2} parent=11 // pred_fallthru
          _
        // Predicated region
        $region33: #{mpnn3_forward.2} parent=11 // pred_check
          %p377 = pneg %p150
        $region34: #{mpnn3_forward.2} parent=11 // pred_check_branch
          %379 = sbr.rel (%p377) target = $region36
        $region35: #{mpnn3_forward.2} parent=11 // pred_region
          %s381 = ssub.s32 16, 16
          %382 = vsyncadd [#allocation8], %s381
          %s384 = sshll.u32 [#allocation7], 4
          %s385 = int_to_ptr.vmem [resolvable:$true] %s384
          %387 = dma.hbm_to_vmem [thread:$0]  %s5, 16, %s385, [#allocation8]
        $region36: #{mpnn3_forward.2} parent=11 // pred_fallthru
          _
        // Predicated region
        $region37: #{mpnn3_forward.2} parent=11 // pred_check
          %p388 = pneg %p171
        $region38: #{mpnn3_forward.2} parent=11 // pred_check_branch
          %390 = sbr.rel (%p388) target = $region40
        $region39: #{mpnn3_forward.2} parent=11 // pred_region
          _
        $region40: #{mpnn3_forward.2} parent=11 // pred_fallthru
          _
        // Predicated region
        $region41: #{mpnn3_forward.2} parent=11 // pred_check
          %p391 = pneg %p192
        $region42: #{mpnn3_forward.2} parent=11 // pred_check_branch
          %393 = sbr.rel (%p391) target = $region44
        $region43: #{mpnn3_forward.2} parent=11 // pred_region
          _
        $region44: #{mpnn3_forward.2} parent=11 // pred_fallthru
          _
        // Predicated region
        $region45: #{mpnn3_forward.2} parent=11 // pred_check
          %p394 = pneg %p213
        $region46: #{mpnn3_forward.2} parent=11 // pred_check_branch
          %396 = sbr.rel (%p394) target = $region48
        $region47: #{mpnn3_forward.2} parent=11 // pred_region
          _
        $region48: #{mpnn3_forward.2} parent=11 // pred_fallthru
          _
        // Predicated region
        $region49: #{mpnn3_forward.2} parent=11 // pred_check
          %p397 = pneg %p234
        $region50: #{mpnn3_forward.2} parent=11 // pred_check_branch
          %399 = sbr.rel (%p397) target = $region52
        $region51: #{mpnn3_forward.2} parent=11 // pred_region
          %s401 = ssub.s32 16, 16
          %402 = vsyncadd [#allocation8], %s401
          %s404 = sshll.u32 [#allocation9], 4
          %s405 = int_to_ptr.vmem [resolvable:$true] %s404
          %407 = dma.hbm_to_vmem [thread:$0]  %s9, 16, %s405, [#allocation8]
        $region52: #{mpnn3_forward.2} parent=11 // pred_fallthru
          _
        // Predicated region
        $region53: #{mpnn3_forward.2} parent=11 // pred_check
          %p408 = pneg %p255
        $region54: #{mpnn3_forward.2} parent=11 // pred_check_branch
          %410 = sbr.rel (%p408) target = $region56
        $region55: #{mpnn3_forward.2} parent=11 // pred_region
          %s412 = ssub.s32 512, 512
          %413 = vsyncadd [#allocation11], %s412
          %s414 = sshll.u32 [#allocation10], 4
          %s415 = int_to_ptr.vmem [resolvable:$true] %s414
          %420 = dma.hbm_to_vmem [thread:$0]  %s10, 512, %s415, [#allocation11], 128, 128, 8
        $region56: #{mpnn3_forward.2} parent=11 // pred_fallthru
          _
        // Predicated region
        $region57: #{mpnn3_forward.2} parent=11 // pred_check
          %p421 = pneg %p276
        $region58: #{mpnn3_forward.2} parent=11 // pred_check_branch
          %423 = sbr.rel (%p421) target = $region60
        $region59: #{mpnn3_forward.2} parent=11 // pred_region
          %s425 = ssub.s32 512, 512
          %426 = vsyncadd [#allocation11], %s425
          %s427 = sshll.u32 [#allocation12], 4
          %s428 = int_to_ptr.vmem [resolvable:$true] %s427
          %433 = dma.hbm_to_vmem [thread:$0]  %s11, 512, %s428, [#allocation11], 128, 128, 8
        $region60: #{mpnn3_forward.2} parent=11 // pred_fallthru
          _
        // Predicated region
        $region61: #{mpnn3_forward.2} parent=11 // pred_check
          %p434 = pneg %p297
        $region62: #{mpnn3_forward.2} parent=11 // pred_check_branch
          %436 = sbr.rel (%p434) target = $region64
        $region63: #{mpnn3_forward.2} parent=11 // pred_region
          %s438 = ssub.s32 16, 16
          %439 = vsyncadd [#allocation14], %s438
          %s441 = sshll.u32 [#allocation13], 4
          %s442 = int_to_ptr.vmem [resolvable:$true] %s441
          %444 = dma.hbm_to_vmem [thread:$0]  %s12, 16, %s442, [#allocation14]
        $region64: #{mpnn3_forward.2} parent=11 // pred_fallthru
          _
        // Predicated region
        $region65: #{mpnn3_forward.2} parent=11 // pred_check
          %p445 = pneg %p318
        $region66: #{mpnn3_forward.2} parent=11 // pred_check_branch
          %447 = sbr.rel (%p445) target = $region68
        $region67: #{mpnn3_forward.2} parent=11 // pred_region
          %s449 = ssub.s32 16, 16
          %450 = vsyncadd [#allocation14], %s449
          %s452 = sshll.u32 [#allocation15], 4
          %s453 = int_to_ptr.vmem [resolvable:$true] %s452
          %455 = dma.hbm_to_vmem [thread:$0]  %s13, 16, %s453, [#allocation14]
        $region68: #{mpnn3_forward.2} parent=11 // pred_fallthru
          _
      $region12: #{mpnn3_forward.2} parent=5 // pred_fallthru
        _
      %p456 = scmp.lt.s32.totalorder %s24, 3
      // Predicated region
      $region69: #{mpnn3_forward.2} parent=5 // pred_check
        %p457 = pneg %p456
      $region70: #{mpnn3_forward.2} parent=5 // pred_check_branch
        %459 = sbr.rel (%p457) target = $region72
      $region71: #{mpnn3_forward.2} parent=5 // pred_region
        _
      $region72: #{mpnn3_forward.2} parent=5 // pred_fallthru
        _
      %p460 = scmp.le.s32.totalorder 1, %s24
      %p461 = scmp.lt.s32.totalorder %s24, 4
      %p462 = pnand %p460, %p461
      %p463 = pneg %p462
      // Predicated region
      $region73: #{mpnn3_forward.2} parent=5 // pred_check
        _
      $region74: #{mpnn3_forward.2} parent=5 // pred_check_branch
        %465 = sbr.rel (%p462) target = $region76
      $region75: #{mpnn3_forward.2} parent=5 // pred_region
        %s466 = ssub.s32 %s24, 1
        // Predicated region
        $region77: #{mpnn3_forward.2} parent=75 // pred_check
          %p467 = pneg %p129
        $region78: #{mpnn3_forward.2} parent=75 // pred_check_branch
          %469 = sbr.rel (%p467) target = $region80
        $region79: #{mpnn3_forward.2} parent=75 // pred_region
          %470 = dma.done [#allocation6], 128
        $region80: #{mpnn3_forward.2} parent=75 // pred_fallthru
          _
        // Predicated region
        $region81: #{mpnn3_forward.2} parent=75 // pred_check
          %p471 = pneg %p150
        $region82: #{mpnn3_forward.2} parent=75 // pred_check_branch
          %473 = sbr.rel (%p471) target = $region84
        $region83: #{mpnn3_forward.2} parent=75 // pred_region
          %474 = dma.done [#allocation8], 16
        $region84: #{mpnn3_forward.2} parent=75 // pred_fallthru
          _
        // Predicated region
        $region85: #{mpnn3_forward.2} parent=75 // pred_check
          %p475 = pneg %p234
        $region86: #{mpnn3_forward.2} parent=75 // pred_check_branch
          %477 = sbr.rel (%p475) target = $region88
        $region87: #{mpnn3_forward.2} parent=75 // pred_region
          %478 = dma.done [#allocation8], 16
        $region88: #{mpnn3_forward.2} parent=75 // pred_fallthru
          _
        // Predicated region
        $region89: #{mpnn3_forward.2} parent=75 // pred_check
          %p479 = pneg %p255
        $region90: #{mpnn3_forward.2} parent=75 // pred_check_branch
          %481 = sbr.rel (%p479) target = $region92
        $region91: #{mpnn3_forward.2} parent=75 // pred_region
          %482 = dma.done [#allocation11], 512
        $region92: #{mpnn3_forward.2} parent=75 // pred_fallthru
          _
        // Predicated region
        $region93: #{mpnn3_forward.2} parent=75 // pred_check
          %p483 = pneg %p276
        $region94: #{mpnn3_forward.2} parent=75 // pred_check_branch
          %485 = sbr.rel (%p483) target = $region96
        $region95: #{mpnn3_forward.2} parent=75 // pred_region
          %486 = dma.done [#allocation11], 512
        $region96: #{mpnn3_forward.2} parent=75 // pred_fallthru
          _
        // Predicated region
        $region97: #{mpnn3_forward.2} parent=75 // pred_check
          %p487 = pneg %p297
        $region98: #{mpnn3_forward.2} parent=75 // pred_check_branch
          %489 = sbr.rel (%p487) target = $region100
        $region99: #{mpnn3_forward.2} parent=75 // pred_region
          %490 = dma.done [#allocation14], 16
        $region100: #{mpnn3_forward.2} parent=75 // pred_fallthru
          _
        // Predicated region
        $region101: #{mpnn3_forward.2} parent=75 // pred_check
          %p491 = pneg %p318
        $region102: #{mpnn3_forward.2} parent=75 // pred_check_branch
          %493 = sbr.rel (%p491) target = $region104
        $region103: #{mpnn3_forward.2} parent=75 // pred_region
          %494 = dma.done [#allocation14], 16
        $region104: #{mpnn3_forward.2} parent=75 // pred_fallthru
          _
        %p495 = pneg %p45
        %p496 = pneg %p42
        %p497 = pneg %p66
        %p498 = pneg %p63
        %p499 = pneg %p87
        %p500 = pneg %p84
        %p501 = pneg %p108
        %p502 = pneg %p105
        %p503 = pneg %p129
        %p504 = pneg %p126
        %p505 = pneg %p150
        %p506 = pneg %p147
        %p507 = pneg %p171
        %p508 = pneg %p168
        %p509 = pneg %p192
        %p510 = pneg %p189
        %p511 = pneg %p213
        %p512 = pneg %p210
        %p513 = pneg %p234
        %p514 = pneg %p231
        %p515 = pneg %p255
        %p516 = pneg %p252
        %p517 = pneg %p276
        %p518 = pneg %p273
        %p519 = pneg %p297
        %p520 = pneg %p294
        %p521 = pneg %p318
        %p522 = pneg %p315
        %p523 = pneg %p339
        %p524 = pneg %p336
        %p525 = scmp.eq.s32.totalorder %s29, 0
        // Predicated region
        $region105: #{mpnn3_forward.2} parent=75 // pred_check
          %p526 = pneg %p525
        $region106: #{mpnn3_forward.2} parent=75 // pred_check_branch
          %528 = sbr.rel (%p526) target = $region108
        $region107: #{mpnn3_forward.2} parent=75 // pred_region
          %v529 = vld [vmem:[%s0] sm:$0xff]
          %v530 = vld [vmem:[#allocation5] sm:$0x3f]
          %v531 = vld [vmem:[#allocation7] sm:$0x1]
          %v533 = vlaneseq
          %v534 = vshrl.u32 %v533, 7
          %v535 = vsub.s32 0, %v534
          %v536 = vrot.slane %v531, %v535
          %vm538 = vcmask 48128
          %v540 = vsel %vm538, %v529, 0
          %vm542 = vcmask 1045504
          %v544 = vsel %vm542, %v530, 0
          %546 = vmatprep.subr.mxu0 0.0
          %547 = vmatpush1.msra.mxu0 0.0
          %548 = vmatprep.subr.mxu0 0.0
          %549 = vmatpush1.msra.mxu0 0.0
          %550 = vmatprep.subr.mxu0 0.0
          %551 = vmatpush1.msra.mxu0 0.0
          %552 = vmatprep.subr.mxu0 0.0
          %553 = vmatpush1.msra.mxu0 0.0
          %554 = vmatprep.subr.mxu0 0.0
          %555 = vmatpush1.msra.mxu0 0.0
          %556 = vmatprep.subr.mxu0 0.0
          %557 = vmatpush1.msra.mxu0 0.0
          %558 = vmatprep.subr.mxu0 0.0
          %559 = vmatpush1.msra.mxu0 0.0
          %560 = vmatprep.subr.mxu0 0.0
          %561 = vmatpush1.msra.mxu0 0.0
          %562 = vmatprep.subr.mxu0 0.0
          %563 = vmatpush1.msra.mxu0 0.0
          %564 = vmatprep.subr.mxu0 0.0
          %565 = vmatpush1.msra.mxu0 0.0
          %566 = vmatprep.subr.mxu0 0.0
          %567 = vmatpush1.msra.mxu0 0.0
          %568 = vmatprep.subr.mxu0 0.0
          %569 = vmatpush1.msra.mxu0 0.0
          %570 = vmatprep.subr.mxu0 0.0
          %571 = vmatpush1.msra.mxu0 0.0
          %572 = vmatprep.subr.mxu0 0.0
          %573 = vmatpush1.msra.mxu0 0.0
          %574 = vmatprep.subr.mxu0 0.0
          %575 = vmatpush1.msra.mxu0 0.0
          %576 = vmatprep.subr.mxu0 0.0
          %577 = vmatpush1.msra.mxu0 %v544
          %578 = vmatprep.subr.mxu0 0.0
          %579 = vmatpush2.msra.mxu0 0.0
          %580 = vmatprep.subr.mxu0 0.0
          %581 = vmatpush2.msra.mxu0 0.0
          %582 = vmatprep.subr.mxu0 0.0
          %583 = vmatpush2.msra.mxu0 0.0
          %584 = vmatprep.subr.mxu0 0.0
          %585 = vmatpush2.msra.mxu0 0.0
          %586 = vmatprep.subr.mxu0 0.0
          %587 = vmatpush2.msra.mxu0 0.0
          %588 = vmatprep.subr.mxu0 0.0
          %589 = vmatpush2.msra.mxu0 0.0
          %590 = vmatprep.subr.mxu0 0.0
          %591 = vmatpush2.msra.mxu0 0.0
          %592 = vmatprep.subr.mxu0 0.0
          %593 = vmatpush2.msra.mxu0 0.0
          %594 = vmatprep.subr.mxu0 0.0
          %595 = vmatpush2.msra.mxu0 0.0
          %596 = vmatprep.subr.mxu0 0.0
          %597 = vmatpush2.msra.mxu0 0.0
          %598 = vmatprep.subr.mxu0 0.0
          %599 = vmatpush2.msra.mxu0 0.0
          %600 = vmatprep.subr.mxu0 0.0
          %601 = vmatpush2.msra.mxu0 0.0
          %602 = vmatprep.subr.mxu0 0.0
          %603 = vmatpush2.msra.mxu0 0.0
          %604 = vmatprep.subr.mxu0 0.0
          %605 = vmatpush2.msra.mxu0 0.0
          %606 = vmatprep.subr.mxu0 0.0
          %607 = vmatpush2.msra.mxu0 0.0
          %608 = vmatprep.subr.mxu0 0.0
          %609 = vmatpush2.msra.mxu0 0.0
          %610 = vmatprep.mubr.f32.mxu0 0.0
          %611 = vmatmul.mubr.f32.gmra.mxu0 %v540
          %v612 = vpop.f32.mrf.mxu0
          %v613 = vadd.f32 %v536, %v612
          %v614 = vpop.f32.mrf.mxu0
          %615 = vdwg.mxu0
          %v616 = vmax.f32 %v613, 0.0
          %vm617 = vcmask 261120
          %618 = vst.msk [vmem:[#allocation2] sm:$0xff] %vm617, %v616
          %619 = vst.msk [vmem:[#allocation3] sm:$0xff] %vm617, %v616
          %v620 = vld [vmem:[%s1] sm:$0xff]
          %v621 = vld [vmem:[%s1 + $0x8] sm:$0xf]
          %v622 = vld [vmem:[%s6] sm:$0xff]
          %v623 = vld [vmem:[%s6 + $0x8] sm:$0xff]
          %v624 = vld [vmem:[%s6 + $0x10] sm:$0xff]
          %v625 = vld [vmem:[%s6 + $0x18] sm:$0xff]
          %v626 = vld [vmem:[%s7] sm:$0xff]
          %v628 = vlaneseq
          %v629 = vshrl.u32 %v628, 7
          %v630 = vsub.s32 0, %v629
          %v631 = vrot.slane %v626, %v630
          %v632 = vlaneseq
          %v633 = vshrl.u32 %v632, 7
          %v634 = vsub.s32 1, %v633
          %v635 = vrot.slane %v626, %v634
          %v636 = vlaneseq
          %v637 = vshrl.u32 %v636, 7
          %v638 = vsub.s32 2, %v637
          %v639 = vrot.slane %v626, %v638
          %v640 = vlaneseq
          %v641 = vshrl.u32 %v640, 7
          %v642 = vsub.s32 3, %v641
          %v643 = vrot.slane %v626, %v642
          %v644 = vlaneseq
          %v645 = vshrl.u32 %v644, 7
          %v646 = vsub.s32 4, %v645
          %v647 = vrot.slane %v626, %v646
          %v648 = vlaneseq
          %v649 = vshrl.u32 %v648, 7
          %v650 = vsub.s32 5, %v649
          %v651 = vrot.slane %v626, %v650
          %v652 = vlaneseq
          %v653 = vshrl.u32 %v652, 7
          %v654 = vsub.s32 6, %v653
          %v655 = vrot.slane %v626, %v654
          %v656 = vlaneseq
          %v657 = vshrl.u32 %v656, 7
          %v658 = vsub.s32 7, %v657
          %v659 = vrot.slane %v626, %v658
          %v672 = vcombine.high %v622, %v622
          %v673 = vcombine.high %v623, %v623
          %v674 = vcombine.high %v624, %v624
          %v675 = vcombine.high %v625, %v625
          %vm676 = vcmask 31744
          %v678 = vsel %vm676, %v620, 0
          %v681 = vsel %vm676, %v621, 0
          %vm683 = vcmask 1043456
          %v684 = vsel %vm683, %v622, 0
          %v686 = vsel %vm683, %v672, 0
          %v688 = vsel %vm683, %v623, 0
          %v690 = vsel %vm683, %v673, 0
          %v692 = vsel %vm683, %v624, 0
          %v694 = vsel %vm683, %v674, 0
          %v696 = vsel %vm683, %v625, 0
          %v698 = vsel %vm683, %v675, 0
          %700 = vmatprep.subr.mxu0 0.0
          %701 = vmatpush1.msra.mxu0 0.0
          %702 = vmatprep.subr.mxu0 0.0
          %703 = vmatpush1.msra.mxu0 0.0
          %704 = vmatprep.subr.mxu0 0.0
          %705 = vmatpush1.msra.mxu0 0.0
          %706 = vmatprep.subr.mxu0 0.0
          %707 = vmatpush1.msra.mxu0 0.0
          %708 = vmatprep.subr.mxu0 0.0
          %709 = vmatpush1.msra.mxu0 0.0
          %710 = vmatprep.subr.mxu0 0.0
          %711 = vmatpush1.msra.mxu0 0.0
          %712 = vmatprep.subr.mxu0 0.0
          %713 = vmatpush1.msra.mxu0 0.0
          %714 = vmatprep.subr.mxu0 0.0
          %715 = vmatpush1.msra.mxu0 0.0
          %716 = vmatprep.subr.mxu0 0.0
          %717 = vmatpush1.msra.mxu0 0.0
          %718 = vmatprep.subr.mxu0 0.0
          %719 = vmatpush1.msra.mxu0 0.0
          %720 = vmatprep.subr.mxu0 0.0
          %721 = vmatpush1.msra.mxu0 0.0
          %722 = vmatprep.subr.mxu0 0.0
          %723 = vmatpush1.msra.mxu0 0.0
          %724 = vmatprep.subr.mxu0 0.0
          %725 = vmatpush1.msra.mxu0 0.0
          %726 = vmatprep.subr.mxu0 0.0
          %727 = vmatpush1.msra.mxu0 0.0
          %728 = vmatprep.subr.mxu0 0.0
          %729 = vmatpush1.msra.mxu0 0.0
          %730 = vmatprep.subr.mxu0 %v686
          %731 = vmatpush1.msra.mxu0 %v684
          %732 = vmatprep.subr.mxu0 0.0
          %733 = vmatpush2.msra.mxu0 0.0
          %734 = vmatprep.subr.mxu0 0.0
          %735 = vmatpush2.msra.mxu0 0.0
          %736 = vmatprep.subr.mxu0 0.0
          %737 = vmatpush2.msra.mxu0 0.0
          %738 = vmatprep.subr.mxu0 0.0
          %739 = vmatpush2.msra.mxu0 0.0
          %740 = vmatprep.subr.mxu0 0.0
          %741 = vmatpush2.msra.mxu0 0.0
          %742 = vmatprep.subr.mxu0 0.0
          %743 = vmatpush2.msra.mxu0 0.0
          %744 = vmatprep.subr.mxu0 0.0
          %745 = vmatpush2.msra.mxu0 0.0
          %746 = vmatprep.subr.mxu0 0.0
          %747 = vmatpush2.msra.mxu0 0.0
          %748 = vmatprep.subr.mxu0 0.0
          %749 = vmatpush2.msra.mxu0 0.0
          %750 = vmatprep.subr.mxu0 0.0
          %751 = vmatpush2.msra.mxu0 0.0
          %752 = vmatprep.subr.mxu0 0.0
          %753 = vmatpush2.msra.mxu0 0.0
          %754 = vmatprep.subr.mxu0 0.0
          %755 = vmatpush2.msra.mxu0 0.0
          %756 = vmatprep.subr.mxu0 0.0
          %757 = vmatpush2.msra.mxu0 0.0
          %758 = vmatprep.subr.mxu0 0.0
          %759 = vmatpush2.msra.mxu0 0.0
          %760 = vmatprep.subr.mxu0 0.0
          %761 = vmatpush2.msra.mxu0 0.0
          %762 = vmatprep.subr.mxu0 0.0
          %763 = vmatpush2.msra.mxu0 0.0
          %764 = vmatprep.mubr.f32.mxu0 0.0
          %765 = vmatmul.mubr.f32.gmra.mxu0 %v678
          %v766 = vpop.f32.mrf.mxu0
          %v767 = vadd.f32 %v631, %v766
          %v768 = vpop.f32.mrf.mxu0
          %v769 = vadd.f32 %v635, %v768
          %770 = vmatprep.mubr.f32.mxu0 0.0
          %771 = vmatmul.mubr.f32.gmra.mxu0 %v681
          %v772 = vpop.f32.mrf.mxu0
          %v773 = vadd.f32 %v631, %v772
          %v774 = vpop.f32.mrf.mxu0
          %v775 = vadd.f32 %v635, %v774
          %776 = vdwg.mxu0
          %777 = vmatprep.subr.mxu0 0.0
          %778 = vmatpush1.msra.mxu0 0.0
          %779 = vmatprep.subr.mxu0 0.0
          %780 = vmatpush1.msra.mxu0 0.0
          %781 = vmatprep.subr.mxu0 0.0
          %782 = vmatpush1.msra.mxu0 0.0
          %783 = vmatprep.subr.mxu0 0.0
          %784 = vmatpush1.msra.mxu0 0.0
          %785 = vmatprep.subr.mxu0 0.0
          %786 = vmatpush1.msra.mxu0 0.0
          %787 = vmatprep.subr.mxu0 0.0
          %788 = vmatpush1.msra.mxu0 0.0
          %789 = vmatprep.subr.mxu0 0.0
          %790 = vmatpush1.msra.mxu0 0.0
          %791 = vmatprep.subr.mxu0 0.0
          %792 = vmatpush1.msra.mxu0 0.0
          %793 = vmatprep.subr.mxu0 0.0
          %794 = vmatpush1.msra.mxu0 0.0
          %795 = vmatprep.subr.mxu0 0.0
          %796 = vmatpush1.msra.mxu0 0.0
          %797 = vmatprep.subr.mxu0 0.0
          %798 = vmatpush1.msra.mxu0 0.0
          %799 = vmatprep.subr.mxu0 0.0
          %800 = vmatpush1.msra.mxu0 0.0
          %801 = vmatprep.subr.mxu0 0.0
          %802 = vmatpush1.msra.mxu0 0.0
          %803 = vmatprep.subr.mxu0 0.0
          %804 = vmatpush1.msra.mxu0 0.0
          %805 = vmatprep.subr.mxu0 0.0
          %806 = vmatpush1.msra.mxu0 0.0
          %807 = vmatprep.subr.mxu0 %v690
          %808 = vmatpush1.msra.mxu0 %v688
          %809 = vmatprep.subr.mxu0 0.0
          %810 = vmatpush2.msra.mxu0 0.0
          %811 = vmatprep.subr.mxu0 0.0
          %812 = vmatpush2.msra.mxu0 0.0
          %813 = vmatprep.subr.mxu0 0.0
          %814 = vmatpush2.msra.mxu0 0.0
          %815 = vmatprep.subr.mxu0 0.0
          %816 = vmatpush2.msra.mxu0 0.0
          %817 = vmatprep.subr.mxu0 0.0
          %818 = vmatpush2.msra.mxu0 0.0
          %819 = vmatprep.subr.mxu0 0.0
          %820 = vmatpush2.msra.mxu0 0.0
          %821 = vmatprep.subr.mxu0 0.0
          %822 = vmatpush2.msra.mxu0 0.0
          %823 = vmatprep.subr.mxu0 0.0
          %824 = vmatpush2.msra.mxu0 0.0
          %825 = vmatprep.subr.mxu0 0.0
          %826 = vmatpush2.msra.mxu0 0.0
          %827 = vmatprep.subr.mxu0 0.0
          %828 = vmatpush2.msra.mxu0 0.0
          %829 = vmatprep.subr.mxu0 0.0
          %830 = vmatpush2.msra.mxu0 0.0
          %831 = vmatprep.subr.mxu0 0.0
          %832 = vmatpush2.msra.mxu0 0.0
          %833 = vmatprep.subr.mxu0 0.0
          %834 = vmatpush2.msra.mxu0 0.0
          %835 = vmatprep.subr.mxu0 0.0
          %836 = vmatpush2.msra.mxu0 0.0
          %837 = vmatprep.subr.mxu0 0.0
          %838 = vmatpush2.msra.mxu0 0.0
          %839 = vmatprep.subr.mxu0 0.0
          %840 = vmatpush2.msra.mxu0 0.0
          %841 = vmatprep.mubr.f32.mxu0 0.0
          %842 = vmatmul.mubr.f32.gmra.mxu0 %v678
          %v843 = vpop.f32.mrf.mxu0
          %v844 = vadd.f32 %v639, %v843
          %v845 = vpop.f32.mrf.mxu0
          %v846 = vadd.f32 %v643, %v845
          %847 = vmatprep.mubr.f32.mxu0 0.0
          %848 = vmatmul.mubr.f32.gmra.mxu0 %v681
          %v849 = vpop.f32.mrf.mxu0
          %v850 = vadd.f32 %v639, %v849
          %v851 = vpop.f32.mrf.mxu0
          %v852 = vadd.f32 %v643, %v851
          %853 = vdwg.mxu0
          %854 = vmatprep.subr.mxu0 0.0
          %855 = vmatpush1.msra.mxu0 0.0
          %856 = vmatprep.subr.mxu0 0.0
          %857 = vmatpush1.msra.mxu0 0.0
          %858 = vmatprep.subr.mxu0 0.0
          %859 = vmatpush1.msra.mxu0 0.0
          %860 = vmatprep.subr.mxu0 0.0
          %861 = vmatpush1.msra.mxu0 0.0
          %862 = vmatprep.subr.mxu0 0.0
          %863 = vmatpush1.msra.mxu0 0.0
          %864 = vmatprep.subr.mxu0 0.0
          %865 = vmatpush1.msra.mxu0 0.0
          %866 = vmatprep.subr.mxu0 0.0
          %867 = vmatpush1.msra.mxu0 0.0
          %868 = vmatprep.subr.mxu0 0.0
          %869 = vmatpush1.msra.mxu0 0.0
          %870 = vmatprep.subr.mxu0 0.0
          %871 = vmatpush1.msra.mxu0 0.0
          %872 = vmatprep.subr.mxu0 0.0
          %873 = vmatpush1.msra.mxu0 0.0
          %874 = vmatprep.subr.mxu0 0.0
          %875 = vmatpush1.msra.mxu0 0.0
          %876 = vmatprep.subr.mxu0 0.0
          %877 = vmatpush1.msra.mxu0 0.0
          %878 = vmatprep.subr.mxu0 0.0
          %879 = vmatpush1.msra.mxu0 0.0
          %880 = vmatprep.subr.mxu0 0.0
          %881 = vmatpush1.msra.mxu0 0.0
          %882 = vmatprep.subr.mxu0 0.0
          %883 = vmatpush1.msra.mxu0 0.0
          %884 = vmatprep.subr.mxu0 %v694
          %885 = vmatpush1.msra.mxu0 %v692
          %886 = vmatprep.subr.mxu0 0.0
          %887 = vmatpush2.msra.mxu0 0.0
          %888 = vmatprep.subr.mxu0 0.0
          %889 = vmatpush2.msra.mxu0 0.0
          %890 = vmatprep.subr.mxu0 0.0
          %891 = vmatpush2.msra.mxu0 0.0
          %892 = vmatprep.subr.mxu0 0.0
          %893 = vmatpush2.msra.mxu0 0.0
          %894 = vmatprep.subr.mxu0 0.0
          %895 = vmatpush2.msra.mxu0 0.0
          %896 = vmatprep.subr.mxu0 0.0
          %897 = vmatpush2.msra.mxu0 0.0
          %898 = vmatprep.subr.mxu0 0.0
          %899 = vmatpush2.msra.mxu0 0.0
          %900 = vmatprep.subr.mxu0 0.0
          %901 = vmatpush2.msra.mxu0 0.0
          %902 = vmatprep.subr.mxu0 0.0
          %903 = vmatpush2.msra.mxu0 0.0
          %904 = vmatprep.subr.mxu0 0.0
          %905 = vmatpush2.msra.mxu0 0.0
          %906 = vmatprep.subr.mxu0 0.0
          %907 = vmatpush2.msra.mxu0 0.0
          %908 = vmatprep.subr.mxu0 0.0
          %909 = vmatpush2.msra.mxu0 0.0
          %910 = vmatprep.subr.mxu0 0.0
          %911 = vmatpush2.msra.mxu0 0.0
          %912 = vmatprep.subr.mxu0 0.0
          %913 = vmatpush2.msra.mxu0 0.0
          %914 = vmatprep.subr.mxu0 0.0
          %915 = vmatpush2.msra.mxu0 0.0
          %916 = vmatprep.subr.mxu0 0.0
          %917 = vmatpush2.msra.mxu0 0.0
          %918 = vmatprep.mubr.f32.mxu0 0.0
          %919 = vmatmul.mubr.f32.gmra.mxu0 %v678
          %v920 = vpop.f32.mrf.mxu0
          %v921 = vadd.f32 %v647, %v920
          %v922 = vpop.f32.mrf.mxu0
          %v923 = vadd.f32 %v651, %v922
          %924 = vmatprep.mubr.f32.mxu0 0.0
          %925 = vmatmul.mubr.f32.gmra.mxu0 %v681
          %v926 = vpop.f32.mrf.mxu0
          %v927 = vadd.f32 %v647, %v926
          %v928 = vpop.f32.mrf.mxu0
          %v929 = vadd.f32 %v651, %v928
          %930 = vdwg.mxu0
          %931 = vmatprep.subr.mxu0 0.0
          %932 = vmatpush1.msra.mxu0 0.0
          %933 = vmatprep.subr.mxu0 0.0
          %934 = vmatpush1.msra.mxu0 0.0
          %935 = vmatprep.subr.mxu0 0.0
          %936 = vmatpush1.msra.mxu0 0.0
          %937 = vmatprep.subr.mxu0 0.0
          %938 = vmatpush1.msra.mxu0 0.0
          %939 = vmatprep.subr.mxu0 0.0
          %940 = vmatpush1.msra.mxu0 0.0
          %941 = vmatprep.subr.mxu0 0.0
          %942 = vmatpush1.msra.mxu0 0.0
          %943 = vmatprep.subr.mxu0 0.0
          %944 = vmatpush1.msra.mxu0 0.0
          %945 = vmatprep.subr.mxu0 0.0
          %946 = vmatpush1.msra.mxu0 0.0
          %947 = vmatprep.subr.mxu0 0.0
          %948 = vmatpush1.msra.mxu0 0.0
          %949 = vmatprep.subr.mxu0 0.0
          %950 = vmatpush1.msra.mxu0 0.0
          %951 = vmatprep.subr.mxu0 0.0
          %952 = vmatpush1.msra.mxu0 0.0
          %953 = vmatprep.subr.mxu0 0.0
          %954 = vmatpush1.msra.mxu0 0.0
          %955 = vmatprep.subr.mxu0 0.0
          %956 = vmatpush1.msra.mxu0 0.0
          %957 = vmatprep.subr.mxu0 0.0
          %958 = vmatpush1.msra.mxu0 0.0
          %959 = vmatprep.subr.mxu0 0.0
          %960 = vmatpush1.msra.mxu0 0.0
          %961 = vmatprep.subr.mxu0 %v698
          %962 = vmatpush1.msra.mxu0 %v696
          %963 = vmatprep.subr.mxu0 0.0
          %964 = vmatpush2.msra.mxu0 0.0
          %965 = vmatprep.subr.mxu0 0.0
          %966 = vmatpush2.msra.mxu0 0.0
          %967 = vmatprep.subr.mxu0 0.0
          %968 = vmatpush2.msra.mxu0 0.0
          %969 = vmatprep.subr.mxu0 0.0
          %970 = vmatpush2.msra.mxu0 0.0
          %971 = vmatprep.subr.mxu0 0.0
          %972 = vmatpush2.msra.mxu0 0.0
          %973 = vmatprep.subr.mxu0 0.0
          %974 = vmatpush2.msra.mxu0 0.0
          %975 = vmatprep.subr.mxu0 0.0
          %976 = vmatpush2.msra.mxu0 0.0
          %977 = vmatprep.subr.mxu0 0.0
          %978 = vmatpush2.msra.mxu0 0.0
          %979 = vmatprep.subr.mxu0 0.0
          %980 = vmatpush2.msra.mxu0 0.0
          %981 = vmatprep.subr.mxu0 0.0
          %982 = vmatpush2.msra.mxu0 0.0
          %983 = vmatprep.subr.mxu0 0.0
          %984 = vmatpush2.msra.mxu0 0.0
          %985 = vmatprep.subr.mxu0 0.0
          %986 = vmatpush2.msra.mxu0 0.0
          %987 = vmatprep.subr.mxu0 0.0
          %988 = vmatpush2.msra.mxu0 0.0
          %989 = vmatprep.subr.mxu0 0.0
          %990 = vmatpush2.msra.mxu0 0.0
          %991 = vmatprep.subr.mxu0 0.0
          %992 = vmatpush2.msra.mxu0 0.0
          %993 = vmatprep.subr.mxu0 0.0
          %994 = vmatpush2.msra.mxu0 0.0
          %995 = vmatprep.mubr.f32.mxu0 0.0
          %996 = vmatmul.mubr.f32.gmra.mxu0 %v678
          %v997 = vpop.f32.mrf.mxu0
          %v998 = vadd.f32 %v655, %v997
          %v999 = vpop.f32.mrf.mxu0
          %v1000 = vadd.f32 %v659, %v999
          %1001 = vmatprep.mubr.f32.mxu0 0.0
          %1002 = vmatmul.mubr.f32.gmra.mxu0 %v681
          %v1003 = vpop.f32.mrf.mxu0
          %v1004 = vadd.f32 %v655, %v1003
          %v1005 = vpop.f32.mrf.mxu0
          %v1006 = vadd.f32 %v659, %v1005
          %1007 = vdwg.mxu0
          %1008 = vst [vmem:[#allocation4] sm:$0xff] %v767
          %1009 = vst [vmem:[#allocation4 + $0x8] sm:$0xff] %v769
          %1010 = vst [vmem:[#allocation4 + $0x10] sm:$0xff] %v844
          %1011 = vst [vmem:[#allocation4 + $0x18] sm:$0xff] %v846
          %1012 = vst [vmem:[#allocation4 + $0x20] sm:$0xff] %v921
          %1013 = vst [vmem:[#allocation4 + $0x28] sm:$0xff] %v923
          %1014 = vst [vmem:[#allocation4 + $0x30] sm:$0xff] %v998
          %1015 = vst [vmem:[#allocation4 + $0x38] sm:$0xff] %v1000
          %1016 = vst [vmem:[#allocation4 + $0x40] sm:$0xf] %v773
          %1017 = vst [vmem:[#allocation4 + $0x48] sm:$0xf] %v775
          %1018 = vst [vmem:[#allocation4 + $0x50] sm:$0xf] %v850
          %1019 = vst [vmem:[#allocation4 + $0x58] sm:$0xf] %v852
          %1020 = vst [vmem:[#allocation4 + $0x60] sm:$0xf] %v927
          %1021 = vst [vmem:[#allocation4 + $0x68] sm:$0xf] %v929
          %1022 = vst [vmem:[#allocation4 + $0x70] sm:$0xf] %v1004
          %1023 = vst [vmem:[#allocation4 + $0x78] sm:$0xf] %v1006
        $region108: #{mpnn3_forward.2} parent=75 // pred_fallthru
          _
        %v1024 = vld [vmem:[#allocation2] sm:$0xff]
        %v1025 = vld [vmem:[#allocation3] sm:$0xff]
        %v1026 = vld [vmem:[#allocation4] sm:$0xff]
        %v1027 = vld [vmem:[#allocation4 + $0x8] sm:$0xff]
        %v1028 = vld [vmem:[#allocation4 + $0x10] sm:$0xff]
        %v1029 = vld [vmem:[#allocation4 + $0x18] sm:$0xff]
        %v1030 = vld [vmem:[#allocation4 + $0x20] sm:$0xff]
        %v1031 = vld [vmem:[#allocation4 + $0x28] sm:$0xff]
        %v1032 = vld [vmem:[#allocation4 + $0x30] sm:$0xff]
        %v1033 = vld [vmem:[#allocation4 + $0x38] sm:$0xff]
        %v1034 = vld [vmem:[#allocation4 + $0x40] sm:$0xf]
        %v1035 = vld [vmem:[#allocation4 + $0x48] sm:$0xf]
        %v1036 = vld [vmem:[#allocation4 + $0x50] sm:$0xf]
        %v1037 = vld [vmem:[#allocation4 + $0x58] sm:$0xf]
        %v1038 = vld [vmem:[#allocation4 + $0x60] sm:$0xf]
        %v1039 = vld [vmem:[#allocation4 + $0x68] sm:$0xf]
        %v1040 = vld [vmem:[#allocation4 + $0x70] sm:$0xf]
        %v1041 = vld [vmem:[#allocation4 + $0x78] sm:$0xf]
        %v1042 = vld [vmem:[%s2] sm:$0xff]
        %v1043 = vld [vmem:[%s2 + $0x8] sm:$0xf]
        %vm1044 = vcmask 64512
        %v1046 = vsel %vm1044, %v1042, 0
        %v1049 = vsel %vm1044, %v1043, 0
        %1051 = vmatprep.subr.mxu0 0.0
        %1052 = vmatpush1.msra.mxu0 0.0
        %1053 = vmatprep.subr.mxu0 0.0
        %1054 = vmatpush1.msra.mxu0 0.0
        %1055 = vmatprep.subr.mxu0 0.0
        %1056 = vmatpush1.msra.mxu0 0.0
        %1057 = vmatprep.subr.mxu0 0.0
        %1058 = vmatpush1.msra.mxu0 0.0
        %1059 = vmatprep.subr.mxu0 0.0
        %1060 = vmatpush1.msra.mxu0 0.0
        %1061 = vmatprep.subr.mxu0 0.0
        %1062 = vmatpush1.msra.mxu0 0.0
        %1063 = vmatprep.subr.mxu0 0.0
        %1064 = vmatpush1.msra.mxu0 0.0
        %1065 = vmatprep.subr.mxu0 0.0
        %1066 = vmatpush1.msra.mxu0 0.0
        %1067 = vmatprep.subr.mxu0 0.0
        %1068 = vmatpush1.msra.mxu0 0.0
        %1069 = vmatprep.subr.mxu0 0.0
        %1070 = vmatpush1.msra.mxu0 0.0
        %1071 = vmatprep.subr.mxu0 0.0
        %1072 = vmatpush1.msra.mxu0 0.0
        %1073 = vmatprep.subr.mxu0 0.0
        %1074 = vmatpush1.msra.mxu0 0.0
        %1075 = vmatprep.subr.mxu0 0.0
        %1076 = vmatpush1.msra.mxu0 0.0
        %1077 = vmatprep.subr.mxu0 0.0
        %1078 = vmatpush1.msra.mxu0 0.0
        %1079 = vmatprep.subr.mxu0 0.0
        %1080 = vmatpush1.msra.mxu0 0.0
        %1081 = vmatprep.subr.mxu0 0.0
        %1082 = vmatpush1.msra.mxu0 %v1024
        %1083 = vmatprep.subr.mxu0 0.0
        %1084 = vmatpush2.msra.mxu0 0.0
        %1085 = vmatprep.subr.mxu0 0.0
        %1086 = vmatpush2.msra.mxu0 0.0
        %1087 = vmatprep.subr.mxu0 0.0
        %1088 = vmatpush2.msra.mxu0 0.0
        %1089 = vmatprep.subr.mxu0 0.0
        %1090 = vmatpush2.msra.mxu0 0.0
        %1091 = vmatprep.subr.mxu0 0.0
        %1092 = vmatpush2.msra.mxu0 0.0
        %1093 = vmatprep.subr.mxu0 0.0
        %1094 = vmatpush2.msra.mxu0 0.0
        %1095 = vmatprep.subr.mxu0 0.0
        %1096 = vmatpush2.msra.mxu0 0.0
        %1097 = vmatprep.subr.mxu0 0.0
        %1098 = vmatpush2.msra.mxu0 0.0
        %1099 = vmatprep.subr.mxu0 0.0
        %1100 = vmatpush2.msra.mxu0 0.0
        %1101 = vmatprep.subr.mxu0 0.0
        %1102 = vmatpush2.msra.mxu0 0.0
        %1103 = vmatprep.subr.mxu0 0.0
        %1104 = vmatpush2.msra.mxu0 0.0
        %1105 = vmatprep.subr.mxu0 0.0
        %1106 = vmatpush2.msra.mxu0 0.0
        %1107 = vmatprep.subr.mxu0 0.0
        %1108 = vmatpush2.msra.mxu0 0.0
        %1109 = vmatprep.subr.mxu0 0.0
        %1110 = vmatpush2.msra.mxu0 0.0
        %1111 = vmatprep.subr.mxu0 0.0
        %1112 = vmatpush2.msra.mxu0 0.0
        %1113 = vmatprep.subr.mxu0 0.0
        %1114 = vmatpush2.msra.mxu0 0.0
        %1115 = vmatprep.mubr.f32.mxu0 0.0
        %1116 = vmatmul.mubr.f32.gmra.mxu0 %v1046
        %v1117 = vpop.f32.mrf.mxu0
        %v1118 = vadd.f32 0.0, %v1117
        %v1119 = vpop.f32.mrf.mxu0
        %1120 = vmatprep.mubr.f32.mxu0 0.0
        %1121 = vmatmul.mubr.f32.gmra.mxu0 %v1049
        %v1122 = vpop.f32.mrf.mxu0
        %v1123 = vadd.f32 0.0, %v1122
        %v1124 = vpop.f32.mrf.mxu0
        %1125 = vdwg.mxu0
        %1127 = vset.pattern.permute.xlu0 0
        %1128 = vperm.xlu0 %1127, %v1118
        %v1129 = vpop.permute.xlu0 %1128
        %1132 = vset.pattern.permute.xlu0 0
        %1133 = vperm.xlu0 %1132, %v1123
        %v1134 = vpop.permute.xlu0 %1133
        %v1136 = vmul.f32 %v1129, %v1026
        %v1137 = vmul.f32 %v1134, %v1034
        %1138 = vset.pattern.permute.xlu0 1
        %1139 = vperm.xlu0 %1138, %v1118
        %v1140 = vpop.permute.xlu0 %1139
        %1142 = vset.pattern.permute.xlu0 1
        %1143 = vperm.xlu0 %1142, %v1123
        %v1144 = vpop.permute.xlu0 %1143
        %v1146 = vmul.f32 %v1140, %v1026
        %v1147 = vmul.f32 %v1144, %v1034
        %1150 = vrot.lane.b32.xlu0 %v1146, 96
        %v1151 = vpop.permute.xlu0 %1150
        %1152 = vrot.lane.b32.xlu0 %v1147, 96
        %v1153 = vpop.permute.xlu0 %1152
        %v1156 = vadd.f32 %v1136, %v1151
        %v1157 = vadd.f32 %v1137, %v1153
        %1158 = vset.pattern.permute.xlu0 2
        %1159 = vperm.xlu0 %1158, %v1118
        %v1160 = vpop.permute.xlu0 %1159
        %1162 = vset.pattern.permute.xlu0 2
        %1163 = vperm.xlu0 %1162, %v1123
        %v1164 = vpop.permute.xlu0 %1163
        %v1166 = vmul.f32 %v1160, %v1026
        %v1167 = vmul.f32 %v1164, %v1034
        %1170 = vrot.lane.b32.xlu0 %v1166, 64
        %v1171 = vpop.permute.xlu0 %1170
        %1172 = vrot.lane.b32.xlu0 %v1167, 64
        %v1173 = vpop.permute.xlu0 %1172
        %v1176 = vadd.f32 %v1156, %v1171
        %v1177 = vadd.f32 %v1157, %v1173
        %1178 = vset.pattern.permute.xlu0 3
        %1179 = vperm.xlu0 %1178, %v1118
        %v1180 = vpop.permute.xlu0 %1179
        %1182 = vset.pattern.permute.xlu0 3
        %1183 = vperm.xlu0 %1182, %v1123
        %v1184 = vpop.permute.xlu0 %1183
        %v1186 = vmul.f32 %v1180, %v1026
        %v1187 = vmul.f32 %v1184, %v1034
        %1190 = vrot.lane.b32.xlu0 %v1186, 32
        %v1191 = vpop.permute.xlu0 %1190
        %1192 = vrot.lane.b32.xlu0 %v1187, 32
        %v1193 = vpop.permute.xlu0 %1192
        %v1196 = vadd.f32 %v1176, %v1191
        %v1197 = vadd.f32 %v1177, %v1193
        %1198 = vset.pattern.permute.xlu0 4
        %1199 = vperm.xlu0 %1198, %v1118
        %v1200 = vpop.permute.xlu0 %1199
        %1202 = vset.pattern.permute.xlu0 4
        %1203 = vperm.xlu0 %1202, %v1123
        %v1204 = vpop.permute.xlu0 %1203
        %v1206 = vmul.f32 %v1200, %v1027
        %v1207 = vmul.f32 %v1204, %v1035
        %v1208 = vadd.f32 %v1196, %v1206
        %v1209 = vadd.f32 %v1197, %v1207
        %1210 = vset.pattern.permute.xlu0 5
        %1211 = vperm.xlu0 %1210, %v1118
        %v1212 = vpop.permute.xlu0 %1211
        %1214 = vset.pattern.permute.xlu0 5
        %1215 = vperm.xlu0 %1214, %v1123
        %v1216 = vpop.permute.xlu0 %1215
        %v1218 = vmul.f32 %v1212, %v1027
        %v1219 = vmul.f32 %v1216, %v1035
        %1222 = vrot.lane.b32.xlu0 %v1218, 96
        %v1223 = vpop.permute.xlu0 %1222
        %1224 = vrot.lane.b32.xlu0 %v1219, 96
        %v1225 = vpop.permute.xlu0 %1224
        %v1228 = vadd.f32 %v1208, %v1223
        %v1229 = vadd.f32 %v1209, %v1225
        %1230 = vset.pattern.permute.xlu0 6
        %1231 = vperm.xlu0 %1230, %v1118
        %v1232 = vpop.permute.xlu0 %1231
        %1234 = vset.pattern.permute.xlu0 6
        %1235 = vperm.xlu0 %1234, %v1123
        %v1236 = vpop.permute.xlu0 %1235
        %v1238 = vmul.f32 %v1232, %v1027
        %v1239 = vmul.f32 %v1236, %v1035
        %1242 = vrot.lane.b32.xlu0 %v1238, 64
        %v1243 = vpop.permute.xlu0 %1242
        %1244 = vrot.lane.b32.xlu0 %v1239, 64
        %v1245 = vpop.permute.xlu0 %1244
        %v1248 = vadd.f32 %v1228, %v1243
        %v1249 = vadd.f32 %v1229, %v1245
        %1250 = vset.pattern.permute.xlu0 7
        %1251 = vperm.xlu0 %1250, %v1118
        %v1252 = vpop.permute.xlu0 %1251
        %1254 = vset.pattern.permute.xlu0 7
        %1255 = vperm.xlu0 %1254, %v1123
        %v1256 = vpop.permute.xlu0 %1255
        %v1258 = vmul.f32 %v1252, %v1027
        %v1259 = vmul.f32 %v1256, %v1035
        %1262 = vrot.lane.b32.xlu0 %v1258, 32
        %v1263 = vpop.permute.xlu0 %1262
        %1264 = vrot.lane.b32.xlu0 %v1259, 32
        %v1265 = vpop.permute.xlu0 %1264
        %v1268 = vadd.f32 %v1248, %v1263
        %v1269 = vadd.f32 %v1249, %v1265
        %1270 = vset.pattern.permute.xlu0 8
        %1271 = vperm.xlu0 %1270, %v1118
        %v1272 = vpop.permute.xlu0 %1271
        %1274 = vset.pattern.permute.xlu0 8
        %1275 = vperm.xlu0 %1274, %v1123
        %v1276 = vpop.permute.xlu0 %1275
        %v1278 = vmul.f32 %v1272, %v1028
        %v1279 = vmul.f32 %v1276, %v1036
        %v1280 = vadd.f32 %v1268, %v1278
        %v1281 = vadd.f32 %v1269, %v1279
        %1282 = vset.pattern.permute.xlu0 9
        %1283 = vperm.xlu0 %1282, %v1118
        %v1284 = vpop.permute.xlu0 %1283
        %1286 = vset.pattern.permute.xlu0 9
        %1287 = vperm.xlu0 %1286, %v1123
        %v1288 = vpop.permute.xlu0 %1287
        %v1290 = vmul.f32 %v1284, %v1028
        %v1291 = vmul.f32 %v1288, %v1036
        %1294 = vrot.lane.b32.xlu0 %v1290, 96
        %v1295 = vpop.permute.xlu0 %1294
        %1296 = vrot.lane.b32.xlu0 %v1291, 96
        %v1297 = vpop.permute.xlu0 %1296
        %v1300 = vadd.f32 %v1280, %v1295
        %v1301 = vadd.f32 %v1281, %v1297
        %1302 = vset.pattern.permute.xlu0 10
        %1303 = vperm.xlu0 %1302, %v1118
        %v1304 = vpop.permute.xlu0 %1303
        %1306 = vset.pattern.permute.xlu0 10
        %1307 = vperm.xlu0 %1306, %v1123
        %v1308 = vpop.permute.xlu0 %1307
        %v1310 = vmul.f32 %v1304, %v1028
        %v1311 = vmul.f32 %v1308, %v1036
        %1314 = vrot.lane.b32.xlu0 %v1310, 64
        %v1315 = vpop.permute.xlu0 %1314
        %1316 = vrot.lane.b32.xlu0 %v1311, 64
        %v1317 = vpop.permute.xlu0 %1316
        %v1320 = vadd.f32 %v1300, %v1315
        %v1321 = vadd.f32 %v1301, %v1317
        %1322 = vset.pattern.permute.xlu0 11
        %1323 = vperm.xlu0 %1322, %v1118
        %v1324 = vpop.permute.xlu0 %1323
        %1326 = vset.pattern.permute.xlu0 11
        %1327 = vperm.xlu0 %1326, %v1123
        %v1328 = vpop.permute.xlu0 %1327
        %v1330 = vmul.f32 %v1324, %v1028
        %v1331 = vmul.f32 %v1328, %v1036
        %1334 = vrot.lane.b32.xlu0 %v1330, 32
        %v1335 = vpop.permute.xlu0 %1334
        %1336 = vrot.lane.b32.xlu0 %v1331, 32
        %v1337 = vpop.permute.xlu0 %1336
        %v1340 = vadd.f32 %v1320, %v1335
        %v1341 = vadd.f32 %v1321, %v1337
        %1342 = vset.pattern.permute.xlu0 12
        %1343 = vperm.xlu0 %1342, %v1118
        %v1344 = vpop.permute.xlu0 %1343
        %1346 = vset.pattern.permute.xlu0 12
        %1347 = vperm.xlu0 %1346, %v1123
        %v1348 = vpop.permute.xlu0 %1347
        %v1350 = vmul.f32 %v1344, %v1029
        %v1351 = vmul.f32 %v1348, %v1037
        %v1352 = vadd.f32 %v1340, %v1350
        %v1353 = vadd.f32 %v1341, %v1351
        %1354 = vset.pattern.permute.xlu0 13
        %1355 = vperm.xlu0 %1354, %v1118
        %v1356 = vpop.permute.xlu0 %1355
        %1358 = vset.pattern.permute.xlu0 13
        %1359 = vperm.xlu0 %1358, %v1123
        %v1360 = vpop.permute.xlu0 %1359
        %v1362 = vmul.f32 %v1356, %v1029
        %v1363 = vmul.f32 %v1360, %v1037
        %1366 = vrot.lane.b32.xlu0 %v1362, 96
        %v1367 = vpop.permute.xlu0 %1366
        %1368 = vrot.lane.b32.xlu0 %v1363, 96
        %v1369 = vpop.permute.xlu0 %1368
        %v1372 = vadd.f32 %v1352, %v1367
        %v1373 = vadd.f32 %v1353, %v1369
        %1374 = vset.pattern.permute.xlu0 14
        %1375 = vperm.xlu0 %1374, %v1118
        %v1376 = vpop.permute.xlu0 %1375
        %1378 = vset.pattern.permute.xlu0 14
        %1379 = vperm.xlu0 %1378, %v1123
        %v1380 = vpop.permute.xlu0 %1379
        %v1382 = vmul.f32 %v1376, %v1029
        %v1383 = vmul.f32 %v1380, %v1037
        %1386 = vrot.lane.b32.xlu0 %v1382, 64
        %v1387 = vpop.permute.xlu0 %1386
        %1388 = vrot.lane.b32.xlu0 %v1383, 64
        %v1389 = vpop.permute.xlu0 %1388
        %v1392 = vadd.f32 %v1372, %v1387
        %v1393 = vadd.f32 %v1373, %v1389
        %1394 = vset.pattern.permute.xlu0 15
        %1395 = vperm.xlu0 %1394, %v1118
        %v1396 = vpop.permute.xlu0 %1395
        %1398 = vset.pattern.permute.xlu0 15
        %1399 = vperm.xlu0 %1398, %v1123
        %v1400 = vpop.permute.xlu0 %1399
        %v1402 = vmul.f32 %v1396, %v1029
        %v1403 = vmul.f32 %v1400, %v1037
        %1406 = vrot.lane.b32.xlu0 %v1402, 32
        %v1407 = vpop.permute.xlu0 %1406
        %1408 = vrot.lane.b32.xlu0 %v1403, 32
        %v1409 = vpop.permute.xlu0 %1408
        %v1412 = vadd.f32 %v1392, %v1407
        %v1413 = vadd.f32 %v1393, %v1409
        %1414 = vset.pattern.permute.xlu0 16
        %1415 = vperm.xlu0 %1414, %v1118
        %v1416 = vpop.permute.xlu0 %1415
        %1418 = vset.pattern.permute.xlu0 16
        %1419 = vperm.xlu0 %1418, %v1123
        %v1420 = vpop.permute.xlu0 %1419
        %v1422 = vmul.f32 %v1416, %v1030
        %v1423 = vmul.f32 %v1420, %v1038
        %v1424 = vadd.f32 %v1412, %v1422
        %v1425 = vadd.f32 %v1413, %v1423
        %1426 = vset.pattern.permute.xlu0 17
        %1427 = vperm.xlu0 %1426, %v1118
        %v1428 = vpop.permute.xlu0 %1427
        %1430 = vset.pattern.permute.xlu0 17
        %1431 = vperm.xlu0 %1430, %v1123
        %v1432 = vpop.permute.xlu0 %1431
        %v1434 = vmul.f32 %v1428, %v1030
        %v1435 = vmul.f32 %v1432, %v1038
        %1438 = vrot.lane.b32.xlu0 %v1434, 96
        %v1439 = vpop.permute.xlu0 %1438
        %1440 = vrot.lane.b32.xlu0 %v1435, 96
        %v1441 = vpop.permute.xlu0 %1440
        %v1444 = vadd.f32 %v1424, %v1439
        %v1445 = vadd.f32 %v1425, %v1441
        %1446 = vset.pattern.permute.xlu0 18
        %1447 = vperm.xlu0 %1446, %v1118
        %v1448 = vpop.permute.xlu0 %1447
        %1450 = vset.pattern.permute.xlu0 18
        %1451 = vperm.xlu0 %1450, %v1123
        %v1452 = vpop.permute.xlu0 %1451
        %v1454 = vmul.f32 %v1448, %v1030
        %v1455 = vmul.f32 %v1452, %v1038
        %1458 = vrot.lane.b32.xlu0 %v1454, 64
        %v1459 = vpop.permute.xlu0 %1458
        %1460 = vrot.lane.b32.xlu0 %v1455, 64
        %v1461 = vpop.permute.xlu0 %1460
        %v1464 = vadd.f32 %v1444, %v1459
        %v1465 = vadd.f32 %v1445, %v1461
        %1466 = vset.pattern.permute.xlu0 19
        %1467 = vperm.xlu0 %1466, %v1118
        %v1468 = vpop.permute.xlu0 %1467
        %1470 = vset.pattern.permute.xlu0 19
        %1471 = vperm.xlu0 %1470, %v1123
        %v1472 = vpop.permute.xlu0 %1471
        %v1474 = vmul.f32 %v1468, %v1030
        %v1475 = vmul.f32 %v1472, %v1038
        %1478 = vrot.lane.b32.xlu0 %v1474, 32
        %v1479 = vpop.permute.xlu0 %1478
        %1480 = vrot.lane.b32.xlu0 %v1475, 32
        %v1481 = vpop.permute.xlu0 %1480
        %v1484 = vadd.f32 %v1464, %v1479
        %v1485 = vadd.f32 %v1465, %v1481
        %1486 = vset.pattern.permute.xlu0 20
        %1487 = vperm.xlu0 %1486, %v1118
        %v1488 = vpop.permute.xlu0 %1487
        %1490 = vset.pattern.permute.xlu0 20
        %1491 = vperm.xlu0 %1490, %v1123
        %v1492 = vpop.permute.xlu0 %1491
        %v1494 = vmul.f32 %v1488, %v1031
        %v1495 = vmul.f32 %v1492, %v1039
        %v1496 = vadd.f32 %v1484, %v1494
        %v1497 = vadd.f32 %v1485, %v1495
        %1498 = vset.pattern.permute.xlu0 21
        %1499 = vperm.xlu0 %1498, %v1118
        %v1500 = vpop.permute.xlu0 %1499
        %1502 = vset.pattern.permute.xlu0 21
        %1503 = vperm.xlu0 %1502, %v1123
        %v1504 = vpop.permute.xlu0 %1503
        %v1506 = vmul.f32 %v1500, %v1031
        %v1507 = vmul.f32 %v1504, %v1039
        %1510 = vrot.lane.b32.xlu0 %v1506, 96
        %v1511 = vpop.permute.xlu0 %1510
        %1512 = vrot.lane.b32.xlu0 %v1507, 96
        %v1513 = vpop.permute.xlu0 %1512
        %v1516 = vadd.f32 %v1496, %v1511
        %v1517 = vadd.f32 %v1497, %v1513
        %1518 = vset.pattern.permute.xlu0 22
        %1519 = vperm.xlu0 %1518, %v1118
        %v1520 = vpop.permute.xlu0 %1519
        %1522 = vset.pattern.permute.xlu0 22
        %1523 = vperm.xlu0 %1522, %v1123
        %v1524 = vpop.permute.xlu0 %1523
        %v1526 = vmul.f32 %v1520, %v1031
        %v1527 = vmul.f32 %v1524, %v1039
        %1530 = vrot.lane.b32.xlu0 %v1526, 64
        %v1531 = vpop.permute.xlu0 %1530
        %1532 = vrot.lane.b32.xlu0 %v1527, 64
        %v1533 = vpop.permute.xlu0 %1532
        %v1536 = vadd.f32 %v1516, %v1531
        %v1537 = vadd.f32 %v1517, %v1533
        %1538 = vset.pattern.permute.xlu0 23
        %1539 = vperm.xlu0 %1538, %v1118
        %v1540 = vpop.permute.xlu0 %1539
        %1542 = vset.pattern.permute.xlu0 23
        %1543 = vperm.xlu0 %1542, %v1123
        %v1544 = vpop.permute.xlu0 %1543
        %v1546 = vmul.f32 %v1540, %v1031
        %v1547 = vmul.f32 %v1544, %v1039
        %1550 = vrot.lane.b32.xlu0 %v1546, 32
        %v1551 = vpop.permute.xlu0 %1550
        %1552 = vrot.lane.b32.xlu0 %v1547, 32
        %v1553 = vpop.permute.xlu0 %1552
        %v1556 = vadd.f32 %v1536, %v1551
        %v1557 = vadd.f32 %v1537, %v1553
        %1558 = vset.pattern.permute.xlu0 24
        %1559 = vperm.xlu0 %1558, %v1118
        %v1560 = vpop.permute.xlu0 %1559
        %1562 = vset.pattern.permute.xlu0 24
        %1563 = vperm.xlu0 %1562, %v1123
        %v1564 = vpop.permute.xlu0 %1563
        %v1566 = vmul.f32 %v1560, %v1032
        %v1567 = vmul.f32 %v1564, %v1040
        %v1568 = vadd.f32 %v1556, %v1566
        %v1569 = vadd.f32 %v1557, %v1567
        %1570 = vset.pattern.permute.xlu0 25
        %1571 = vperm.xlu0 %1570, %v1118
        %v1572 = vpop.permute.xlu0 %1571
        %1574 = vset.pattern.permute.xlu0 25
        %1575 = vperm.xlu0 %1574, %v1123
        %v1576 = vpop.permute.xlu0 %1575
        %v1578 = vmul.f32 %v1572, %v1032
        %v1579 = vmul.f32 %v1576, %v1040
        %1582 = vrot.lane.b32.xlu0 %v1578, 96
        %v1583 = vpop.permute.xlu0 %1582
        %1584 = vrot.lane.b32.xlu0 %v1579, 96
        %v1585 = vpop.permute.xlu0 %1584
        %v1588 = vadd.f32 %v1568, %v1583
        %v1589 = vadd.f32 %v1569, %v1585
        %1590 = vset.pattern.permute.xlu0 26
        %1591 = vperm.xlu0 %1590, %v1118
        %v1592 = vpop.permute.xlu0 %1591
        %1594 = vset.pattern.permute.xlu0 26
        %1595 = vperm.xlu0 %1594, %v1123
        %v1596 = vpop.permute.xlu0 %1595
        %v1598 = vmul.f32 %v1592, %v1032
        %v1599 = vmul.f32 %v1596, %v1040
        %1602 = vrot.lane.b32.xlu0 %v1598, 64
        %v1603 = vpop.permute.xlu0 %1602
        %1604 = vrot.lane.b32.xlu0 %v1599, 64
        %v1605 = vpop.permute.xlu0 %1604
        %v1608 = vadd.f32 %v1588, %v1603
        %v1609 = vadd.f32 %v1589, %v1605
        %1610 = vset.pattern.permute.xlu0 27
        %1611 = vperm.xlu0 %1610, %v1118
        %v1612 = vpop.permute.xlu0 %1611
        %1614 = vset.pattern.permute.xlu0 27
        %1615 = vperm.xlu0 %1614, %v1123
        %v1616 = vpop.permute.xlu0 %1615
        %v1618 = vmul.f32 %v1612, %v1032
        %v1619 = vmul.f32 %v1616, %v1040
        %1622 = vrot.lane.b32.xlu0 %v1618, 32
        %v1623 = vpop.permute.xlu0 %1622
        %1624 = vrot.lane.b32.xlu0 %v1619, 32
        %v1625 = vpop.permute.xlu0 %1624
        %v1628 = vadd.f32 %v1608, %v1623
        %v1629 = vadd.f32 %v1609, %v1625
        %1630 = vset.pattern.permute.xlu0 28
        %1631 = vperm.xlu0 %1630, %v1118
        %v1632 = vpop.permute.xlu0 %1631
        %1634 = vset.pattern.permute.xlu0 28
        %1635 = vperm.xlu0 %1634, %v1123
        %v1636 = vpop.permute.xlu0 %1635
        %v1638 = vmul.f32 %v1632, %v1033
        %v1639 = vmul.f32 %v1636, %v1041
        %v1640 = vadd.f32 %v1628, %v1638
        %v1641 = vadd.f32 %v1629, %v1639
        %1642 = vset.pattern.permute.xlu0 29
        %1643 = vperm.xlu0 %1642, %v1118
        %v1644 = vpop.permute.xlu0 %1643
        %1646 = vset.pattern.permute.xlu0 29
        %1647 = vperm.xlu0 %1646, %v1123
        %v1648 = vpop.permute.xlu0 %1647
        %v1650 = vmul.f32 %v1644, %v1033
        %v1651 = vmul.f32 %v1648, %v1041
        %1654 = vrot.lane.b32.xlu0 %v1650, 96
        %v1655 = vpop.permute.xlu0 %1654
        %1656 = vrot.lane.b32.xlu0 %v1651, 96
        %v1657 = vpop.permute.xlu0 %1656
        %v1660 = vadd.f32 %v1640, %v1655
        %v1661 = vadd.f32 %v1641, %v1657
        %1662 = vset.pattern.permute.xlu0 30
        %1663 = vperm.xlu0 %1662, %v1118
        %v1664 = vpop.permute.xlu0 %1663
        %1666 = vset.pattern.permute.xlu0 30
        %1667 = vperm.xlu0 %1666, %v1123
        %v1668 = vpop.permute.xlu0 %1667
        %v1670 = vmul.f32 %v1664, %v1033
        %v1671 = vmul.f32 %v1668, %v1041
        %1674 = vrot.lane.b32.xlu0 %v1670, 64
        %v1675 = vpop.permute.xlu0 %1674
        %1676 = vrot.lane.b32.xlu0 %v1671, 64
        %v1677 = vpop.permute.xlu0 %1676
        %v1680 = vadd.f32 %v1660, %v1675
        %v1681 = vadd.f32 %v1661, %v1677
        %1682 = vset.pattern.permute.xlu0 31
        %1683 = vperm.xlu0 %1682, %v1118
        %v1684 = vpop.permute.xlu0 %1683
        %1686 = vset.pattern.permute.xlu0 31
        %1687 = vperm.xlu0 %1686, %v1123
        %v1688 = vpop.permute.xlu0 %1687
        %v1690 = vmul.f32 %v1684, %v1033
        %v1691 = vmul.f32 %v1688, %v1041
        %1694 = vrot.lane.b32.xlu0 %v1690, 32
        %v1695 = vpop.permute.xlu0 %1694
        %1696 = vrot.lane.b32.xlu0 %v1691, 32
        %v1697 = vpop.permute.xlu0 %1696
        %v1700 = vadd.f32 %v1680, %v1695
        %v1701 = vadd.f32 %v1681, %v1697
        %v1702 = vld [vmem:[%s3] sm:$0xff]
        %v1703 = vld [vmem:[%s8] sm:$0xff]
        %v1704 = vld [vmem:[%s8 + $0x8] sm:$0xff]
        %v1705 = vld [vmem:[%s8 + $0x10] sm:$0xff]
        %v1706 = vld [vmem:[%s8 + $0x18] sm:$0xff]
        %vm1707 = vcmask 261120
        %v1709 = vsel %vm1707, %v1024, 0
        %1711 = vmatprep.subr.mxu0 0.0
        %1712 = vmatpush1.msra.mxu0 0.0
        %1713 = vmatprep.subr.mxu0 0.0
        %1714 = vmatpush1.msra.mxu0 0.0
        %1715 = vmatprep.subr.mxu0 0.0
        %1716 = vmatpush1.msra.mxu0 0.0
        %1717 = vmatprep.subr.mxu0 0.0
        %1718 = vmatpush1.msra.mxu0 0.0
        %1719 = vmatprep.subr.mxu0 0.0
        %1720 = vmatpush1.msra.mxu0 0.0
        %1721 = vmatprep.subr.mxu0 0.0
        %1722 = vmatpush1.msra.mxu0 0.0
        %1723 = vmatprep.subr.mxu0 0.0
        %1724 = vmatpush1.msra.mxu0 0.0
        %1725 = vmatprep.subr.mxu0 0.0
        %1726 = vmatpush1.msra.mxu0 0.0
        %1727 = vmatprep.subr.mxu0 0.0
        %1728 = vmatpush1.msra.mxu0 0.0
        %1729 = vmatprep.subr.mxu0 0.0
        %1730 = vmatpush1.msra.mxu0 0.0
        %1731 = vmatprep.subr.mxu0 0.0
        %1732 = vmatpush1.msra.mxu0 0.0
        %1733 = vmatprep.subr.mxu0 0.0
        %1734 = vmatpush1.msra.mxu0 0.0
        %1735 = vmatprep.subr.mxu0 0.0
        %1736 = vmatpush1.msra.mxu0 %v1706
        %1737 = vmatprep.subr.mxu0 0.0
        %1738 = vmatpush1.msra.mxu0 %v1705
        %1739 = vmatprep.subr.mxu0 0.0
        %1740 = vmatpush1.msra.mxu0 %v1704
        %1741 = vmatprep.subr.mxu0 0.0
        %1742 = vmatpush1.msra.mxu0 %v1703
        %1743 = vmatprep.subr.mxu0 0.0
        %1744 = vmatpush2.msra.mxu0 0.0
        %1745 = vmatprep.subr.mxu0 0.0
        %1746 = vmatpush2.msra.mxu0 0.0
        %1747 = vmatprep.subr.mxu0 0.0
        %1748 = vmatpush2.msra.mxu0 0.0
        %1749 = vmatprep.subr.mxu0 0.0
        %1750 = vmatpush2.msra.mxu0 0.0
        %1751 = vmatprep.subr.mxu0 0.0
        %1752 = vmatpush2.msra.mxu0 0.0
        %1753 = vmatprep.subr.mxu0 0.0
        %1754 = vmatpush2.msra.mxu0 0.0
        %1755 = vmatprep.subr.mxu0 0.0
        %1756 = vmatpush2.msra.mxu0 0.0
        %1757 = vmatprep.subr.mxu0 0.0
        %1758 = vmatpush2.msra.mxu0 0.0
        %1759 = vmatprep.subr.mxu0 0.0
        %1760 = vmatpush2.msra.mxu0 0.0
        %1761 = vmatprep.subr.mxu0 0.0
        %1762 = vmatpush2.msra.mxu0 0.0
        %1763 = vmatprep.subr.mxu0 0.0
        %1764 = vmatpush2.msra.mxu0 0.0
        %1765 = vmatprep.subr.mxu0 0.0
        %1766 = vmatpush2.msra.mxu0 0.0
        %1767 = vmatprep.subr.mxu0 0.0
        %1768 = vmatpush2.msra.mxu0 0.0
        %1769 = vmatprep.subr.mxu0 0.0
        %1770 = vmatpush2.msra.mxu0 0.0
        %1771 = vmatprep.subr.mxu0 0.0
        %1772 = vmatpush2.msra.mxu0 0.0
        %1773 = vmatprep.subr.mxu0 0.0
        %1774 = vmatpush2.msra.mxu0 0.0
        %1775 = vmatprep.mubr.f32.mxu0 0.0
        %1776 = vmatmul.mubr.f32.gmra.mxu0 %v1709
        %v1777 = vpop.f32.mrf.mxu0
        %v1778 = vadd.f32 0.0, %v1777
        %v1779 = vpop.f32.mrf.mxu0
        %1780 = vdwg.mxu0
        %vm1781 = vcmask 97280
        %v1783 = vsel %vm1781, %v1702, 0
        %vm1785 = vcmask 1043456
        %v1787 = vsel %vm1785, %v1701, 0
        %1789 = vmatprep.subr.mxu0 0.0
        %1790 = vmatpush1.msra.mxu0 0.0
        %1791 = vmatprep.subr.mxu0 0.0
        %1792 = vmatpush1.msra.mxu0 0.0
        %1793 = vmatprep.subr.mxu0 0.0
        %1794 = vmatpush1.msra.mxu0 0.0
        %1795 = vmatprep.subr.mxu0 0.0
        %1796 = vmatpush1.msra.mxu0 0.0
        %1797 = vmatprep.subr.mxu0 0.0
        %1798 = vmatpush1.msra.mxu0 0.0
        %1799 = vmatprep.subr.mxu0 0.0
        %1800 = vmatpush1.msra.mxu0 0.0
        %1801 = vmatprep.subr.mxu0 0.0
        %1802 = vmatpush1.msra.mxu0 0.0
        %1803 = vmatprep.subr.mxu0 0.0
        %1804 = vmatpush1.msra.mxu0 0.0
        %1805 = vmatprep.subr.mxu0 0.0
        %1806 = vmatpush1.msra.mxu0 0.0
        %1807 = vmatprep.subr.mxu0 0.0
        %1808 = vmatpush1.msra.mxu0 0.0
        %1809 = vmatprep.subr.mxu0 0.0
        %1810 = vmatpush1.msra.mxu0 0.0
        %1811 = vmatprep.subr.mxu0 0.0
        %1812 = vmatpush1.msra.mxu0 0.0
        %1813 = vmatprep.subr.mxu0 0.0
        %1814 = vmatpush1.msra.mxu0 0.0
        %1815 = vmatprep.subr.mxu0 0.0
        %1816 = vmatpush1.msra.mxu0 0.0
        %1817 = vmatprep.subr.mxu0 0.0
        %1818 = vmatpush1.msra.mxu0 %v1787
        %1819 = vmatprep.subr.mxu0 0.0
        %1820 = vmatpush1.msra.mxu0 %v1700
        %1821 = vmatprep.subr.mxu0 0.0
        %1822 = vmatpush2.msra.mxu0 0.0
        %1823 = vmatprep.subr.mxu0 0.0
        %1824 = vmatpush2.msra.mxu0 0.0
        %1825 = vmatprep.subr.mxu0 0.0
        %1826 = vmatpush2.msra.mxu0 0.0
        %1827 = vmatprep.subr.mxu0 0.0
        %1828 = vmatpush2.msra.mxu0 0.0
        %1829 = vmatprep.subr.mxu0 0.0
        %1830 = vmatpush2.msra.mxu0 0.0
        %1831 = vmatprep.subr.mxu0 0.0
        %1832 = vmatpush2.msra.mxu0 0.0
        %1833 = vmatprep.subr.mxu0 0.0
        %1834 = vmatpush2.msra.mxu0 0.0
        %1835 = vmatprep.subr.mxu0 0.0
        %1836 = vmatpush2.msra.mxu0 0.0
        %1837 = vmatprep.subr.mxu0 0.0
        %1838 = vmatpush2.msra.mxu0 0.0
        %1839 = vmatprep.subr.mxu0 0.0
        %1840 = vmatpush2.msra.mxu0 0.0
        %1841 = vmatprep.subr.mxu0 0.0
        %1842 = vmatpush2.msra.mxu0 0.0
        %1843 = vmatprep.subr.mxu0 0.0
        %1844 = vmatpush2.msra.mxu0 0.0
        %1845 = vmatprep.subr.mxu0 0.0
        %1846 = vmatpush2.msra.mxu0 0.0
        %1847 = vmatprep.subr.mxu0 0.0
        %1848 = vmatpush2.msra.mxu0 0.0
        %1849 = vmatprep.subr.mxu0 0.0
        %1850 = vmatpush2.msra.mxu0 0.0
        %1851 = vmatprep.subr.mxu0 0.0
        %1852 = vmatpush2.msra.mxu0 0.0
        %1853 = vmatprep.mubr.f32.mxu0 0.0
        %1854 = vmatmul.mubr.f32.gmra.mxu0 %v1783
        %v1855 = vpop.f32.mrf.mxu0
        %v1856 = vadd.f32 %v1778, %v1855
        %v1857 = vpop.f32.mrf.mxu0
        %1858 = vdwg.mxu0
        %v1859 = vld [vmem:[#allocation9] sm:$0x1]
        %v1861 = vlaneseq
        %v1862 = vshrl.u32 %v1861, 7
        %v1863 = vsub.s32 0, %v1862
        %v1864 = vrot.slane %v1859, %v1863
        %v1866 = vadd.f32 %v1856, %v1864
        %v1867 = vmax.f32 %v1866, 0.0
        %v1868 = vld [vmem:[#allocation10] sm:$0xff]
        %v1869 = vld [vmem:[#allocation10 + $0x8] sm:$0xff]
        %v1870 = vld [vmem:[#allocation10 + $0x10] sm:$0xff]
        %v1871 = vld [vmem:[#allocation10 + $0x18] sm:$0xff]
        %v1872 = vld [vmem:[#allocation13] sm:$0x1]
        %v1874 = vlaneseq
        %v1875 = vshrl.u32 %v1874, 7
        %v1876 = vsub.s32 0, %v1875
        %v1877 = vrot.slane %v1872, %v1876
        %v1880 = vsel %vm1707, %v1867, 0
        %1882 = vmatprep.subr.mxu0 0.0
        %1883 = vmatpush1.msra.mxu0 0.0
        %1884 = vmatprep.subr.mxu0 0.0
        %1885 = vmatpush1.msra.mxu0 0.0
        %1886 = vmatprep.subr.mxu0 0.0
        %1887 = vmatpush1.msra.mxu0 0.0
        %1888 = vmatprep.subr.mxu0 0.0
        %1889 = vmatpush1.msra.mxu0 0.0
        %1890 = vmatprep.subr.mxu0 0.0
        %1891 = vmatpush1.msra.mxu0 0.0
        %1892 = vmatprep.subr.mxu0 0.0
        %1893 = vmatpush1.msra.mxu0 0.0
        %1894 = vmatprep.subr.mxu0 0.0
        %1895 = vmatpush1.msra.mxu0 0.0
        %1896 = vmatprep.subr.mxu0 0.0
        %1897 = vmatpush1.msra.mxu0 0.0
        %1898 = vmatprep.subr.mxu0 0.0
        %1899 = vmatpush1.msra.mxu0 0.0
        %1900 = vmatprep.subr.mxu0 0.0
        %1901 = vmatpush1.msra.mxu0 0.0
        %1902 = vmatprep.subr.mxu0 0.0
        %1903 = vmatpush1.msra.mxu0 0.0
        %1904 = vmatprep.subr.mxu0 0.0
        %1905 = vmatpush1.msra.mxu0 0.0
        %1906 = vmatprep.subr.mxu0 0.0
        %1907 = vmatpush1.msra.mxu0 %v1871
        %1908 = vmatprep.subr.mxu0 0.0
        %1909 = vmatpush1.msra.mxu0 %v1870
        %1910 = vmatprep.subr.mxu0 0.0
        %1911 = vmatpush1.msra.mxu0 %v1869
        %1912 = vmatprep.subr.mxu0 0.0
        %1913 = vmatpush1.msra.mxu0 %v1868
        %1914 = vmatprep.subr.mxu0 0.0
        %1915 = vmatpush2.msra.mxu0 0.0
        %1916 = vmatprep.subr.mxu0 0.0
        %1917 = vmatpush2.msra.mxu0 0.0
        %1918 = vmatprep.subr.mxu0 0.0
        %1919 = vmatpush2.msra.mxu0 0.0
        %1920 = vmatprep.subr.mxu0 0.0
        %1921 = vmatpush2.msra.mxu0 0.0
        %1922 = vmatprep.subr.mxu0 0.0
        %1923 = vmatpush2.msra.mxu0 0.0
        %1924 = vmatprep.subr.mxu0 0.0
        %1925 = vmatpush2.msra.mxu0 0.0
        %1926 = vmatprep.subr.mxu0 0.0
        %1927 = vmatpush2.msra.mxu0 0.0
        %1928 = vmatprep.subr.mxu0 0.0
        %1929 = vmatpush2.msra.mxu0 0.0
        %1930 = vmatprep.subr.mxu0 0.0
        %1931 = vmatpush2.msra.mxu0 0.0
        %1932 = vmatprep.subr.mxu0 0.0
        %1933 = vmatpush2.msra.mxu0 0.0
        %1934 = vmatprep.subr.mxu0 0.0
        %1935 = vmatpush2.msra.mxu0 0.0
        %1936 = vmatprep.subr.mxu0 0.0
        %1937 = vmatpush2.msra.mxu0 0.0
        %1938 = vmatprep.subr.mxu0 0.0
        %1939 = vmatpush2.msra.mxu0 0.0
        %1940 = vmatprep.subr.mxu0 0.0
        %1941 = vmatpush2.msra.mxu0 0.0
        %1942 = vmatprep.subr.mxu0 0.0
        %1943 = vmatpush2.msra.mxu0 0.0
        %1944 = vmatprep.subr.mxu0 0.0
        %1945 = vmatpush2.msra.mxu0 0.0
        %1946 = vmatprep.mubr.f32.mxu0 0.0
        %1947 = vmatmul.mubr.f32.gmra.mxu0 %v1880
        %v1948 = vpop.f32.mrf.mxu0
        %v1949 = vadd.f32 %v1877, %v1948
        %v1950 = vpop.f32.mrf.mxu0
        %1951 = vdwg.mxu0
        %v1952 = vld [vmem:[#allocation12] sm:$0xff]
        %v1953 = vld [vmem:[#allocation12 + $0x8] sm:$0xff]
        %v1954 = vld [vmem:[#allocation12 + $0x10] sm:$0xff]
        %v1955 = vld [vmem:[#allocation12 + $0x18] sm:$0xff]
        %v1956 = vld [vmem:[#allocation15] sm:$0x1]
        %v1958 = vlaneseq
        %v1959 = vshrl.u32 %v1958, 7
        %v1960 = vsub.s32 0, %v1959
        %v1961 = vrot.slane %v1956, %v1960
        %v1964 = vsel %vm1707, %v1025, 0
        %1966 = vmatprep.subr.mxu0 0.0
        %1967 = vmatpush1.msra.mxu0 0.0
        %1968 = vmatprep.subr.mxu0 0.0
        %1969 = vmatpush1.msra.mxu0 0.0
        %1970 = vmatprep.subr.mxu0 0.0
        %1971 = vmatpush1.msra.mxu0 0.0
        %1972 = vmatprep.subr.mxu0 0.0
        %1973 = vmatpush1.msra.mxu0 0.0
        %1974 = vmatprep.subr.mxu0 0.0
        %1975 = vmatpush1.msra.mxu0 0.0
        %1976 = vmatprep.subr.mxu0 0.0
        %1977 = vmatpush1.msra.mxu0 0.0
        %1978 = vmatprep.subr.mxu0 0.0
        %1979 = vmatpush1.msra.mxu0 0.0
        %1980 = vmatprep.subr.mxu0 0.0
        %1981 = vmatpush1.msra.mxu0 0.0
        %1982 = vmatprep.subr.mxu0 0.0
        %1983 = vmatpush1.msra.mxu0 0.0
        %1984 = vmatprep.subr.mxu0 0.0
        %1985 = vmatpush1.msra.mxu0 0.0
        %1986 = vmatprep.subr.mxu0 0.0
        %1987 = vmatpush1.msra.mxu0 0.0
        %1988 = vmatprep.subr.mxu0 0.0
        %1989 = vmatpush1.msra.mxu0 0.0
        %1990 = vmatprep.subr.mxu0 0.0
        %1991 = vmatpush1.msra.mxu0 %v1955
        %1992 = vmatprep.subr.mxu0 0.0
        %1993 = vmatpush1.msra.mxu0 %v1954
        %1994 = vmatprep.subr.mxu0 0.0
        %1995 = vmatpush1.msra.mxu0 %v1953
        %1996 = vmatprep.subr.mxu0 0.0
        %1997 = vmatpush1.msra.mxu0 %v1952
        %1998 = vmatprep.subr.mxu0 0.0
        %1999 = vmatpush2.msra.mxu0 0.0
        %2000 = vmatprep.subr.mxu0 0.0
        %2001 = vmatpush2.msra.mxu0 0.0
        %2002 = vmatprep.subr.mxu0 0.0
        %2003 = vmatpush2.msra.mxu0 0.0
        %2004 = vmatprep.subr.mxu0 0.0
        %2005 = vmatpush2.msra.mxu0 0.0
        %2006 = vmatprep.subr.mxu0 0.0
        %2007 = vmatpush2.msra.mxu0 0.0
        %2008 = vmatprep.subr.mxu0 0.0
        %2009 = vmatpush2.msra.mxu0 0.0
        %2010 = vmatprep.subr.mxu0 0.0
        %2011 = vmatpush2.msra.mxu0 0.0
        %2012 = vmatprep.subr.mxu0 0.0
        %2013 = vmatpush2.msra.mxu0 0.0
        %2014 = vmatprep.subr.mxu0 0.0
        %2015 = vmatpush2.msra.mxu0 0.0
        %2016 = vmatprep.subr.mxu0 0.0
        %2017 = vmatpush2.msra.mxu0 0.0
        %2018 = vmatprep.subr.mxu0 0.0
        %2019 = vmatpush2.msra.mxu0 0.0
        %2020 = vmatprep.subr.mxu0 0.0
        %2021 = vmatpush2.msra.mxu0 0.0
        %2022 = vmatprep.subr.mxu0 0.0
        %2023 = vmatpush2.msra.mxu0 0.0
        %2024 = vmatprep.subr.mxu0 0.0
        %2025 = vmatpush2.msra.mxu0 0.0
        %2026 = vmatprep.subr.mxu0 0.0
        %2027 = vmatpush2.msra.mxu0 0.0
        %2028 = vmatprep.subr.mxu0 0.0
        %2029 = vmatpush2.msra.mxu0 0.0
        %2030 = vmatprep.mubr.f32.mxu0 0.0
        %2031 = vmatmul.mubr.f32.gmra.mxu0 %v1964
        %v2032 = vpop.f32.mrf.mxu0
        %v2033 = vadd.f32 %v1961, %v2032
        %v2034 = vpop.f32.mrf.mxu0
        %2035 = vdwg.mxu0
        %v2036 = vadd.f32 %v1949, %v2033
        %v2037 = vxor.u32 %v2036, 2147483648
        %v2038 = vmul.f32 %v2037, 1.442695
        %v2039 = vpow.pop %v2038
        %v2040 = vadd.f32 %v2039, 1.0
        %v2041 = vrcp.pop %v2040
        %v2042 = vmul.f32 1.0, %v2041
        %2044 = vrot.lane.b32.xlu0 %v2033, 64
        %v2045 = vpop.permute.xlu0 %2044
        %v2047 = vmul.f32 %v2042, %v2045
        %2049 = vrot.lane.b32.xlu0 %v2047, 64
        %v2050 = vpop.permute.xlu0 %2049
        %v2052 = vadd.f32 %v1949, %v2050
        %v2053 = vtanh.pop %v2052
        %v2054 = vsub.f32 1.0, %v2042
        %2056 = vrot.lane.b32.xlu0 %v2053, 96
        %v2057 = vpop.permute.xlu0 %2056
        %v2059 = vmul.f32 %v2054, %v2057
        %2060 = vrot.lane.b32.xlu0 %v1025, 32
        %v2061 = vpop.permute.xlu0 %2060
        %v2063 = vmul.f32 %v2042, %v2061
        %v2064 = vadd.f32 %v2059, %v2063
        %2066 = vrot.lane.b32.xlu0 %v2064, 96
        %v2067 = vpop.permute.xlu0 %2066
        %2069 = vst.msk [vmem:[#allocation2] sm:$0xff] %vm1707, %v2067
        %2070 = vst.msk [vmem:[#allocation3] sm:$0xff] %vm1707, %v2067
        %p2071 = scmp.eq.s32.totalorder %s29, 2
        // Predicated region
        $region109: #{mpnn3_forward.2} parent=75 // pred_check
          %p2072 = pneg %p2071
        $region110: #{mpnn3_forward.2} parent=75 // pred_check_branch
          %2074 = sbr.rel (%p2072) target = $region112
        $region111: #{mpnn3_forward.2} parent=75 // pred_region
          %2075 = vst.msk [vmem:[%s14] sm:$0xff] %vm1707, %v2067
        $region112: #{mpnn3_forward.2} parent=75 // pred_fallthru
          _
        // Predicated region
        $region113: #{mpnn3_forward.2} parent=75 // pred_check
          %p2076 = pneg %p336
        $region114: #{mpnn3_forward.2} parent=75 // pred_check_branch
          %2078 = sbr.rel (%p2076) target = $region116
        $region115: #{mpnn3_forward.2} parent=75 // pred_region
          _
        $region116: #{mpnn3_forward.2} parent=75 // pred_fallthru
          _
        // Predicated region
        $region117: #{mpnn3_forward.2} parent=75 // pred_check
          %p2079 = pneg %p336
        $region118: #{mpnn3_forward.2} parent=75 // pred_check_branch
          %2081 = sbr.rel (%p2079) target = $region120
        $region119: #{mpnn3_forward.2} parent=75 // pred_region
          _
        $region120: #{mpnn3_forward.2} parent=75 // pred_fallthru
          _
      $region76: #{mpnn3_forward.2} parent=5 // pred_fallthru
        _
      %p2082 = scmp.le.s32.totalorder 2, %s24
      // Predicated region
      $region121: #{mpnn3_forward.2} parent=5 // pred_check
        %p2083 = pneg %p2082
      $region122: #{mpnn3_forward.2} parent=5 // pred_check_branch
        %2085 = sbr.rel (%p2083) target = $region124
      $region123: #{mpnn3_forward.2} parent=5 // pred_region
        %s2086 = ssub.s32 %s24, 2
      $region124: #{mpnn3_forward.2} parent=5 // pred_fallthru
        _
    $region6: #{mpnn3_forward.2} parent=1 // loop_footer
      %s28 = sadd.s32 1, %s24
    $region7: #{mpnn3_forward.2} parent=1 // loop_footer_branch
      %23 = sbr.rel target = $region3
    $region8: #{mpnn3_forward.2} parent=1 // loop_exit
      _
    %2087 = vsyncpa [#allocation6], 1
    %s2088 = scalar_lea.sflag [#allocation6], 1
    %2089 = vsyncpa %s2088, 1
    %2090 = vsyncpa [#allocation8], 1
    %2091 = vsyncpa [#allocation11], 1
    %2092 = vsyncpa [#allocation14], 1

</llo_original>
